<compile_context>
chip_gen: v7x
topology: tpu7x:2x2x1
jax: 0.10.0
libtpu: 0.0.40
codegen_flags: <defaults>
</compile_context>

<pallas_src>
import functools

import jax
import jax.numpy as jnp
from jax.experimental import pallas as pl
from jax.experimental.pallas import tpu as pltpu


# ------------------------------ constants ---------------------------------- #

C_IN, C_OUT, K = 48, 192, 3
NH, NW = 28, 112            # conv "image": 28 rows x 112 cols (conv runs over the 28-axis)
NWH = 56                    # original spatial W (period of the torch W-roll)
NPIX = NH * NW              # 3136 spatial positions (= 56*56)
KC = K * C_IN               # 144 merged contraction dim


# ------------------------------ kernel body --------------------------------- #

def _lane_roll(v, shift):
    """out[:, j] = v[:, (j - shift) % NPIX]   (static shift, jnp.roll semantics)."""
    shift = shift % NPIX
    if shift == 0:
        return v
    return jnp.concatenate([v[:, NPIX - shift:], v[:, :NPIX - shift]], axis=1)


def _build_stacked(x_ref, stk_ref, s):
    """Build the (144, 3136) fused-im2col operand from the raw flat image.

    Row k*48 + c holds channel c of conv tap k over the rolled, zero-padded image.
    """
    x = x_ref[...]                                      # (48, 3136) raw image
    roll_main = _lane_roll(x, 113 * s)                  # 112*s (28-axis roll) + s (W-roll)
    roll_wrap = _lane_roll(x, 57 * s)                   # W-roll wrap (stay inside the 56-block)
    col = jax.lax.broadcasted_iota(jnp.int32, (C_IN, NPIX), 1) % NWH
    wrap_col = 0 if s > 0 else (NWH - 1)
    img = jnp.where(col == wrap_col, roll_wrap, roll_main)   # rolled image (48, 3136)

    zrow = jnp.zeros((C_IN, NW), dtype=img.dtype)
    # tap 0 reads padded row n-1: shift right by one 112-row, zero row -1
    stk_ref[0:C_IN, :] = jnp.concatenate([zrow, img[:, :NPIX - NW]], axis=1)
    # tap 1 reads row n: the image itself
    stk_ref[C_IN:2 * C_IN, :] = img
    # tap 2 reads padded row n+1: shift left by one 112-row, zero row 28
    stk_ref[2 * C_IN:3 * C_IN, :] = jnp.concatenate([img[:, NW:], zrow], axis=1)


def _conv_kernel(w_ref, x_ref, o_ref, stk_ref, *, s):
    # w_ref:   (TM, 144)   merged per-tap weights for this M tile
    # x_ref:   (48, 3136)  raw flat image (grid-invariant block, DMA'd once per core)
    # o_ref:   (TM, 3136)
    # stk_ref: (144, 3136) VMEM scratch, built once per core and reused by all M tiles
    @pl.when(pl.program_id(1) == 0)
    def _():
        _build_stacked(x_ref, stk_ref, s)

    # Single K=144 matmul (vs. 3x K=48): ~3x fewer MXU passes, no VPU accumulates.
    o_ref[...] = jnp.dot(w_ref[...], stk_ref[...],
                         preferred_element_type=jnp.float32)


# ------------------------------ host wrapper -------------------------------- #

def _num_tensorcores():
    """Best-effort TensorCores-per-device (a wrong answer only costs perf, never correctness)."""
    try:
        info = pltpu.get_tpu_info()
        for attr in ("num_cores", "num_cores_per_chip", "tensorcores_per_chip",
                     "core_count", "cores_per_chip"):
            v = getattr(info, attr, None)
            if isinstance(v, int) and v >= 1:
                return min(v, 2)
    except Exception:
        pass
    try:
        d = jax.devices()[0]
        v = getattr(d, "num_cores", None)
        if isinstance(v, int) and v >= 1:
            return min(v, 2)
        kind = str(getattr(d, "device_kind", "")).lower()
        if ("v4" in kind) or ("v5p" in kind) or ("v7" in kind):
            return 2
    except Exception:
        pass
    return 1


def conv_pallas(w2, x_flat, s, ncores, msteps):
    """out (192, 3136) = merged-weight (192,144) @ stacked-rolled-padded image (144,3136)."""
    tm = C_OUT // (ncores * msteps)

    def m_block(c, j):
        return (c * msteps + j, 0)

    return pl.pallas_call(
        functools.partial(_conv_kernel, s=s),
        out_shape=jax.ShapeDtypeStruct((C_OUT, NPIX), jnp.float32),
        grid=(ncores, msteps),
        in_specs=[
            pl.BlockSpec((tm, KC), m_block),                    # merged weights (tiny)
            pl.BlockSpec((C_IN, NPIX), lambda c, j: (0, 0)),    # raw image, grid-invariant
        ],
        out_specs=pl.BlockSpec((tm, NPIX), m_block),
        scratch_shapes=[pltpu.VMEM((KC, NPIX), jnp.float32)],
        compiler_params=pltpu.CompilerParams(
            dimension_semantics=("parallel", "arbitrary"),
            vmem_limit_bytes=48 * 1024 * 1024),
        cost_estimate=pl.CostEstimate(
            flops=2 * C_OUT * KC * NPIX,
            transcendentals=0,
            bytes_accessed=(C_OUT * KC + C_IN * NPIX + C_OUT * NPIX) * 4),
    )(w2, x_flat)


def forward(x, weight, shift_direction):
    """
    x:      (1, 48, 56, 56) float32   (NCHW, matching the torch module)
    weight: (192, 48, 3)    float32
    shift_direction: static python int, +1 or -1
    returns (1, 192, 56, 56) float32
    """
    s = int(shift_direction)

    ncores = _num_tensorcores()
    if ncores >= 2:
        ncores, msteps = 2, 2      # tm = 48: 2 pipeline steps per TensorCore (v7x/v4/v5p)
    else:
        ncores, msteps = 1, 3      # tm = 64: 3 pipeline steps on the single core (v5e/v6e)

    # (1,48,56,56) -> (48, 3136): identical flat layout (h*56+w == n*112+o*56+w) -> free.
    x_flat = x.reshape(C_IN, NPIX)
    # merged weights: w2[i, k*48 + c] = weight[i, c, k]
    w2 = jnp.transpose(weight, (0, 2, 1)).reshape(C_OUT, KC)

    out = conv_pallas(w2, x_flat, s, ncores, msteps)            # (192, 3136)

    # flat n*112 + o*56 + w == h*56 + w with h = 2n + o; W-roll already folded to the input.
    return out.reshape(1, C_OUT, 56, 56)


forward_jit = jax.jit(forward, static_argnums=2)


# ------------------------------- reference ---------------------------------- #

def reference(x, weight, shift):
    """Pure-JAX transcription of the torch module (ground truth)."""
    t = x.reshape(1, 48, 28, 2, 56)
    t = jnp.roll(t, shift, axis=2)
    t = t.reshape(1, 48, 28, 112)
    tp = jnp.pad(t, ((0, 0), (0, 0), (1, 1), (0, 0)))
    patches = jnp.stack([tp[:, :, k:k + 28, :] for k in range(3)], axis=2)
    patches = patches.reshape(1, 48, 3, 28, 2, 56)
    t3 = jnp.einsum('ljknom,ijk->linom', patches, weight)
    t4 = t3.reshape(1, 192, 56, 56)
    t4 = jnp.roll(t4, shift, axis=3)
    return t4


# --------------------------------- main -------------------------------------- #

if __name__ == "__main__":
    key = jax.random.PRNGKey(0)
    kx, kw = jax.random.split(key)

    # Shapes are hard-coded by the module's reshapes.
    x = jax.random.normal(kx, (1, 48, 56, 56), dtype=jnp.float32)
    weight = jax.random.normal(kw, (192, 48, 3), dtype=jnp.float32)

    # Validate both possible shift directions of the torch module.
    for shift_direction in (1, -1):
        y = jax.block_until_ready(forward_jit(x, weight, shift_direction))
        y_ref = reference(x, weight, shift_direction)
        assert y.shape == (1, 192, 56, 56)
        assert jnp.allclose(y, y_ref, rtol=1e-4, atol=1e-3), \
            f"mismatch vs reference (shift={shift_direction})"

    print("KERNEL_OK")
</pallas_src>

<mosaic_0001>
module attributes {stable_mosaic.version = 11 : i64} {
  func.func @_conv_kernel(%arg0: i32, %arg1: i32, %arg2: memref<64x144xf32, #tpu.memory_space<vmem>>, %arg3: memref<48x3136xf32, #tpu.memory_space<vmem>>, %arg4: memref<64x3136xf32, #tpu.memory_space<vmem>>, %arg5: memref<144x3136xf32, #tpu.memory_space<vmem>>) attributes {dimension_semantics = [#tpu.dimension_semantics<parallel>, #tpu.dimension_semantics<arbitrary>], iteration_bounds = array<i64: 1, 3>, scalar_prefetch = 0 : i64, scratch_operands = 1 : i64, tpu.core_type = #tpu.core_type<tc>, window_params = [{transform_indices = @transform_0, window_bounds = array<i64: 64, 144>}, {pipeline_mode = #tpu.pipeline_mode<synchronous>, transform_indices = @transform_1, window_bounds = array<i64: 48, 3136>}, {transform_indices = @transform_2, window_bounds = array<i64: 64, 3136>}]} {
    %c0_i32 = arith.constant 0 : i32
    %0 = arith.cmpi eq, %arg1, %c0_i32 : i32
    %1 = arith.extui %0 : i1 to i32
    %c0_i32_0 = arith.constant 0 : i32
    %2 = arith.cmpi ne, %1, %c0_i32_0 : i32
    scf.if %2 {
      %c0_6 = arith.constant 0 : index
      %c0_7 = arith.constant 0 : index
      %7 = vector.load %arg3[%c0_6, %c0_7] : memref<48x3136xf32, #tpu.memory_space<vmem>>, vector<48x3136xf32>
      %8 = vector.extract_strided_slice %7 {offsets = [0, 3023], sizes = [48, 113], strides = [1, 1]} : vector<48x3136xf32> to vector<48x113xf32>
      %9 = vector.extract_strided_slice %7 {offsets = [0, 0], sizes = [48, 3023], strides = [1, 1]} : vector<48x3136xf32> to vector<48x3023xf32>
      %10 = tpu.concatenate %8, %9 in 1 : vector<48x113xf32>, vector<48x3023xf32> -> vector<48x3136xf32>
      %11 = vector.extract_strided_slice %7 {offsets = [0, 3079], sizes = [48, 57], strides = [1, 1]} : vector<48x3136xf32> to vector<48x57xf32>
      %12 = vector.extract_strided_slice %7 {offsets = [0, 0], sizes = [48, 3079], strides = [1, 1]} : vector<48x3136xf32> to vector<48x3079xf32>
      %13 = tpu.concatenate %11, %12 in 1 : vector<48x57xf32>, vector<48x3079xf32> -> vector<48x3136xf32>
      %14 = tpu.iota {dimensions = array<i32: 1>} : vector<48x3136xi32>
      %c56_i32 = arith.constant 56 : i32
      %c0_i32_8 = arith.constant 0 : i32
      %15 = arith.cmpi eq, %c56_i32, %c0_i32_8 : i32
      %c1_i32 = arith.constant 1 : i32
      %16 = arith.select %15, %c1_i32, %c56_i32 : i32
      %17 = vector.broadcast %16 : i32 to vector<48x3136xi32>
      %18 = arith.remsi %14, %17 : vector<48x3136xi32>
      %c0_i32_9 = arith.constant 0 : i32
      %19 = vector.broadcast %c0_i32_9 : i32 to vector<48x3136xi32>
      %20 = arith.cmpi ne, %18, %19 : vector<48x3136xi32>
      %c0_i32_10 = arith.constant 0 : i32
      %21 = vector.broadcast %c0_i32_10 : i32 to vector<48x3136xi32>
      %22 = arith.cmpi slt, %18, %21 : vector<48x3136xi32>
      %c0_i32_11 = arith.constant 0 : i32
      %23 = arith.cmpi slt, %16, %c0_i32_11 : i32
      %24 = vector.broadcast %23 : i1 to vector<48x3136xi1>
      %25 = vector.broadcast %24 : vector<48x3136xi1> to vector<48x3136xi1>
      %26 = arith.xori %22, %25 : vector<48x3136xi1>
      %27 = arith.andi %26, %20 : vector<48x3136xi1>
      %28 = vector.broadcast %16 : i32 to vector<48x3136xi32>
      %29 = arith.addi %18, %28 : vector<48x3136xi32>
      %30 = arith.select %27, %29, %18 : vector<48x3136xi1>, vector<48x3136xi32>
      %c0_i32_12 = arith.constant 0 : i32
      %31 = vector.broadcast %c0_i32_12 : i32 to vector<48x3136xi32>
      %32 = arith.cmpi eq, %30, %31 : vector<48x3136xi32>
      %33 = arith.select %32, %13, %10 : vector<48x3136xi1>, vector<48x3136xf32>
      %cst_13 = arith.constant 0.000000e+00 : f32
      %34 = vector.broadcast %cst_13 : f32 to vector<48x112xf32>
      %35 = vector.extract_strided_slice %33 {offsets = [0, 0], sizes = [48, 3024], strides = [1, 1]} : vector<48x3136xf32> to vector<48x3024xf32>
      %36 = tpu.concatenate %34, %35 in 1 : vector<48x112xf32>, vector<48x3024xf32> -> vector<48x3136xf32>
      %c0_14 = arith.constant 0 : index
      %c0_15 = arith.constant 0 : index
      %37 = vector.load %arg5[%c0_14, %c0_15] : memref<144x3136xf32, #tpu.memory_space<vmem>>, vector<48x3136xf32>
      tpu.vector_store %arg5[%c0_14, %c0_15], %36 {strides = array<i32>} : memref<144x3136xf32, #tpu.memory_space<vmem>>, vector<48x3136xf32>,
      %c48 = arith.constant 48 : index
      %c0_16 = arith.constant 0 : index
      %38 = vector.load %arg5[%c48, %c0_16] : memref<144x3136xf32, #tpu.memory_space<vmem>>, vector<48x3136xf32>
      tpu.vector_store %arg5[%c48, %c0_16], %33 {strides = array<i32>} : memref<144x3136xf32, #tpu.memory_space<vmem>>, vector<48x3136xf32>,
      %39 = vector.extract_strided_slice %33 {offsets = [0, 112], sizes = [48, 3024], strides = [1, 1]} : vector<48x3136xf32> to vector<48x3024xf32>
      %40 = tpu.concatenate %39, %34 in 1 : vector<48x3024xf32>, vector<48x112xf32> -> vector<48x3136xf32>
      %c96 = arith.constant 96 : index
      %c0_17 = arith.constant 0 : index
      %41 = vector.load %arg5[%c96, %c0_17] : memref<144x3136xf32, #tpu.memory_space<vmem>>, vector<48x3136xf32>
      tpu.vector_store %arg5[%c96, %c0_17], %40 {strides = array<i32>} : memref<144x3136xf32, #tpu.memory_space<vmem>>, vector<48x3136xf32>,
    } else {
    }
    %c0 = arith.constant 0 : index
    %c0_1 = arith.constant 0 : index
    %3 = vector.load %arg2[%c0, %c0_1] : memref<64x144xf32, #tpu.memory_space<vmem>>, vector<64x144xf32>
    %c0_2 = arith.constant 0 : index
    %c0_3 = arith.constant 0 : index
    %4 = vector.load %arg5[%c0_2, %c0_3] : memref<144x3136xf32, #tpu.memory_space<vmem>>, vector<144x3136xf32>
    %cst = arith.constant dense<0.000000e+00> : vector<64x3136xf32>
    %5 = tpu.matmul %3, %4, %cst {dimension_numbers = #tpu.dot_dimension_numbers<[1], [0], [0], [1], [0, 0, 1, 1], [], []>} : vector<64x144xf32>, vector<144x3136xf32>, vector<64x3136xf32> -> vector<64x3136xf32>
    %c0_4 = arith.constant 0 : index
    %c0_5 = arith.constant 0 : index
    %6 = vector.load %arg4[%c0_4, %c0_5] : memref<64x3136xf32, #tpu.memory_space<vmem>>, vector<64x3136xf32>
    tpu.vector_store %arg4[%c0_4, %c0_5], %5 {strides = array<i32>} : memref<64x3136xf32, #tpu.memory_space<vmem>>, vector<64x3136xf32>,
    return
  }
  func.func @transform_0(%arg0: i32, %arg1: i32) -> (i32, i32) {
    %c3_i32 = arith.constant 3 : i32
    %0 = arith.muli %arg0, %c3_i32 : i32
    %1 = arith.addi %0, %arg1 : i32
    %c0_i32 = arith.constant 0 : i32
    %c0_i32_0 = arith.constant 0 : i32
    return %1, %c0_i32 : i32, i32
  }
  func.func @transform_1(%arg0: i32, %arg1: i32) -> (i32, i32) {
    %c0_i32 = arith.constant 0 : i32
    %c0_i32_0 = arith.constant 0 : i32
    %c0_i32_1 = arith.constant 0 : i32
    return %c0_i32, %c0_i32_0 : i32, i32
  }
  func.func @transform_2(%arg0: i32, %arg1: i32) -> (i32, i32) {
    %c3_i32 = arith.constant 3 : i32
    %0 = arith.muli %arg0, %c3_i32 : i32
    %1 = arith.addi %0, %arg1 : i32
    %c0_i32 = arith.constant 0 : i32
    %c0_i32_0 = arith.constant 0 : i32
    return %1, %c0_i32 : i32, i32
  }
}

</mosaic_0001>

<llo_original>
// kernel: forward.1
$region0: #{forward.1}
  #allocation0 [shape = 'u32[]', space=smem, size = 0x4, offset = 0x4, fixed_abs, tag = 'smem constant byte address 0x4 - core index']
  #allocation1 [shape = 'u32[144,128]{1,0:T(1,128)}', space=vmem, size = 0x12000, scoped, tag = 'internal scratch']
  #allocation2 [shape = 'f32[144,3136]{1,0:T(8,128)}', space=vmem, size = 0x1c2000, scoped, tag = 'scratch operand']
  %s0 = inlined_call_operand.vmem [shape: f32[192,144], index: 0, kind: input, shape index: {}]
  %s1 = inlined_call_operand.vmem [shape: f32[48,3136], index: 1, kind: input, shape index: {}]
  %s2 = inlined_call_operand.vmem [shape: f32[192,3136], index: 2, kind: output, shape index: {}]
  %s3 = sld [smem:[#allocation0]]
  $region45: #{forward.1} parent=0
    _
  %s5 = ssub.s32 1, %s3
  %s6 = scalar_select 0, %s5, %s3
  loop: start=0, step=1, limit=5
  $region2: #{forward.1} parent=0 // loop_pre_header
    _
  $region3: #{forward.1} parent=0 // loop_header
    %s8 = sphi 0, %s12
    %p9 = scmp.ge.s32.totalorder %s8, 5
    %s15 = sphi 0, %s27
    %s16 = sphi 0, %s23
    %s17 = sphi 0, %s15
    %s18 = sphi 0, %s16
    %s19 = sphi 0, %s17
    %s20 = sphi 0, %s18
    %s34 = sphi 0, %s36
    %s37 = sphi 0, %s34
    %s38 = sphi 0, %s37
    %s54 = sphi 0, %s38
    %s58 = sphi 0, %s58
    %s60 = sphi 0, %s58
    %s61 = sphi 0, %s60
    %s75 = sphi 0, %s61
    %s85 = sphi 0, %s87
    %s88 = sphi 0, %s85
    %s89 = sphi 0, %s88
    %s105 = sphi 0, %s89
  $region4: #{forward.1} parent=0 // loop_header_branch
    %11 = sbr.rel (%p9) target = $region8
  $region5: #{forward.1} parent=0 // loop_body
    %s13 = ssub.s32 %s8, 1
    %s14 = ssub.s32 %s8, 2
    %s21 = sadd.s32 1, %s16
    %p22 = scmp.ge.s32.totalorder %s21, 3
    %s23 = scalar_select %p22, 0, %s21
    %s24 = sadd.s32 1, %s15
    %s25 = scalar_select %p22, %s24, %s15
    %p26 = scmp.ge.s32.totalorder %s25, 1
    %s27 = scalar_select %p26, 0, %s25
    %s28 = smul.u32 %s15, 3
    %s29 = sadd.s32 %s28, %s16
    %s30 = smul.u32 %s27, 3
    %s31 = sadd.s32 %s30, %s23
    %s32 = ssub.s32 %s29, %s31
    %p33 = scmp.eq.s32.totalorder %s32, 0
    %s35 = sadd.s32 %s34, 1
    %s36 = scalar_select %p33, %s34, %s35
    %p39 = pneg %p33
    %p40 = scmp.eq.s32.totalorder %s8, 2
    %p41 = por %p39, %p40
    %p42 = scmp.ne.s32.totalorder %s34, %s37
    %p43 = scmp.eq.s32.totalorder %s8, 0
    %p44 = por %p42, %p43
    %p45 = scmp.ne.s32.totalorder %s34, %s37
    %p46 = scmp.eq.s32.totalorder %s13, 2
    %p47 = por %p45, %p46
    %p48 = scmp.ne.s32.totalorder %s37, %s38
    %p49 = scmp.eq.s32.totalorder %s13, 0
    %p50 = por %p48, %p49
    %p51 = scmp.ne.s32.totalorder %s37, %s38
    %p52 = scmp.eq.s32.totalorder %s14, 2
    %p53 = por %p51, %p52
    %p55 = scmp.ne.s32.totalorder %s38, %s54
    %p56 = scmp.eq.s32.totalorder %s14, 0
    %p57 = por %p55, %p56
    %s59 = sadd.s32 %s58, 1
    %p62 = scmp.eq.s32.totalorder %s8, 2
    %p63 = scmp.ne.s32.totalorder %s58, %s60
    %p64 = scmp.eq.s32.totalorder %s8, 0
    %p65 = por %p63, %p64
    %p66 = scmp.ne.s32.totalorder %s58, %s60
    %p67 = scmp.eq.s32.totalorder %s13, 2
    %p68 = por %p66, %p67
    %p69 = scmp.ne.s32.totalorder %s60, %s61
    %p70 = scmp.eq.s32.totalorder %s13, 0
    %p71 = por %p69, %p70
    %p72 = scmp.ne.s32.totalorder %s60, %s61
    %p73 = scmp.eq.s32.totalorder %s14, 2
    %p74 = por %p72, %p73
    %p76 = scmp.ne.s32.totalorder %s61, %s75
    %p77 = scmp.eq.s32.totalorder %s14, 0
    %p78 = por %p76, %p77
    %s79 = smul.u32 %s15, 3
    %s80 = sadd.s32 %s79, %s16
    %s81 = smul.u32 %s27, 3
    %s82 = sadd.s32 %s81, %s23
    %s83 = ssub.s32 %s80, %s82
    %p84 = scmp.eq.s32.totalorder %s83, 0
    %s86 = sadd.s32 %s85, 1
    %s87 = scalar_select %p84, %s85, %s86
    %p90 = pneg %p84
    %p91 = scmp.eq.s32.totalorder %s8, 2
    %p92 = por %p90, %p91
    %p93 = scmp.ne.s32.totalorder %s85, %s88
    %p94 = scmp.eq.s32.totalorder %s8, 0
    %p95 = por %p93, %p94
    %p96 = scmp.ne.s32.totalorder %s85, %s88
    %p97 = scmp.eq.s32.totalorder %s13, 2
    %p98 = por %p96, %p97
    %p99 = scmp.ne.s32.totalorder %s88, %s89
    %p100 = scmp.eq.s32.totalorder %s13, 0
    %p101 = por %p99, %p100
    %p102 = scmp.ne.s32.totalorder %s88, %s89
    %p103 = scmp.eq.s32.totalorder %s14, 2
    %p104 = por %p102, %p103
    %p106 = scmp.ne.s32.totalorder %s89, %s105
    %p107 = scmp.eq.s32.totalorder %s14, 0
    %p108 = por %p106, %p107
    %p109 = scmp.le.s32.totalorder 1, %s8
    %p110 = scmp.lt.s32.totalorder %s8, 4
    %p111 = pnand %p109, %p110
    %p112 = pneg %p111
    // Predicated region
    $region9: #{forward.1} parent=5 // pred_check
      _
    $region10: #{forward.1} parent=5 // pred_check_branch
      %114 = sbr.rel (%p111) target = $region12
    $region11: #{forward.1} parent=5 // pred_region
      %s115 = ssub.s32 %s8, 1
      // Predicated region
      $region13: #{forward.1} parent=11 // pred_check
        %p116 = pneg %p71
      $region14: #{forward.1} parent=11 // pred_check_branch
        %118 = sbr.rel (%p116) target = $region16
      $region15: #{forward.1} parent=11 // pred_region
        _
      $region16: #{forward.1} parent=11 // pred_fallthru
        _
    $region12: #{forward.1} parent=5 // pred_fallthru
      _
    %p119 = scmp.lt.s32.totalorder %s8, 3
    // Predicated region
    $region17: #{forward.1} parent=5 // pred_check
      %p120 = pneg %p119
    $region18: #{forward.1} parent=5 // pred_check_branch
      %122 = sbr.rel (%p120) target = $region20
    $region19: #{forward.1} parent=5 // pred_region
      // Predicated region
      $region21: #{forward.1} parent=19 // pred_check
        %p123 = pneg %p44
      $region22: #{forward.1} parent=19 // pred_check_branch
        %125 = sbr.rel (%p123) target = $region24
      $region23: #{forward.1} parent=19 // pred_region
        %s126 = smul.u32 %s15, 3
        %s127 = sadd.s32 %s126, %s16
        %s128 = smul.u32 8, %s127
        %p129 = scmp.lt.s32.totalorder %s128, 23
        %s130 = scalar_select %p129, %s128, 23
        %s131 = smul.addr %s130, 2
        %s132 = smul.addr %s131, 8
        %s133 = scalar_lea.vmem %s0, %s132
        %s134 = smul.u32 %s15, 3
        %s135 = sadd.s32 %s134, %s16
        %s136 = smul.u32 8, %s135
      $region24: #{forward.1} parent=19 // pred_fallthru
        _
    $region20: #{forward.1} parent=5 // pred_fallthru
      _
    %p137 = scmp.le.s32.totalorder 1, %s8
    %p138 = scmp.lt.s32.totalorder %s8, 4
    %p139 = pnand %p137, %p138
    %p140 = pneg %p139
    // Predicated region
    $region25: #{forward.1} parent=5 // pred_check
      _
    $region26: #{forward.1} parent=5 // pred_check_branch
      %142 = sbr.rel (%p139) target = $region28
    $region27: #{forward.1} parent=5 // pred_region
      %s143 = ssub.s32 %s8, 1
      %s144 = smul.u32 %s17, 3
      %s145 = sadd.s32 %s144, %s18
      %s146 = smul.u32 8, %s145
      %p147 = scmp.lt.s32.totalorder %s146, 23
      %s148 = scalar_select %p147, %s146, 23
      %s149 = smul.addr %s148, 2
      %s150 = smul.addr %s149, 8
      %s151 = scalar_lea.vmem %s0, %s150
      %p152 = pneg %p50
      %p153 = pneg %p47
      %p154 = pneg %p71
      %p155 = pneg %p68
      %p156 = pneg %p101
      %p157 = pneg %p98
      %s158 = smul.u32 %s17, 3
      %s159 = sadd.s32 %s158, %s18
      %s160 = smul.u32 8, %s159
      %p161 = scmp.lt.s32.totalorder %s160, 23
      %s162 = scalar_select %p161, %s160, 23
      %s163 = smul.addr %s162, 25
      %s164 = smul.addr %s163, 8
      %s165 = scalar_lea.vmem %s2, %s164
      %s166 = smul.u32 %s17, 3
      %s167 = sadd.s32 %s166, %s18
      %s168 = smul.u32 8, %s167
      %p169 = scmp.lt.s32.totalorder %s168, 23
      %s170 = scalar_select %p169, %s168, 23
      %s171 = smul.addr %s170, 2
      %s172 = smul.addr %s171, 8
      %s173 = scalar_lea.vmem %s0, %s172
      %s174 = smul.u32 %s17, 3
      %s175 = sadd.s32 %s174, %s18
      %s176 = smul.u32 8, %s175
      %s177 = smul.u32 %s17, 3
      %s178 = sadd.s32 %s177, %s18
      %s179 = smul.u32 8, %s178
      %p180 = scmp.lt.s32.totalorder %s179, 23
      %s181 = scalar_select %p180, %s179, 23
      %s182 = smul.addr %s181, 25
      %s183 = smul.addr %s182, 8
      %s184 = scalar_lea.vmem %s2, %s183
      %s185 = smul.u32 %s17, 3
      %s186 = sadd.s32 %s185, %s18
      %s187 = smul.u32 8, %s186
      %p188 = scmp.eq.s32.totalorder %s18, 0
      // Predicated region
      $region29: #{forward.1} parent=27 // pred_check
        %p189 = pneg %p188
      $region30: #{forward.1} parent=27 // pred_check_branch
        %191 = sbr.rel (%p189) target = $region32
      $region31: #{forward.1} parent=27 // pred_region
        %v192 = vld [vmem:[%s1] sm:$0xff]
        %v193 = vld [vmem:[%s1 + $0x8] sm:$0xff]
        %v194 = vld [vmem:[%s1 + $0x10] sm:$0xff]
        %v195 = vld [vmem:[%s1 + $0x18] sm:$0xff]
        %v196 = vld [vmem:[%s1 + $0x20] sm:$0xff]
        %v197 = vld [vmem:[%s1 + $0x28] sm:$0xff]
        %v198 = vld [vmem:[%s1 + $0x30] sm:$0xff]
        %v199 = vld [vmem:[%s1 + $0x38] sm:$0xff]
        %v200 = vld [vmem:[%s1 + $0x40] sm:$0xff]
        %v201 = vld [vmem:[%s1 + $0x48] sm:$0xff]
        %v202 = vld [vmem:[%s1 + $0x50] sm:$0xff]
        %v203 = vld [vmem:[%s1 + $0x58] sm:$0xff]
        %v204 = vld [vmem:[%s1 + $0x60] sm:$0xff]
        %v205 = vld [vmem:[%s1 + $0x68] sm:$0xff]
        %v206 = vld [vmem:[%s1 + $0x70] sm:$0xff]
        %v207 = vld [vmem:[%s1 + $0x78] sm:$0xff]
        %v208 = vld [vmem:[%s1 + $0x80] sm:$0xff]
        %v209 = vld [vmem:[%s1 + $0x88] sm:$0xff]
        %v210 = vld [vmem:[%s1 + $0x90] sm:$0xff]
        %v211 = vld [vmem:[%s1 + $0x98] sm:$0xff]
        %v212 = vld [vmem:[%s1 + $0xa0] sm:$0xff]
        %v213 = vld [vmem:[%s1 + $0xa8] sm:$0xff]
        %v214 = vld [vmem:[%s1 + $0xb0] sm:$0xff]
        %v215 = vld [vmem:[%s1 + $0xb8] sm:$0xff]
        %v216 = vld [vmem:[%s1 + $0xc0] sm:$0xff]
        %v217 = vld [vmem:[%s1 + $0xc8] sm:$0xff]
        %v218 = vld [vmem:[%s1 + $0xd0] sm:$0xff]
        %v219 = vld [vmem:[%s1 + $0xd8] sm:$0xff]
        %v220 = vld [vmem:[%s1 + $0xe0] sm:$0xff]
        %v221 = vld [vmem:[%s1 + $0xe8] sm:$0xff]
        %v222 = vld [vmem:[%s1 + $0xf0] sm:$0xff]
        %v223 = vld [vmem:[%s1 + $0xf8] sm:$0xff]
        %v224 = vld [vmem:[%s1 + $0x100] sm:$0xff]
        %v225 = vld [vmem:[%s1 + $0x108] sm:$0xff]
        %v226 = vld [vmem:[%s1 + $0x110] sm:$0xff]
        %v227 = vld [vmem:[%s1 + $0x118] sm:$0xff]
        %v228 = vld [vmem:[%s1 + $0x120] sm:$0xff]
        %v229 = vld [vmem:[%s1 + $0x128] sm:$0xff]
        %v230 = vld [vmem:[%s1 + $0x130] sm:$0xff]
        %v231 = vld [vmem:[%s1 + $0x138] sm:$0xff]
        %v232 = vld [vmem:[%s1 + $0x140] sm:$0xff]
        %v233 = vld [vmem:[%s1 + $0x148] sm:$0xff]
        %v234 = vld [vmem:[%s1 + $0x150] sm:$0xff]
        %v235 = vld [vmem:[%s1 + $0x158] sm:$0xff]
        %v236 = vld [vmem:[%s1 + $0x160] sm:$0xff]
        %v237 = vld [vmem:[%s1 + $0x168] sm:$0xff]
        %v238 = vld [vmem:[%s1 + $0x170] sm:$0xff]
        %v239 = vld [vmem:[%s1 + $0x178] sm:$0xff]
        %v240 = vld [vmem:[%s1 + $0x180] sm:$0xff]
        %v241 = vld [vmem:[%s1 + $0x188] sm:$0xff]
        %v242 = vld [vmem:[%s1 + $0x190] sm:$0xff]
        %v243 = vld [vmem:[%s1 + $0x198] sm:$0xff]
        %v244 = vld [vmem:[%s1 + $0x1a0] sm:$0xff]
        %v245 = vld [vmem:[%s1 + $0x1a8] sm:$0xff]
        %v246 = vld [vmem:[%s1 + $0x1b0] sm:$0xff]
        %v247 = vld [vmem:[%s1 + $0x1b8] sm:$0xff]
        %v248 = vld [vmem:[%s1 + $0x1c0] sm:$0xff]
        %v249 = vld [vmem:[%s1 + $0x1c8] sm:$0xff]
        %v250 = vld [vmem:[%s1 + $0x1d0] sm:$0xff]
        %v251 = vld [vmem:[%s1 + $0x1d8] sm:$0xff]
        %v252 = vld [vmem:[%s1 + $0x1e0] sm:$0xff]
        %v253 = vld [vmem:[%s1 + $0x1e8] sm:$0xff]
        %v254 = vld [vmem:[%s1 + $0x1f0] sm:$0xff]
        %v255 = vld [vmem:[%s1 + $0x1f8] sm:$0xff]
        %v256 = vld [vmem:[%s1 + $0x200] sm:$0xff]
        %v257 = vld [vmem:[%s1 + $0x208] sm:$0xff]
        %v258 = vld [vmem:[%s1 + $0x210] sm:$0xff]
        %v259 = vld [vmem:[%s1 + $0x218] sm:$0xff]
        %v260 = vld [vmem:[%s1 + $0x220] sm:$0xff]
        %v261 = vld [vmem:[%s1 + $0x228] sm:$0xff]
        %v262 = vld [vmem:[%s1 + $0x230] sm:$0xff]
        %v263 = vld [vmem:[%s1 + $0x238] sm:$0xff]
        %v264 = vld [vmem:[%s1 + $0x240] sm:$0xff]
        %v265 = vld [vmem:[%s1 + $0x248] sm:$0xff]
        %v266 = vld [vmem:[%s1 + $0x250] sm:$0xff]
        %v267 = vld [vmem:[%s1 + $0x258] sm:$0xff]
        %v268 = vld [vmem:[%s1 + $0x260] sm:$0xff]
        %v269 = vld [vmem:[%s1 + $0x268] sm:$0xff]
        %v270 = vld [vmem:[%s1 + $0x270] sm:$0xff]
        %v271 = vld [vmem:[%s1 + $0x278] sm:$0xff]
        %v272 = vld [vmem:[%s1 + $0x280] sm:$0xff]
        %v273 = vld [vmem:[%s1 + $0x288] sm:$0xff]
        %v274 = vld [vmem:[%s1 + $0x290] sm:$0xff]
        %v275 = vld [vmem:[%s1 + $0x298] sm:$0xff]
        %v276 = vld [vmem:[%s1 + $0x2a0] sm:$0xff]
        %v277 = vld [vmem:[%s1 + $0x2a8] sm:$0xff]
        %v278 = vld [vmem:[%s1 + $0x2b0] sm:$0xff]
        %v279 = vld [vmem:[%s1 + $0x2b8] sm:$0xff]
        %v280 = vld [vmem:[%s1 + $0x2c0] sm:$0xff]
        %v281 = vld [vmem:[%s1 + $0x2c8] sm:$0xff]
        %v282 = vld [vmem:[%s1 + $0x2d0] sm:$0xff]
        %v283 = vld [vmem:[%s1 + $0x2d8] sm:$0xff]
        %v284 = vld [vmem:[%s1 + $0x2e0] sm:$0xff]
        %v285 = vld [vmem:[%s1 + $0x2e8] sm:$0xff]
        %v286 = vld [vmem:[%s1 + $0x2f0] sm:$0xff]
        %v287 = vld [vmem:[%s1 + $0x2f8] sm:$0xff]
        %v288 = vld [vmem:[%s1 + $0x300] sm:$0xff]
        %v289 = vld [vmem:[%s1 + $0x308] sm:$0xff]
        %v290 = vld [vmem:[%s1 + $0x310] sm:$0xff]
        %v291 = vld [vmem:[%s1 + $0x318] sm:$0xff]
        %v292 = vld [vmem:[%s1 + $0x320] sm:$0xff]
        %v293 = vld [vmem:[%s1 + $0x328] sm:$0xff]
        %v294 = vld [vmem:[%s1 + $0x330] sm:$0xff]
        %v295 = vld [vmem:[%s1 + $0x338] sm:$0xff]
        %v296 = vld [vmem:[%s1 + $0x340] sm:$0xff]
        %v297 = vld [vmem:[%s1 + $0x348] sm:$0xff]
        %v298 = vld [vmem:[%s1 + $0x350] sm:$0xff]
        %v299 = vld [vmem:[%s1 + $0x358] sm:$0xff]
        %v300 = vld [vmem:[%s1 + $0x360] sm:$0xff]
        %v301 = vld [vmem:[%s1 + $0x368] sm:$0xff]
        %v302 = vld [vmem:[%s1 + $0x370] sm:$0xff]
        %v303 = vld [vmem:[%s1 + $0x378] sm:$0xff]
        %v304 = vld [vmem:[%s1 + $0x380] sm:$0xff]
        %v305 = vld [vmem:[%s1 + $0x388] sm:$0xff]
        %v306 = vld [vmem:[%s1 + $0x390] sm:$0xff]
        %v307 = vld [vmem:[%s1 + $0x398] sm:$0xff]
        %v308 = vld [vmem:[%s1 + $0x3a0] sm:$0xff]
        %v309 = vld [vmem:[%s1 + $0x3a8] sm:$0xff]
        %v310 = vld [vmem:[%s1 + $0x3b0] sm:$0xff]
        %v311 = vld [vmem:[%s1 + $0x3b8] sm:$0xff]
        %v312 = vld [vmem:[%s1 + $0x3c0] sm:$0xff]
        %v313 = vld [vmem:[%s1 + $0x3c8] sm:$0xff]
        %v314 = vld [vmem:[%s1 + $0x3d0] sm:$0xff]
        %v315 = vld [vmem:[%s1 + $0x3d8] sm:$0xff]
        %v316 = vld [vmem:[%s1 + $0x3e0] sm:$0xff]
        %v317 = vld [vmem:[%s1 + $0x3e8] sm:$0xff]
        %v318 = vld [vmem:[%s1 + $0x3f0] sm:$0xff]
        %v319 = vld [vmem:[%s1 + $0x3f8] sm:$0xff]
        %v320 = vld [vmem:[%s1 + $0x400] sm:$0xff]
        %v321 = vld [vmem:[%s1 + $0x408] sm:$0xff]
        %v322 = vld [vmem:[%s1 + $0x410] sm:$0xff]
        %v323 = vld [vmem:[%s1 + $0x418] sm:$0xff]
        %v324 = vld [vmem:[%s1 + $0x420] sm:$0xff]
        %v325 = vld [vmem:[%s1 + $0x428] sm:$0xff]
        %v326 = vld [vmem:[%s1 + $0x430] sm:$0xff]
        %v327 = vld [vmem:[%s1 + $0x438] sm:$0xff]
        %v328 = vld [vmem:[%s1 + $0x440] sm:$0xff]
        %v329 = vld [vmem:[%s1 + $0x448] sm:$0xff]
        %v330 = vld [vmem:[%s1 + $0x450] sm:$0xff]
        %v331 = vld [vmem:[%s1 + $0x458] sm:$0xff]
        %v332 = vld [vmem:[%s1 + $0x460] sm:$0xff]
        %v333 = vld [vmem:[%s1 + $0x468] sm:$0xff]
        %v334 = vld [vmem:[%s1 + $0x470] sm:$0xff]
        %v335 = vld [vmem:[%s1 + $0x478] sm:$0xff]
        %v336 = vld [vmem:[%s1 + $0x480] sm:$0xff]
        %v337 = vld [vmem:[%s1 + $0x488] sm:$0xff]
        %v338 = vld [vmem:[%s1 + $0x490] sm:$0xff]
        %v339 = vld [vmem:[%s1 + $0x498] sm:$0xff]
        %v340 = vld [vmem:[%s1 + $0x4a0] sm:$0xff]
        %v341 = vld [vmem:[%s1 + $0x4a8] sm:$0xff]
        %354 = vrot.lane.b32.xlu0 %v215, 49
        %v355 = vpop.permute.xlu0 %354
        %356 = vrot.lane.b32.xlu0 %v216, 49
        %v357 = vpop.permute.xlu0 %356
        %358 = vrot.lane.b32.xlu0 %v240, 49
        %v359 = vpop.permute.xlu0 %358
        %360 = vrot.lane.b32.xlu0 %v241, 49
        %v361 = vpop.permute.xlu0 %360
        %362 = vrot.lane.b32.xlu0 %v265, 49
        %v363 = vpop.permute.xlu0 %362
        %364 = vrot.lane.b32.xlu0 %v266, 49
        %v365 = vpop.permute.xlu0 %364
        %366 = vrot.lane.b32.xlu0 %v290, 49
        %v367 = vpop.permute.xlu0 %366
        %368 = vrot.lane.b32.xlu0 %v291, 49
        %v369 = vpop.permute.xlu0 %368
        %370 = vrot.lane.b32.xlu0 %v315, 49
        %v371 = vpop.permute.xlu0 %370
        %372 = vrot.lane.b32.xlu0 %v316, 49
        %v373 = vpop.permute.xlu0 %372
        %374 = vrot.lane.b32.xlu0 %v340, 49
        %v375 = vpop.permute.xlu0 %374
        %376 = vrot.lane.b32.xlu0 %v341, 49
        %v377 = vpop.permute.xlu0 %376
        %vm378 = vcmask 400384
        %v379 = vsel %vm378, %v355, %v357
        %v380 = vsel %vm378, %v359, %v361
        %v381 = vsel %vm378, %v363, %v365
        %v382 = vsel %vm378, %v367, %v369
        %v383 = vsel %vm378, %v371, %v373
        %v384 = vsel %vm378, %v375, %v377
        %529 = vrot.lane.b32.xlu0 %v192, 113
        %v530 = vpop.permute.xlu0 %529
        %531 = vrot.lane.b32.xlu0 %v193, 113
        %v532 = vpop.permute.xlu0 %531
        %533 = vrot.lane.b32.xlu0 %v194, 113
        %v534 = vpop.permute.xlu0 %533
        %535 = vrot.lane.b32.xlu0 %v195, 113
        %v536 = vpop.permute.xlu0 %535
        %537 = vrot.lane.b32.xlu0 %v196, 113
        %v538 = vpop.permute.xlu0 %537
        %539 = vrot.lane.b32.xlu0 %v197, 113
        %v540 = vpop.permute.xlu0 %539
        %541 = vrot.lane.b32.xlu0 %v198, 113
        %v542 = vpop.permute.xlu0 %541
        %543 = vrot.lane.b32.xlu0 %v199, 113
        %v544 = vpop.permute.xlu0 %543
        %545 = vrot.lane.b32.xlu0 %v200, 113
        %v546 = vpop.permute.xlu0 %545
        %547 = vrot.lane.b32.xlu0 %v201, 113
        %v548 = vpop.permute.xlu0 %547
        %549 = vrot.lane.b32.xlu0 %v202, 113
        %v550 = vpop.permute.xlu0 %549
        %551 = vrot.lane.b32.xlu0 %v203, 113
        %v552 = vpop.permute.xlu0 %551
        %553 = vrot.lane.b32.xlu0 %v204, 113
        %v554 = vpop.permute.xlu0 %553
        %555 = vrot.lane.b32.xlu0 %v205, 113
        %v556 = vpop.permute.xlu0 %555
        %557 = vrot.lane.b32.xlu0 %v206, 113
        %v558 = vpop.permute.xlu0 %557
        %559 = vrot.lane.b32.xlu0 %v207, 113
        %v560 = vpop.permute.xlu0 %559
        %561 = vrot.lane.b32.xlu0 %v208, 113
        %v562 = vpop.permute.xlu0 %561
        %563 = vrot.lane.b32.xlu0 %v209, 113
        %v564 = vpop.permute.xlu0 %563
        %565 = vrot.lane.b32.xlu0 %v210, 113
        %v566 = vpop.permute.xlu0 %565
        %567 = vrot.lane.b32.xlu0 %v211, 113
        %v568 = vpop.permute.xlu0 %567
        %569 = vrot.lane.b32.xlu0 %v212, 113
        %v570 = vpop.permute.xlu0 %569
        %571 = vrot.lane.b32.xlu0 %v213, 113
        %v572 = vpop.permute.xlu0 %571
        %573 = vrot.lane.b32.xlu0 %v214, 113
        %v574 = vpop.permute.xlu0 %573
        %575 = vrot.lane.b32.xlu0 %v215, 113
        %v576 = vpop.permute.xlu0 %575
        %577 = vrot.lane.b32.xlu0 %v217, 113
        %v578 = vpop.permute.xlu0 %577
        %579 = vrot.lane.b32.xlu0 %v218, 113
        %v580 = vpop.permute.xlu0 %579
        %581 = vrot.lane.b32.xlu0 %v219, 113
        %v582 = vpop.permute.xlu0 %581
        %583 = vrot.lane.b32.xlu0 %v220, 113
        %v584 = vpop.permute.xlu0 %583
        %585 = vrot.lane.b32.xlu0 %v221, 113
        %v586 = vpop.permute.xlu0 %585
        %587 = vrot.lane.b32.xlu0 %v222, 113
        %v588 = vpop.permute.xlu0 %587
        %589 = vrot.lane.b32.xlu0 %v223, 113
        %v590 = vpop.permute.xlu0 %589
        %591 = vrot.lane.b32.xlu0 %v224, 113
        %v592 = vpop.permute.xlu0 %591
        %593 = vrot.lane.b32.xlu0 %v225, 113
        %v594 = vpop.permute.xlu0 %593
        %595 = vrot.lane.b32.xlu0 %v226, 113
        %v596 = vpop.permute.xlu0 %595
        %597 = vrot.lane.b32.xlu0 %v227, 113
        %v598 = vpop.permute.xlu0 %597
        %599 = vrot.lane.b32.xlu0 %v228, 113
        %v600 = vpop.permute.xlu0 %599
        %601 = vrot.lane.b32.xlu0 %v229, 113
        %v602 = vpop.permute.xlu0 %601
        %603 = vrot.lane.b32.xlu0 %v230, 113
        %v604 = vpop.permute.xlu0 %603
        %605 = vrot.lane.b32.xlu0 %v231, 113
        %v606 = vpop.permute.xlu0 %605
        %607 = vrot.lane.b32.xlu0 %v232, 113
        %v608 = vpop.permute.xlu0 %607
        %609 = vrot.lane.b32.xlu0 %v233, 113
        %v610 = vpop.permute.xlu0 %609
        %611 = vrot.lane.b32.xlu0 %v234, 113
        %v612 = vpop.permute.xlu0 %611
        %613 = vrot.lane.b32.xlu0 %v235, 113
        %v614 = vpop.permute.xlu0 %613
        %615 = vrot.lane.b32.xlu0 %v236, 113
        %v616 = vpop.permute.xlu0 %615
        %617 = vrot.lane.b32.xlu0 %v237, 113
        %v618 = vpop.permute.xlu0 %617
        %619 = vrot.lane.b32.xlu0 %v238, 113
        %v620 = vpop.permute.xlu0 %619
        %621 = vrot.lane.b32.xlu0 %v239, 113
        %v622 = vpop.permute.xlu0 %621
        %623 = vrot.lane.b32.xlu0 %v240, 113
        %v624 = vpop.permute.xlu0 %623
        %625 = vrot.lane.b32.xlu0 %v242, 113
        %v626 = vpop.permute.xlu0 %625
        %627 = vrot.lane.b32.xlu0 %v243, 113
        %v628 = vpop.permute.xlu0 %627
        %629 = vrot.lane.b32.xlu0 %v244, 113
        %v630 = vpop.permute.xlu0 %629
        %631 = vrot.lane.b32.xlu0 %v245, 113
        %v632 = vpop.permute.xlu0 %631
        %633 = vrot.lane.b32.xlu0 %v246, 113
        %v634 = vpop.permute.xlu0 %633
        %635 = vrot.lane.b32.xlu0 %v247, 113
        %v636 = vpop.permute.xlu0 %635
        %637 = vrot.lane.b32.xlu0 %v248, 113
        %v638 = vpop.permute.xlu0 %637
        %639 = vrot.lane.b32.xlu0 %v249, 113
        %v640 = vpop.permute.xlu0 %639
        %641 = vrot.lane.b32.xlu0 %v250, 113
        %v642 = vpop.permute.xlu0 %641
        %643 = vrot.lane.b32.xlu0 %v251, 113
        %v644 = vpop.permute.xlu0 %643
        %645 = vrot.lane.b32.xlu0 %v252, 113
        %v646 = vpop.permute.xlu0 %645
        %647 = vrot.lane.b32.xlu0 %v253, 113
        %v648 = vpop.permute.xlu0 %647
        %649 = vrot.lane.b32.xlu0 %v254, 113
        %v650 = vpop.permute.xlu0 %649
        %651 = vrot.lane.b32.xlu0 %v255, 113
        %v652 = vpop.permute.xlu0 %651
        %653 = vrot.lane.b32.xlu0 %v256, 113
        %v654 = vpop.permute.xlu0 %653
        %655 = vrot.lane.b32.xlu0 %v257, 113
        %v656 = vpop.permute.xlu0 %655
        %657 = vrot.lane.b32.xlu0 %v258, 113
        %v658 = vpop.permute.xlu0 %657
        %659 = vrot.lane.b32.xlu0 %v259, 113
        %v660 = vpop.permute.xlu0 %659
        %661 = vrot.lane.b32.xlu0 %v260, 113
        %v662 = vpop.permute.xlu0 %661
        %663 = vrot.lane.b32.xlu0 %v261, 113
        %v664 = vpop.permute.xlu0 %663
        %665 = vrot.lane.b32.xlu0 %v262, 113
        %v666 = vpop.permute.xlu0 %665
        %667 = vrot.lane.b32.xlu0 %v263, 113
        %v668 = vpop.permute.xlu0 %667
        %669 = vrot.lane.b32.xlu0 %v264, 113
        %v670 = vpop.permute.xlu0 %669
        %671 = vrot.lane.b32.xlu0 %v265, 113
        %v672 = vpop.permute.xlu0 %671
        %673 = vrot.lane.b32.xlu0 %v267, 113
        %v674 = vpop.permute.xlu0 %673
        %675 = vrot.lane.b32.xlu0 %v268, 113
        %v676 = vpop.permute.xlu0 %675
        %677 = vrot.lane.b32.xlu0 %v269, 113
        %v678 = vpop.permute.xlu0 %677
        %679 = vrot.lane.b32.xlu0 %v270, 113
        %v680 = vpop.permute.xlu0 %679
        %681 = vrot.lane.b32.xlu0 %v271, 113
        %v682 = vpop.permute.xlu0 %681
        %683 = vrot.lane.b32.xlu0 %v272, 113
        %v684 = vpop.permute.xlu0 %683
        %685 = vrot.lane.b32.xlu0 %v273, 113
        %v686 = vpop.permute.xlu0 %685
        %687 = vrot.lane.b32.xlu0 %v274, 113
        %v688 = vpop.permute.xlu0 %687
        %689 = vrot.lane.b32.xlu0 %v275, 113
        %v690 = vpop.permute.xlu0 %689
        %691 = vrot.lane.b32.xlu0 %v276, 113
        %v692 = vpop.permute.xlu0 %691
        %693 = vrot.lane.b32.xlu0 %v277, 113
        %v694 = vpop.permute.xlu0 %693
        %695 = vrot.lane.b32.xlu0 %v278, 113
        %v696 = vpop.permute.xlu0 %695
        %697 = vrot.lane.b32.xlu0 %v279, 113
        %v698 = vpop.permute.xlu0 %697
        %699 = vrot.lane.b32.xlu0 %v280, 113
        %v700 = vpop.permute.xlu0 %699
        %701 = vrot.lane.b32.xlu0 %v281, 113
        %v702 = vpop.permute.xlu0 %701
        %703 = vrot.lane.b32.xlu0 %v282, 113
        %v704 = vpop.permute.xlu0 %703
        %705 = vrot.lane.b32.xlu0 %v283, 113
        %v706 = vpop.permute.xlu0 %705
        %707 = vrot.lane.b32.xlu0 %v284, 113
        %v708 = vpop.permute.xlu0 %707
        %709 = vrot.lane.b32.xlu0 %v285, 113
        %v710 = vpop.permute.xlu0 %709
        %711 = vrot.lane.b32.xlu0 %v286, 113
        %v712 = vpop.permute.xlu0 %711
        %713 = vrot.lane.b32.xlu0 %v287, 113
        %v714 = vpop.permute.xlu0 %713
        %715 = vrot.lane.b32.xlu0 %v288, 113
        %v716 = vpop.permute.xlu0 %715
        %717 = vrot.lane.b32.xlu0 %v289, 113
        %v718 = vpop.permute.xlu0 %717
        %719 = vrot.lane.b32.xlu0 %v290, 113
        %v720 = vpop.permute.xlu0 %719
        %721 = vrot.lane.b32.xlu0 %v292, 113
        %v722 = vpop.permute.xlu0 %721
        %723 = vrot.lane.b32.xlu0 %v293, 113
        %v724 = vpop.permute.xlu0 %723
        %725 = vrot.lane.b32.xlu0 %v294, 113
        %v726 = vpop.permute.xlu0 %725
        %727 = vrot.lane.b32.xlu0 %v295, 113
        %v728 = vpop.permute.xlu0 %727
        %729 = vrot.lane.b32.xlu0 %v296, 113
        %v730 = vpop.permute.xlu0 %729
        %731 = vrot.lane.b32.xlu0 %v297, 113
        %v732 = vpop.permute.xlu0 %731
        %733 = vrot.lane.b32.xlu0 %v298, 113
        %v734 = vpop.permute.xlu0 %733
        %735 = vrot.lane.b32.xlu0 %v299, 113
        %v736 = vpop.permute.xlu0 %735
        %737 = vrot.lane.b32.xlu0 %v300, 113
        %v738 = vpop.permute.xlu0 %737
        %739 = vrot.lane.b32.xlu0 %v301, 113
        %v740 = vpop.permute.xlu0 %739
        %741 = vrot.lane.b32.xlu0 %v302, 113
        %v742 = vpop.permute.xlu0 %741
        %743 = vrot.lane.b32.xlu0 %v303, 113
        %v744 = vpop.permute.xlu0 %743
        %745 = vrot.lane.b32.xlu0 %v304, 113
        %v746 = vpop.permute.xlu0 %745
        %747 = vrot.lane.b32.xlu0 %v305, 113
        %v748 = vpop.permute.xlu0 %747
        %749 = vrot.lane.b32.xlu0 %v306, 113
        %v750 = vpop.permute.xlu0 %749
        %751 = vrot.lane.b32.xlu0 %v307, 113
        %v752 = vpop.permute.xlu0 %751
        %753 = vrot.lane.b32.xlu0 %v308, 113
        %v754 = vpop.permute.xlu0 %753
        %755 = vrot.lane.b32.xlu0 %v309, 113
        %v756 = vpop.permute.xlu0 %755
        %757 = vrot.lane.b32.xlu0 %v310, 113
        %v758 = vpop.permute.xlu0 %757
        %759 = vrot.lane.b32.xlu0 %v311, 113
        %v760 = vpop.permute.xlu0 %759
        %761 = vrot.lane.b32.xlu0 %v312, 113
        %v762 = vpop.permute.xlu0 %761
        %763 = vrot.lane.b32.xlu0 %v313, 113
        %v764 = vpop.permute.xlu0 %763
        %765 = vrot.lane.b32.xlu0 %v314, 113
        %v766 = vpop.permute.xlu0 %765
        %767 = vrot.lane.b32.xlu0 %v315, 113
        %v768 = vpop.permute.xlu0 %767
        %769 = vrot.lane.b32.xlu0 %v317, 113
        %v770 = vpop.permute.xlu0 %769
        %771 = vrot.lane.b32.xlu0 %v318, 113
        %v772 = vpop.permute.xlu0 %771
        %773 = vrot.lane.b32.xlu0 %v319, 113
        %v774 = vpop.permute.xlu0 %773
        %775 = vrot.lane.b32.xlu0 %v320, 113
        %v776 = vpop.permute.xlu0 %775
        %777 = vrot.lane.b32.xlu0 %v321, 113
        %v778 = vpop.permute.xlu0 %777
        %779 = vrot.lane.b32.xlu0 %v322, 113
        %v780 = vpop.permute.xlu0 %779
        %781 = vrot.lane.b32.xlu0 %v323, 113
        %v782 = vpop.permute.xlu0 %781
        %783 = vrot.lane.b32.xlu0 %v324, 113
        %v784 = vpop.permute.xlu0 %783
        %785 = vrot.lane.b32.xlu0 %v325, 113
        %v786 = vpop.permute.xlu0 %785
        %787 = vrot.lane.b32.xlu0 %v326, 113
        %v788 = vpop.permute.xlu0 %787
        %789 = vrot.lane.b32.xlu0 %v327, 113
        %v790 = vpop.permute.xlu0 %789
        %791 = vrot.lane.b32.xlu0 %v328, 113
        %v792 = vpop.permute.xlu0 %791
        %793 = vrot.lane.b32.xlu0 %v329, 113
        %v794 = vpop.permute.xlu0 %793
        %795 = vrot.lane.b32.xlu0 %v330, 113
        %v796 = vpop.permute.xlu0 %795
        %797 = vrot.lane.b32.xlu0 %v331, 113
        %v798 = vpop.permute.xlu0 %797
        %799 = vrot.lane.b32.xlu0 %v332, 113
        %v800 = vpop.permute.xlu0 %799
        %801 = vrot.lane.b32.xlu0 %v333, 113
        %v802 = vpop.permute.xlu0 %801
        %803 = vrot.lane.b32.xlu0 %v334, 113
        %v804 = vpop.permute.xlu0 %803
        %805 = vrot.lane.b32.xlu0 %v335, 113
        %v806 = vpop.permute.xlu0 %805
        %807 = vrot.lane.b32.xlu0 %v336, 113
        %v808 = vpop.permute.xlu0 %807
        %809 = vrot.lane.b32.xlu0 %v337, 113
        %v810 = vpop.permute.xlu0 %809
        %811 = vrot.lane.b32.xlu0 %v338, 113
        %v812 = vpop.permute.xlu0 %811
        %813 = vrot.lane.b32.xlu0 %v339, 113
        %v814 = vpop.permute.xlu0 %813
        %815 = vrot.lane.b32.xlu0 %v340, 113
        %v816 = vpop.permute.xlu0 %815
        %vm817 = vcmask 924672
        %v818 = vsel %vm817, %v530, %v532
        %v819 = vsel %vm817, %v532, %v534
        %v820 = vsel %vm817, %v534, %v536
        %v821 = vsel %vm817, %v536, %v538
        %v822 = vsel %vm817, %v538, %v540
        %v823 = vsel %vm817, %v540, %v542
        %v824 = vsel %vm817, %v542, %v544
        %v825 = vsel %vm817, %v544, %v546
        %v826 = vsel %vm817, %v546, %v548
        %v827 = vsel %vm817, %v548, %v550
        %v828 = vsel %vm817, %v550, %v552
        %v829 = vsel %vm817, %v552, %v554
        %v830 = vsel %vm817, %v554, %v556
        %v831 = vsel %vm817, %v556, %v558
        %v832 = vsel %vm817, %v558, %v560
        %v833 = vsel %vm817, %v560, %v562
        %v834 = vsel %vm817, %v562, %v564
        %v835 = vsel %vm817, %v564, %v566
        %v836 = vsel %vm817, %v566, %v568
        %v837 = vsel %vm817, %v568, %v570
        %v838 = vsel %vm817, %v570, %v572
        %v839 = vsel %vm817, %v572, %v574
        %v840 = vsel %vm817, %v574, %v576
        %v841 = vsel %vm817, %v578, %v580
        %v842 = vsel %vm817, %v580, %v582
        %v843 = vsel %vm817, %v582, %v584
        %v844 = vsel %vm817, %v584, %v586
        %v845 = vsel %vm817, %v586, %v588
        %v846 = vsel %vm817, %v588, %v590
        %v847 = vsel %vm817, %v590, %v592
        %v848 = vsel %vm817, %v592, %v594
        %v849 = vsel %vm817, %v594, %v596
        %v850 = vsel %vm817, %v596, %v598
        %v851 = vsel %vm817, %v598, %v600
        %v852 = vsel %vm817, %v600, %v602
        %v853 = vsel %vm817, %v602, %v604
        %v854 = vsel %vm817, %v604, %v606
        %v855 = vsel %vm817, %v606, %v608
        %v856 = vsel %vm817, %v608, %v610
        %v857 = vsel %vm817, %v610, %v612
        %v858 = vsel %vm817, %v612, %v614
        %v859 = vsel %vm817, %v614, %v616
        %v860 = vsel %vm817, %v616, %v618
        %v861 = vsel %vm817, %v618, %v620
        %v862 = vsel %vm817, %v620, %v622
        %v863 = vsel %vm817, %v622, %v624
        %v864 = vsel %vm817, %v626, %v628
        %v865 = vsel %vm817, %v628, %v630
        %v866 = vsel %vm817, %v630, %v632
        %v867 = vsel %vm817, %v632, %v634
        %v868 = vsel %vm817, %v634, %v636
        %v869 = vsel %vm817, %v636, %v638
        %v870 = vsel %vm817, %v638, %v640
        %v871 = vsel %vm817, %v640, %v642
        %v872 = vsel %vm817, %v642, %v644
        %v873 = vsel %vm817, %v644, %v646
        %v874 = vsel %vm817, %v646, %v648
        %v875 = vsel %vm817, %v648, %v650
        %v876 = vsel %vm817, %v650, %v652
        %v877 = vsel %vm817, %v652, %v654
        %v878 = vsel %vm817, %v654, %v656
        %v879 = vsel %vm817, %v656, %v658
        %v880 = vsel %vm817, %v658, %v660
        %v881 = vsel %vm817, %v660, %v662
        %v882 = vsel %vm817, %v662, %v664
        %v883 = vsel %vm817, %v664, %v666
        %v884 = vsel %vm817, %v666, %v668
        %v885 = vsel %vm817, %v668, %v670
        %v886 = vsel %vm817, %v670, %v672
        %v887 = vsel %vm817, %v674, %v676
        %v888 = vsel %vm817, %v676, %v678
        %v889 = vsel %vm817, %v678, %v680
        %v890 = vsel %vm817, %v680, %v682
        %v891 = vsel %vm817, %v682, %v684
        %v892 = vsel %vm817, %v684, %v686
        %v893 = vsel %vm817, %v686, %v688
        %v894 = vsel %vm817, %v688, %v690
        %v895 = vsel %vm817, %v690, %v692
        %v896 = vsel %vm817, %v692, %v694
        %v897 = vsel %vm817, %v694, %v696
        %v898 = vsel %vm817, %v696, %v698
        %v899 = vsel %vm817, %v698, %v700
        %v900 = vsel %vm817, %v700, %v702
        %v901 = vsel %vm817, %v702, %v704
        %v902 = vsel %vm817, %v704, %v706
        %v903 = vsel %vm817, %v706, %v708
        %v904 = vsel %vm817, %v708, %v710
        %v905 = vsel %vm817, %v710, %v712
        %v906 = vsel %vm817, %v712, %v714
        %v907 = vsel %vm817, %v714, %v716
        %v908 = vsel %vm817, %v716, %v718
        %v909 = vsel %vm817, %v718, %v720
        %v910 = vsel %vm817, %v722, %v724
        %v911 = vsel %vm817, %v724, %v726
        %v912 = vsel %vm817, %v726, %v728
        %v913 = vsel %vm817, %v728, %v730
        %v914 = vsel %vm817, %v730, %v732
        %v915 = vsel %vm817, %v732, %v734
        %v916 = vsel %vm817, %v734, %v736
        %v917 = vsel %vm817, %v736, %v738
        %v918 = vsel %vm817, %v738, %v740
        %v919 = vsel %vm817, %v740, %v742
        %v920 = vsel %vm817, %v742, %v744
        %v921 = vsel %vm817, %v744, %v746
        %v922 = vsel %vm817, %v746, %v748
        %v923 = vsel %vm817, %v748, %v750
        %v924 = vsel %vm817, %v750, %v752
        %v925 = vsel %vm817, %v752, %v754
        %v926 = vsel %vm817, %v754, %v756
        %v927 = vsel %vm817, %v756, %v758
        %v928 = vsel %vm817, %v758, %v760
        %v929 = vsel %vm817, %v760, %v762
        %v930 = vsel %vm817, %v762, %v764
        %v931 = vsel %vm817, %v764, %v766
        %v932 = vsel %vm817, %v766, %v768
        %v933 = vsel %vm817, %v770, %v772
        %v934 = vsel %vm817, %v772, %v774
        %v935 = vsel %vm817, %v774, %v776
        %v936 = vsel %vm817, %v776, %v778
        %v937 = vsel %vm817, %v778, %v780
        %v938 = vsel %vm817, %v780, %v782
        %v939 = vsel %vm817, %v782, %v784
        %v940 = vsel %vm817, %v784, %v786
        %v941 = vsel %vm817, %v786, %v788
        %v942 = vsel %vm817, %v788, %v790
        %v943 = vsel %vm817, %v790, %v792
        %v944 = vsel %vm817, %v792, %v794
        %v945 = vsel %vm817, %v794, %v796
        %v946 = vsel %vm817, %v796, %v798
        %v947 = vsel %vm817, %v798, %v800
        %v948 = vsel %vm817, %v800, %v802
        %v949 = vsel %vm817, %v802, %v804
        %v950 = vsel %vm817, %v804, %v806
        %v951 = vsel %vm817, %v806, %v808
        %v952 = vsel %vm817, %v808, %v810
        %v953 = vsel %vm817, %v810, %v812
        %v954 = vsel %vm817, %v812, %v814
        %v955 = vsel %vm817, %v814, %v816
        %v1106 = vsel %vm817, %v379, %v530
        %v1107 = vsel %vm817, %v380, %v578
        %v1108 = vsel %vm817, %v381, %v626
        %v1109 = vsel %vm817, %v382, %v674
        %v1110 = vsel %vm817, %v383, %v722
        %v1111 = vsel %vm817, %v384, %v770
        %1112 = vrot.lane.b32.xlu0 %v216, 121
        %v1113 = vpop.permute.xlu0 %1112
        %1114 = vrot.lane.b32.xlu0 %v241, 121
        %v1115 = vpop.permute.xlu0 %1114
        %1116 = vrot.lane.b32.xlu0 %v266, 121
        %v1117 = vpop.permute.xlu0 %1116
        %1118 = vrot.lane.b32.xlu0 %v291, 121
        %v1119 = vpop.permute.xlu0 %1118
        %1120 = vrot.lane.b32.xlu0 %v316, 121
        %v1121 = vpop.permute.xlu0 %1120
        %1122 = vrot.lane.b32.xlu0 %v341, 121
        %v1123 = vpop.permute.xlu0 %1122
        %1130 = vrot.lane.b32.xlu0 %v192, 57
        %v1131 = vpop.permute.xlu0 %1130
        %1132 = vrot.lane.b32.xlu0 %v193, 57
        %v1133 = vpop.permute.xlu0 %1132
        %1134 = vrot.lane.b32.xlu0 %v194, 57
        %v1135 = vpop.permute.xlu0 %1134
        %1136 = vrot.lane.b32.xlu0 %v195, 57
        %v1137 = vpop.permute.xlu0 %1136
        %1138 = vrot.lane.b32.xlu0 %v196, 57
        %v1139 = vpop.permute.xlu0 %1138
        %1140 = vrot.lane.b32.xlu0 %v197, 57
        %v1141 = vpop.permute.xlu0 %1140
        %1142 = vrot.lane.b32.xlu0 %v198, 57
        %v1143 = vpop.permute.xlu0 %1142
        %1144 = vrot.lane.b32.xlu0 %v199, 57
        %v1145 = vpop.permute.xlu0 %1144
        %1146 = vrot.lane.b32.xlu0 %v200, 57
        %v1147 = vpop.permute.xlu0 %1146
        %1148 = vrot.lane.b32.xlu0 %v201, 57
        %v1149 = vpop.permute.xlu0 %1148
        %1150 = vrot.lane.b32.xlu0 %v202, 57
        %v1151 = vpop.permute.xlu0 %1150
        %1152 = vrot.lane.b32.xlu0 %v203, 57
        %v1153 = vpop.permute.xlu0 %1152
        %1154 = vrot.lane.b32.xlu0 %v204, 57
        %v1155 = vpop.permute.xlu0 %1154
        %1156 = vrot.lane.b32.xlu0 %v205, 57
        %v1157 = vpop.permute.xlu0 %1156
        %1158 = vrot.lane.b32.xlu0 %v206, 57
        %v1159 = vpop.permute.xlu0 %1158
        %1160 = vrot.lane.b32.xlu0 %v207, 57
        %v1161 = vpop.permute.xlu0 %1160
        %1162 = vrot.lane.b32.xlu0 %v208, 57
        %v1163 = vpop.permute.xlu0 %1162
        %1164 = vrot.lane.b32.xlu0 %v209, 57
        %v1165 = vpop.permute.xlu0 %1164
        %1166 = vrot.lane.b32.xlu0 %v210, 57
        %v1167 = vpop.permute.xlu0 %1166
        %1168 = vrot.lane.b32.xlu0 %v211, 57
        %v1169 = vpop.permute.xlu0 %1168
        %1170 = vrot.lane.b32.xlu0 %v212, 57
        %v1171 = vpop.permute.xlu0 %1170
        %1172 = vrot.lane.b32.xlu0 %v213, 57
        %v1173 = vpop.permute.xlu0 %1172
        %1174 = vrot.lane.b32.xlu0 %v214, 57
        %v1175 = vpop.permute.xlu0 %1174
        %1176 = vrot.lane.b32.xlu0 %v215, 57
        %v1177 = vpop.permute.xlu0 %1176
        %1178 = vrot.lane.b32.xlu0 %v216, 57
        %v1179 = vpop.permute.xlu0 %1178
        %1180 = vrot.lane.b32.xlu0 %v217, 57
        %v1181 = vpop.permute.xlu0 %1180
        %1182 = vrot.lane.b32.xlu0 %v218, 57
        %v1183 = vpop.permute.xlu0 %1182
        %1184 = vrot.lane.b32.xlu0 %v219, 57
        %v1185 = vpop.permute.xlu0 %1184
        %1186 = vrot.lane.b32.xlu0 %v220, 57
        %v1187 = vpop.permute.xlu0 %1186
        %1188 = vrot.lane.b32.xlu0 %v221, 57
        %v1189 = vpop.permute.xlu0 %1188
        %1190 = vrot.lane.b32.xlu0 %v222, 57
        %v1191 = vpop.permute.xlu0 %1190
        %1192 = vrot.lane.b32.xlu0 %v223, 57
        %v1193 = vpop.permute.xlu0 %1192
        %1194 = vrot.lane.b32.xlu0 %v224, 57
        %v1195 = vpop.permute.xlu0 %1194
        %1196 = vrot.lane.b32.xlu0 %v225, 57
        %v1197 = vpop.permute.xlu0 %1196
        %1198 = vrot.lane.b32.xlu0 %v226, 57
        %v1199 = vpop.permute.xlu0 %1198
        %1200 = vrot.lane.b32.xlu0 %v227, 57
        %v1201 = vpop.permute.xlu0 %1200
        %1202 = vrot.lane.b32.xlu0 %v228, 57
        %v1203 = vpop.permute.xlu0 %1202
        %1204 = vrot.lane.b32.xlu0 %v229, 57
        %v1205 = vpop.permute.xlu0 %1204
        %1206 = vrot.lane.b32.xlu0 %v230, 57
        %v1207 = vpop.permute.xlu0 %1206
        %1208 = vrot.lane.b32.xlu0 %v231, 57
        %v1209 = vpop.permute.xlu0 %1208
        %1210 = vrot.lane.b32.xlu0 %v232, 57
        %v1211 = vpop.permute.xlu0 %1210
        %1212 = vrot.lane.b32.xlu0 %v233, 57
        %v1213 = vpop.permute.xlu0 %1212
        %1214 = vrot.lane.b32.xlu0 %v234, 57
        %v1215 = vpop.permute.xlu0 %1214
        %1216 = vrot.lane.b32.xlu0 %v235, 57
        %v1217 = vpop.permute.xlu0 %1216
        %1218 = vrot.lane.b32.xlu0 %v236, 57
        %v1219 = vpop.permute.xlu0 %1218
        %1220 = vrot.lane.b32.xlu0 %v237, 57
        %v1221 = vpop.permute.xlu0 %1220
        %1222 = vrot.lane.b32.xlu0 %v238, 57
        %v1223 = vpop.permute.xlu0 %1222
        %1224 = vrot.lane.b32.xlu0 %v239, 57
        %v1225 = vpop.permute.xlu0 %1224
        %1226 = vrot.lane.b32.xlu0 %v240, 57
        %v1227 = vpop.permute.xlu0 %1226
        %1228 = vrot.lane.b32.xlu0 %v241, 57
        %v1229 = vpop.permute.xlu0 %1228
        %1230 = vrot.lane.b32.xlu0 %v242, 57
        %v1231 = vpop.permute.xlu0 %1230
        %1232 = vrot.lane.b32.xlu0 %v243, 57
        %v1233 = vpop.permute.xlu0 %1232
        %1234 = vrot.lane.b32.xlu0 %v244, 57
        %v1235 = vpop.permute.xlu0 %1234
        %1236 = vrot.lane.b32.xlu0 %v245, 57
        %v1237 = vpop.permute.xlu0 %1236
        %1238 = vrot.lane.b32.xlu0 %v246, 57
        %v1239 = vpop.permute.xlu0 %1238
        %1240 = vrot.lane.b32.xlu0 %v247, 57
        %v1241 = vpop.permute.xlu0 %1240
        %1242 = vrot.lane.b32.xlu0 %v248, 57
        %v1243 = vpop.permute.xlu0 %1242
        %1244 = vrot.lane.b32.xlu0 %v249, 57
        %v1245 = vpop.permute.xlu0 %1244
        %1246 = vrot.lane.b32.xlu0 %v250, 57
        %v1247 = vpop.permute.xlu0 %1246
        %1248 = vrot.lane.b32.xlu0 %v251, 57
        %v1249 = vpop.permute.xlu0 %1248
        %1250 = vrot.lane.b32.xlu0 %v252, 57
        %v1251 = vpop.permute.xlu0 %1250
        %1252 = vrot.lane.b32.xlu0 %v253, 57
        %v1253 = vpop.permute.xlu0 %1252
        %1254 = vrot.lane.b32.xlu0 %v254, 57
        %v1255 = vpop.permute.xlu0 %1254
        %1256 = vrot.lane.b32.xlu0 %v255, 57
        %v1257 = vpop.permute.xlu0 %1256
        %1258 = vrot.lane.b32.xlu0 %v256, 57
        %v1259 = vpop.permute.xlu0 %1258
        %1260 = vrot.lane.b32.xlu0 %v257, 57
        %v1261 = vpop.permute.xlu0 %1260
        %1262 = vrot.lane.b32.xlu0 %v258, 57
        %v1263 = vpop.permute.xlu0 %1262
        %1264 = vrot.lane.b32.xlu0 %v259, 57
        %v1265 = vpop.permute.xlu0 %1264
        %1266 = vrot.lane.b32.xlu0 %v260, 57
        %v1267 = vpop.permute.xlu0 %1266
        %1268 = vrot.lane.b32.xlu0 %v261, 57
        %v1269 = vpop.permute.xlu0 %1268
        %1270 = vrot.lane.b32.xlu0 %v262, 57
        %v1271 = vpop.permute.xlu0 %1270
        %1272 = vrot.lane.b32.xlu0 %v263, 57
        %v1273 = vpop.permute.xlu0 %1272
        %1274 = vrot.lane.b32.xlu0 %v264, 57
        %v1275 = vpop.permute.xlu0 %1274
        %1276 = vrot.lane.b32.xlu0 %v265, 57
        %v1277 = vpop.permute.xlu0 %1276
        %1278 = vrot.lane.b32.xlu0 %v266, 57
        %v1279 = vpop.permute.xlu0 %1278
        %1280 = vrot.lane.b32.xlu0 %v267, 57
        %v1281 = vpop.permute.xlu0 %1280
        %1282 = vrot.lane.b32.xlu0 %v268, 57
        %v1283 = vpop.permute.xlu0 %1282
        %1284 = vrot.lane.b32.xlu0 %v269, 57
        %v1285 = vpop.permute.xlu0 %1284
        %1286 = vrot.lane.b32.xlu0 %v270, 57
        %v1287 = vpop.permute.xlu0 %1286
        %1288 = vrot.lane.b32.xlu0 %v271, 57
        %v1289 = vpop.permute.xlu0 %1288
        %1290 = vrot.lane.b32.xlu0 %v272, 57
        %v1291 = vpop.permute.xlu0 %1290
        %1292 = vrot.lane.b32.xlu0 %v273, 57
        %v1293 = vpop.permute.xlu0 %1292
        %1294 = vrot.lane.b32.xlu0 %v274, 57
        %v1295 = vpop.permute.xlu0 %1294
        %1296 = vrot.lane.b32.xlu0 %v275, 57
        %v1297 = vpop.permute.xlu0 %1296
        %1298 = vrot.lane.b32.xlu0 %v276, 57
        %v1299 = vpop.permute.xlu0 %1298
        %1300 = vrot.lane.b32.xlu0 %v277, 57
        %v1301 = vpop.permute.xlu0 %1300
        %1302 = vrot.lane.b32.xlu0 %v278, 57
        %v1303 = vpop.permute.xlu0 %1302
        %1304 = vrot.lane.b32.xlu0 %v279, 57
        %v1305 = vpop.permute.xlu0 %1304
        %1306 = vrot.lane.b32.xlu0 %v280, 57
        %v1307 = vpop.permute.xlu0 %1306
        %1308 = vrot.lane.b32.xlu0 %v281, 57
        %v1309 = vpop.permute.xlu0 %1308
        %1310 = vrot.lane.b32.xlu0 %v282, 57
        %v1311 = vpop.permute.xlu0 %1310
        %1312 = vrot.lane.b32.xlu0 %v283, 57
        %v1313 = vpop.permute.xlu0 %1312
        %1314 = vrot.lane.b32.xlu0 %v284, 57
        %v1315 = vpop.permute.xlu0 %1314
        %1316 = vrot.lane.b32.xlu0 %v285, 57
        %v1317 = vpop.permute.xlu0 %1316
        %1318 = vrot.lane.b32.xlu0 %v286, 57
        %v1319 = vpop.permute.xlu0 %1318
        %1320 = vrot.lane.b32.xlu0 %v287, 57
        %v1321 = vpop.permute.xlu0 %1320
        %1322 = vrot.lane.b32.xlu0 %v288, 57
        %v1323 = vpop.permute.xlu0 %1322
        %1324 = vrot.lane.b32.xlu0 %v289, 57
        %v1325 = vpop.permute.xlu0 %1324
        %1326 = vrot.lane.b32.xlu0 %v290, 57
        %v1327 = vpop.permute.xlu0 %1326
        %1328 = vrot.lane.b32.xlu0 %v291, 57
        %v1329 = vpop.permute.xlu0 %1328
        %1330 = vrot.lane.b32.xlu0 %v292, 57
        %v1331 = vpop.permute.xlu0 %1330
        %1332 = vrot.lane.b32.xlu0 %v293, 57
        %v1333 = vpop.permute.xlu0 %1332
        %1334 = vrot.lane.b32.xlu0 %v294, 57
        %v1335 = vpop.permute.xlu0 %1334
        %1336 = vrot.lane.b32.xlu0 %v295, 57
        %v1337 = vpop.permute.xlu0 %1336
        %1338 = vrot.lane.b32.xlu0 %v296, 57
        %v1339 = vpop.permute.xlu0 %1338
        %1340 = vrot.lane.b32.xlu0 %v297, 57
        %v1341 = vpop.permute.xlu0 %1340
        %1342 = vrot.lane.b32.xlu0 %v298, 57
        %v1343 = vpop.permute.xlu0 %1342
        %1344 = vrot.lane.b32.xlu0 %v299, 57
        %v1345 = vpop.permute.xlu0 %1344
        %1346 = vrot.lane.b32.xlu0 %v300, 57
        %v1347 = vpop.permute.xlu0 %1346
        %1348 = vrot.lane.b32.xlu0 %v301, 57
        %v1349 = vpop.permute.xlu0 %1348
        %1350 = vrot.lane.b32.xlu0 %v302, 57
        %v1351 = vpop.permute.xlu0 %1350
        %1352 = vrot.lane.b32.xlu0 %v303, 57
        %v1353 = vpop.permute.xlu0 %1352
        %1354 = vrot.lane.b32.xlu0 %v304, 57
        %v1355 = vpop.permute.xlu0 %1354
        %1356 = vrot.lane.b32.xlu0 %v305, 57
        %v1357 = vpop.permute.xlu0 %1356
        %1358 = vrot.lane.b32.xlu0 %v306, 57
        %v1359 = vpop.permute.xlu0 %1358
        %1360 = vrot.lane.b32.xlu0 %v307, 57
        %v1361 = vpop.permute.xlu0 %1360
        %1362 = vrot.lane.b32.xlu0 %v308, 57
        %v1363 = vpop.permute.xlu0 %1362
        %1364 = vrot.lane.b32.xlu0 %v309, 57
        %v1365 = vpop.permute.xlu0 %1364
        %1366 = vrot.lane.b32.xlu0 %v310, 57
        %v1367 = vpop.permute.xlu0 %1366
        %1368 = vrot.lane.b32.xlu0 %v311, 57
        %v1369 = vpop.permute.xlu0 %1368
        %1370 = vrot.lane.b32.xlu0 %v312, 57
        %v1371 = vpop.permute.xlu0 %1370
        %1372 = vrot.lane.b32.xlu0 %v313, 57
        %v1373 = vpop.permute.xlu0 %1372
        %1374 = vrot.lane.b32.xlu0 %v314, 57
        %v1375 = vpop.permute.xlu0 %1374
        %1376 = vrot.lane.b32.xlu0 %v315, 57
        %v1377 = vpop.permute.xlu0 %1376
        %1378 = vrot.lane.b32.xlu0 %v316, 57
        %v1379 = vpop.permute.xlu0 %1378
        %1380 = vrot.lane.b32.xlu0 %v317, 57
        %v1381 = vpop.permute.xlu0 %1380
        %1382 = vrot.lane.b32.xlu0 %v318, 57
        %v1383 = vpop.permute.xlu0 %1382
        %1384 = vrot.lane.b32.xlu0 %v319, 57
        %v1385 = vpop.permute.xlu0 %1384
        %1386 = vrot.lane.b32.xlu0 %v320, 57
        %v1387 = vpop.permute.xlu0 %1386
        %1388 = vrot.lane.b32.xlu0 %v321, 57
        %v1389 = vpop.permute.xlu0 %1388
        %1390 = vrot.lane.b32.xlu0 %v322, 57
        %v1391 = vpop.permute.xlu0 %1390
        %1392 = vrot.lane.b32.xlu0 %v323, 57
        %v1393 = vpop.permute.xlu0 %1392
        %1394 = vrot.lane.b32.xlu0 %v324, 57
        %v1395 = vpop.permute.xlu0 %1394
        %1396 = vrot.lane.b32.xlu0 %v325, 57
        %v1397 = vpop.permute.xlu0 %1396
        %1398 = vrot.lane.b32.xlu0 %v326, 57
        %v1399 = vpop.permute.xlu0 %1398
        %1400 = vrot.lane.b32.xlu0 %v327, 57
        %v1401 = vpop.permute.xlu0 %1400
        %1402 = vrot.lane.b32.xlu0 %v328, 57
        %v1403 = vpop.permute.xlu0 %1402
        %1404 = vrot.lane.b32.xlu0 %v329, 57
        %v1405 = vpop.permute.xlu0 %1404
        %1406 = vrot.lane.b32.xlu0 %v330, 57
        %v1407 = vpop.permute.xlu0 %1406
        %1408 = vrot.lane.b32.xlu0 %v331, 57
        %v1409 = vpop.permute.xlu0 %1408
        %1410 = vrot.lane.b32.xlu0 %v332, 57
        %v1411 = vpop.permute.xlu0 %1410
        %1412 = vrot.lane.b32.xlu0 %v333, 57
        %v1413 = vpop.permute.xlu0 %1412
        %1414 = vrot.lane.b32.xlu0 %v334, 57
        %v1415 = vpop.permute.xlu0 %1414
        %1416 = vrot.lane.b32.xlu0 %v335, 57
        %v1417 = vpop.permute.xlu0 %1416
        %1418 = vrot.lane.b32.xlu0 %v336, 57
        %v1419 = vpop.permute.xlu0 %1418
        %1420 = vrot.lane.b32.xlu0 %v337, 57
        %v1421 = vpop.permute.xlu0 %1420
        %1422 = vrot.lane.b32.xlu0 %v338, 57
        %v1423 = vpop.permute.xlu0 %1422
        %1424 = vrot.lane.b32.xlu0 %v339, 57
        %v1425 = vpop.permute.xlu0 %1424
        %1426 = vrot.lane.b32.xlu0 %v340, 57
        %v1427 = vpop.permute.xlu0 %1426
        %1428 = vrot.lane.b32.xlu0 %v341, 57
        %v1429 = vpop.permute.xlu0 %1428
        %vm1430 = vcmask 465920
        %v1431 = vsel %vm1430, %v1131, %v1133
        %v1432 = vsel %vm1430, %v1133, %v1135
        %v1433 = vsel %vm1430, %v1135, %v1137
        %v1434 = vsel %vm1430, %v1137, %v1139
        %v1435 = vsel %vm1430, %v1139, %v1141
        %v1436 = vsel %vm1430, %v1141, %v1143
        %v1437 = vsel %vm1430, %v1143, %v1145
        %v1438 = vsel %vm1430, %v1145, %v1147
        %v1439 = vsel %vm1430, %v1147, %v1149
        %v1440 = vsel %vm1430, %v1149, %v1151
        %v1441 = vsel %vm1430, %v1151, %v1153
        %v1442 = vsel %vm1430, %v1153, %v1155
        %v1443 = vsel %vm1430, %v1155, %v1157
        %v1444 = vsel %vm1430, %v1157, %v1159
        %v1445 = vsel %vm1430, %v1159, %v1161
        %v1446 = vsel %vm1430, %v1161, %v1163
        %v1447 = vsel %vm1430, %v1163, %v1165
        %v1448 = vsel %vm1430, %v1165, %v1167
        %v1449 = vsel %vm1430, %v1167, %v1169
        %v1450 = vsel %vm1430, %v1169, %v1171
        %v1451 = vsel %vm1430, %v1171, %v1173
        %v1452 = vsel %vm1430, %v1173, %v1175
        %v1453 = vsel %vm1430, %v1175, %v1177
        %v1454 = vsel %vm1430, %v1177, %v1179
        %v1455 = vsel %vm1430, %v1181, %v1183
        %v1456 = vsel %vm1430, %v1183, %v1185
        %v1457 = vsel %vm1430, %v1185, %v1187
        %v1458 = vsel %vm1430, %v1187, %v1189
        %v1459 = vsel %vm1430, %v1189, %v1191
        %v1460 = vsel %vm1430, %v1191, %v1193
        %v1461 = vsel %vm1430, %v1193, %v1195
        %v1462 = vsel %vm1430, %v1195, %v1197
        %v1463 = vsel %vm1430, %v1197, %v1199
        %v1464 = vsel %vm1430, %v1199, %v1201
        %v1465 = vsel %vm1430, %v1201, %v1203
        %v1466 = vsel %vm1430, %v1203, %v1205
        %v1467 = vsel %vm1430, %v1205, %v1207
        %v1468 = vsel %vm1430, %v1207, %v1209
        %v1469 = vsel %vm1430, %v1209, %v1211
        %v1470 = vsel %vm1430, %v1211, %v1213
        %v1471 = vsel %vm1430, %v1213, %v1215
        %v1472 = vsel %vm1430, %v1215, %v1217
        %v1473 = vsel %vm1430, %v1217, %v1219
        %v1474 = vsel %vm1430, %v1219, %v1221
        %v1475 = vsel %vm1430, %v1221, %v1223
        %v1476 = vsel %vm1430, %v1223, %v1225
        %v1477 = vsel %vm1430, %v1225, %v1227
        %v1478 = vsel %vm1430, %v1227, %v1229
        %v1479 = vsel %vm1430, %v1231, %v1233
        %v1480 = vsel %vm1430, %v1233, %v1235
        %v1481 = vsel %vm1430, %v1235, %v1237
        %v1482 = vsel %vm1430, %v1237, %v1239
        %v1483 = vsel %vm1430, %v1239, %v1241
        %v1484 = vsel %vm1430, %v1241, %v1243
        %v1485 = vsel %vm1430, %v1243, %v1245
        %v1486 = vsel %vm1430, %v1245, %v1247
        %v1487 = vsel %vm1430, %v1247, %v1249
        %v1488 = vsel %vm1430, %v1249, %v1251
        %v1489 = vsel %vm1430, %v1251, %v1253
        %v1490 = vsel %vm1430, %v1253, %v1255
        %v1491 = vsel %vm1430, %v1255, %v1257
        %v1492 = vsel %vm1430, %v1257, %v1259
        %v1493 = vsel %vm1430, %v1259, %v1261
        %v1494 = vsel %vm1430, %v1261, %v1263
        %v1495 = vsel %vm1430, %v1263, %v1265
        %v1496 = vsel %vm1430, %v1265, %v1267
        %v1497 = vsel %vm1430, %v1267, %v1269
        %v1498 = vsel %vm1430, %v1269, %v1271
        %v1499 = vsel %vm1430, %v1271, %v1273
        %v1500 = vsel %vm1430, %v1273, %v1275
        %v1501 = vsel %vm1430, %v1275, %v1277
        %v1502 = vsel %vm1430, %v1277, %v1279
        %v1503 = vsel %vm1430, %v1281, %v1283
        %v1504 = vsel %vm1430, %v1283, %v1285
        %v1505 = vsel %vm1430, %v1285, %v1287
        %v1506 = vsel %vm1430, %v1287, %v1289
        %v1507 = vsel %vm1430, %v1289, %v1291
        %v1508 = vsel %vm1430, %v1291, %v1293
        %v1509 = vsel %vm1430, %v1293, %v1295
        %v1510 = vsel %vm1430, %v1295, %v1297
        %v1511 = vsel %vm1430, %v1297, %v1299
        %v1512 = vsel %vm1430, %v1299, %v1301
        %v1513 = vsel %vm1430, %v1301, %v1303
        %v1514 = vsel %vm1430, %v1303, %v1305
        %v1515 = vsel %vm1430, %v1305, %v1307
        %v1516 = vsel %vm1430, %v1307, %v1309
        %v1517 = vsel %vm1430, %v1309, %v1311
        %v1518 = vsel %vm1430, %v1311, %v1313
        %v1519 = vsel %vm1430, %v1313, %v1315
        %v1520 = vsel %vm1430, %v1315, %v1317
        %v1521 = vsel %vm1430, %v1317, %v1319
        %v1522 = vsel %vm1430, %v1319, %v1321
        %v1523 = vsel %vm1430, %v1321, %v1323
        %v1524 = vsel %vm1430, %v1323, %v1325
        %v1525 = vsel %vm1430, %v1325, %v1327
        %v1526 = vsel %vm1430, %v1327, %v1329
        %v1527 = vsel %vm1430, %v1331, %v1333
        %v1528 = vsel %vm1430, %v1333, %v1335
        %v1529 = vsel %vm1430, %v1335, %v1337
        %v1530 = vsel %vm1430, %v1337, %v1339
        %v1531 = vsel %vm1430, %v1339, %v1341
        %v1532 = vsel %vm1430, %v1341, %v1343
        %v1533 = vsel %vm1430, %v1343, %v1345
        %v1534 = vsel %vm1430, %v1345, %v1347
        %v1535 = vsel %vm1430, %v1347, %v1349
        %v1536 = vsel %vm1430, %v1349, %v1351
        %v1537 = vsel %vm1430, %v1351, %v1353
        %v1538 = vsel %vm1430, %v1353, %v1355
        %v1539 = vsel %vm1430, %v1355, %v1357
        %v1540 = vsel %vm1430, %v1357, %v1359
        %v1541 = vsel %vm1430, %v1359, %v1361
        %v1542 = vsel %vm1430, %v1361, %v1363
        %v1543 = vsel %vm1430, %v1363, %v1365
        %v1544 = vsel %vm1430, %v1365, %v1367
        %v1545 = vsel %vm1430, %v1367, %v1369
        %v1546 = vsel %vm1430, %v1369, %v1371
        %v1547 = vsel %vm1430, %v1371, %v1373
        %v1548 = vsel %vm1430, %v1373, %v1375
        %v1549 = vsel %vm1430, %v1375, %v1377
        %v1550 = vsel %vm1430, %v1377, %v1379
        %v1551 = vsel %vm1430, %v1381, %v1383
        %v1552 = vsel %vm1430, %v1383, %v1385
        %v1553 = vsel %vm1430, %v1385, %v1387
        %v1554 = vsel %vm1430, %v1387, %v1389
        %v1555 = vsel %vm1430, %v1389, %v1391
        %v1556 = vsel %vm1430, %v1391, %v1393
        %v1557 = vsel %vm1430, %v1393, %v1395
        %v1558 = vsel %vm1430, %v1395, %v1397
        %v1559 = vsel %vm1430, %v1397, %v1399
        %v1560 = vsel %vm1430, %v1399, %v1401
        %v1561 = vsel %vm1430, %v1401, %v1403
        %v1562 = vsel %vm1430, %v1403, %v1405
        %v1563 = vsel %vm1430, %v1405, %v1407
        %v1564 = vsel %vm1430, %v1407, %v1409
        %v1565 = vsel %vm1430, %v1409, %v1411
        %v1566 = vsel %vm1430, %v1411, %v1413
        %v1567 = vsel %vm1430, %v1413, %v1415
        %v1568 = vsel %vm1430, %v1415, %v1417
        %v1569 = vsel %vm1430, %v1417, %v1419
        %v1570 = vsel %vm1430, %v1419, %v1421
        %v1571 = vsel %vm1430, %v1421, %v1423
        %v1572 = vsel %vm1430, %v1423, %v1425
        %v1573 = vsel %vm1430, %v1425, %v1427
        %v1574 = vsel %vm1430, %v1427, %v1429
        %v1725 = vsel %vm1430, %v1113, %v1131
        %v1726 = vsel %vm1430, %v1115, %v1181
        %v1727 = vsel %vm1430, %v1117, %v1231
        %v1728 = vsel %vm1430, %v1119, %v1281
        %v1729 = vsel %vm1430, %v1121, %v1331
        %v1730 = vsel %vm1430, %v1123, %v1381
        %v1731 = vlaneseq
        %v1732 = vand.u32 %v1731, 127
        %v1733 = vadd.s32 %v1732, 128
        %v1734 = vadd.s32 %v1732, 256
        %v1735 = vadd.s32 %v1732, 384
        %v1736 = vadd.s32 %v1732, 512
        %v1737 = vadd.s32 %v1732, 640
        %v1738 = vadd.s32 %v1732, 768
        %v1739 = vadd.s32 %v1732, 896
        %v1740 = vadd.s32 %v1732, 1024
        %v1741 = vadd.s32 %v1732, 1152
        %v1742 = vadd.s32 %v1732, 1280
        %v1743 = vadd.s32 %v1732, 1408
        %v1744 = vadd.s32 %v1732, 1536
        %v1745 = vadd.s32 %v1732, 1664
        %v1746 = vadd.s32 %v1732, 1792
        %v1747 = vadd.s32 %v1732, 1920
        %v1748 = vadd.s32 %v1732, 2048
        %v1749 = vadd.s32 %v1732, 2176
        %v1750 = vadd.s32 %v1732, 2304
        %v1751 = vadd.s32 %v1732, 2432
        %v1752 = vadd.s32 %v1732, 2560
        %v1753 = vadd.s32 %v1732, 2688
        %v1754 = vadd.s32 %v1732, 2816
        %v1755 = vadd.s32 %v1732, 2944
        %v1756 = vadd.s32 %v1732, 3072
        %vm1757 = vcmp.lt.s32.totalorder %v1732, 0
        %v1758 = vsub.s32 0, %v1732
        %v1759 = vsel %vm1757, %v1758, %v1732
        %v1760 = vmul.u32.u64.compose %v1759, 2454267026
        %v1761 = vextract.low.u32 %v1760
        %v1762 = vextract.high.u32 %v1760
        %vm1763 = vc.u32 %v1761, 2454267026
        %v1764 = vsel %vm1763, 1, 0
        %v1765 = vadd.s32 %v1762, %v1764
        %v1766 = vshrl.u32 %v1765, 5
        %v1767 = vmul.u32 %v1766, 56
        %v1768 = vsub.s32 %v1759, %v1767
        %v1769 = vsub.s32 0, %v1768
        %v1770 = vsel %vm1757, %v1769, %v1768
        %vm1771 = vcmp.lt.s32.totalorder %v1733, 0
        %v1772 = vsub.s32 0, %v1733
        %v1773 = vsel %vm1771, %v1772, %v1733
        %v1774 = vmul.u32.u64.compose %v1773, 2454267026
        %v1775 = vextract.low.u32 %v1774
        %v1776 = vextract.high.u32 %v1774
        %vm1777 = vc.u32 %v1775, 2454267026
        %v1778 = vsel %vm1777, 1, 0
        %v1779 = vadd.s32 %v1776, %v1778
        %v1780 = vshrl.u32 %v1779, 5
        %v1781 = vmul.u32 %v1780, 56
        %v1782 = vsub.s32 %v1773, %v1781
        %v1783 = vsub.s32 0, %v1782
        %v1784 = vsel %vm1771, %v1783, %v1782
        %vm1785 = vcmp.lt.s32.totalorder %v1734, 0
        %v1786 = vsub.s32 0, %v1734
        %v1787 = vsel %vm1785, %v1786, %v1734
        %v1788 = vmul.u32.u64.compose %v1787, 2454267026
        %v1789 = vextract.low.u32 %v1788
        %v1790 = vextract.high.u32 %v1788
        %vm1791 = vc.u32 %v1789, 2454267026
        %v1792 = vsel %vm1791, 1, 0
        %v1793 = vadd.s32 %v1790, %v1792
        %v1794 = vshrl.u32 %v1793, 5
        %v1795 = vmul.u32 %v1794, 56
        %v1796 = vsub.s32 %v1787, %v1795
        %v1797 = vsub.s32 0, %v1796
        %v1798 = vsel %vm1785, %v1797, %v1796
        %vm1799 = vcmp.lt.s32.totalorder %v1735, 0
        %v1800 = vsub.s32 0, %v1735
        %v1801 = vsel %vm1799, %v1800, %v1735
        %v1802 = vmul.u32.u64.compose %v1801, 2454267026
        %v1803 = vextract.low.u32 %v1802
        %v1804 = vextract.high.u32 %v1802
        %vm1805 = vc.u32 %v1803, 2454267026
        %v1806 = vsel %vm1805, 1, 0
        %v1807 = vadd.s32 %v1804, %v1806
        %v1808 = vshrl.u32 %v1807, 5
        %v1809 = vmul.u32 %v1808, 56
        %v1810 = vsub.s32 %v1801, %v1809
        %v1811 = vsub.s32 0, %v1810
        %v1812 = vsel %vm1799, %v1811, %v1810
        %vm1813 = vcmp.lt.s32.totalorder %v1736, 0
        %v1814 = vsub.s32 0, %v1736
        %v1815 = vsel %vm1813, %v1814, %v1736
        %v1816 = vmul.u32.u64.compose %v1815, 2454267026
        %v1817 = vextract.low.u32 %v1816
        %v1818 = vextract.high.u32 %v1816
        %vm1819 = vc.u32 %v1817, 2454267026
        %v1820 = vsel %vm1819, 1, 0
        %v1821 = vadd.s32 %v1818, %v1820
        %v1822 = vshrl.u32 %v1821, 5
        %v1823 = vmul.u32 %v1822, 56
        %v1824 = vsub.s32 %v1815, %v1823
        %v1825 = vsub.s32 0, %v1824
        %v1826 = vsel %vm1813, %v1825, %v1824
        %vm1827 = vcmp.lt.s32.totalorder %v1737, 0
        %v1828 = vsub.s32 0, %v1737
        %v1829 = vsel %vm1827, %v1828, %v1737
        %v1830 = vmul.u32.u64.compose %v1829, 2454267026
        %v1831 = vextract.low.u32 %v1830
        %v1832 = vextract.high.u32 %v1830
        %vm1833 = vc.u32 %v1831, 2454267026
        %v1834 = vsel %vm1833, 1, 0
        %v1835 = vadd.s32 %v1832, %v1834
        %v1836 = vshrl.u32 %v1835, 5
        %v1837 = vmul.u32 %v1836, 56
        %v1838 = vsub.s32 %v1829, %v1837
        %v1839 = vsub.s32 0, %v1838
        %v1840 = vsel %vm1827, %v1839, %v1838
        %vm1841 = vcmp.lt.s32.totalorder %v1738, 0
        %v1842 = vsub.s32 0, %v1738
        %v1843 = vsel %vm1841, %v1842, %v1738
        %v1844 = vmul.u32.u64.compose %v1843, 2454267026
        %v1845 = vextract.low.u32 %v1844
        %v1846 = vextract.high.u32 %v1844
        %vm1847 = vc.u32 %v1845, 2454267026
        %v1848 = vsel %vm1847, 1, 0
        %v1849 = vadd.s32 %v1846, %v1848
        %v1850 = vshrl.u32 %v1849, 5
        %v1851 = vmul.u32 %v1850, 56
        %v1852 = vsub.s32 %v1843, %v1851
        %v1853 = vsub.s32 0, %v1852
        %v1854 = vsel %vm1841, %v1853, %v1852
        %vm1855 = vcmp.lt.s32.totalorder %v1739, 0
        %v1856 = vsub.s32 0, %v1739
        %v1857 = vsel %vm1855, %v1856, %v1739
        %v1858 = vmul.u32.u64.compose %v1857, 2454267026
        %v1859 = vextract.low.u32 %v1858
        %v1860 = vextract.high.u32 %v1858
        %vm1861 = vc.u32 %v1859, 2454267026
        %v1862 = vsel %vm1861, 1, 0
        %v1863 = vadd.s32 %v1860, %v1862
        %v1864 = vshrl.u32 %v1863, 5
        %v1865 = vmul.u32 %v1864, 56
        %v1866 = vsub.s32 %v1857, %v1865
        %v1867 = vsub.s32 0, %v1866
        %v1868 = vsel %vm1855, %v1867, %v1866
        %vm1869 = vcmp.lt.s32.totalorder %v1740, 0
        %v1870 = vsub.s32 0, %v1740
        %v1871 = vsel %vm1869, %v1870, %v1740
        %v1872 = vmul.u32.u64.compose %v1871, 2454267026
        %v1873 = vextract.low.u32 %v1872
        %v1874 = vextract.high.u32 %v1872
        %vm1875 = vc.u32 %v1873, 2454267026
        %v1876 = vsel %vm1875, 1, 0
        %v1877 = vadd.s32 %v1874, %v1876
        %v1878 = vshrl.u32 %v1877, 5
        %v1879 = vmul.u32 %v1878, 56
        %v1880 = vsub.s32 %v1871, %v1879
        %v1881 = vsub.s32 0, %v1880
        %v1882 = vsel %vm1869, %v1881, %v1880
        %vm1883 = vcmp.lt.s32.totalorder %v1741, 0
        %v1884 = vsub.s32 0, %v1741
        %v1885 = vsel %vm1883, %v1884, %v1741
        %v1886 = vmul.u32.u64.compose %v1885, 2454267026
        %v1887 = vextract.low.u32 %v1886
        %v1888 = vextract.high.u32 %v1886
        %vm1889 = vc.u32 %v1887, 2454267026
        %v1890 = vsel %vm1889, 1, 0
        %v1891 = vadd.s32 %v1888, %v1890
        %v1892 = vshrl.u32 %v1891, 5
        %v1893 = vmul.u32 %v1892, 56
        %v1894 = vsub.s32 %v1885, %v1893
        %v1895 = vsub.s32 0, %v1894
        %v1896 = vsel %vm1883, %v1895, %v1894
        %vm1897 = vcmp.lt.s32.totalorder %v1742, 0
        %v1898 = vsub.s32 0, %v1742
        %v1899 = vsel %vm1897, %v1898, %v1742
        %v1900 = vmul.u32.u64.compose %v1899, 2454267026
        %v1901 = vextract.low.u32 %v1900
        %v1902 = vextract.high.u32 %v1900
        %vm1903 = vc.u32 %v1901, 2454267026
        %v1904 = vsel %vm1903, 1, 0
        %v1905 = vadd.s32 %v1902, %v1904
        %v1906 = vshrl.u32 %v1905, 5
        %v1907 = vmul.u32 %v1906, 56
        %v1908 = vsub.s32 %v1899, %v1907
        %v1909 = vsub.s32 0, %v1908
        %v1910 = vsel %vm1897, %v1909, %v1908
        %vm1911 = vcmp.lt.s32.totalorder %v1743, 0
        %v1912 = vsub.s32 0, %v1743
        %v1913 = vsel %vm1911, %v1912, %v1743
        %v1914 = vmul.u32.u64.compose %v1913, 2454267026
        %v1915 = vextract.low.u32 %v1914
        %v1916 = vextract.high.u32 %v1914
        %vm1917 = vc.u32 %v1915, 2454267026
        %v1918 = vsel %vm1917, 1, 0
        %v1919 = vadd.s32 %v1916, %v1918
        %v1920 = vshrl.u32 %v1919, 5
        %v1921 = vmul.u32 %v1920, 56
        %v1922 = vsub.s32 %v1913, %v1921
        %v1923 = vsub.s32 0, %v1922
        %v1924 = vsel %vm1911, %v1923, %v1922
        %vm1925 = vcmp.lt.s32.totalorder %v1744, 0
        %v1926 = vsub.s32 0, %v1744
        %v1927 = vsel %vm1925, %v1926, %v1744
        %v1928 = vmul.u32.u64.compose %v1927, 2454267026
        %v1929 = vextract.low.u32 %v1928
        %v1930 = vextract.high.u32 %v1928
        %vm1931 = vc.u32 %v1929, 2454267026
        %v1932 = vsel %vm1931, 1, 0
        %v1933 = vadd.s32 %v1930, %v1932
        %v1934 = vshrl.u32 %v1933, 5
        %v1935 = vmul.u32 %v1934, 56
        %v1936 = vsub.s32 %v1927, %v1935
        %v1937 = vsub.s32 0, %v1936
        %v1938 = vsel %vm1925, %v1937, %v1936
        %vm1939 = vcmp.lt.s32.totalorder %v1745, 0
        %v1940 = vsub.s32 0, %v1745
        %v1941 = vsel %vm1939, %v1940, %v1745
        %v1942 = vmul.u32.u64.compose %v1941, 2454267026
        %v1943 = vextract.low.u32 %v1942
        %v1944 = vextract.high.u32 %v1942
        %vm1945 = vc.u32 %v1943, 2454267026
        %v1946 = vsel %vm1945, 1, 0
        %v1947 = vadd.s32 %v1944, %v1946
        %v1948 = vshrl.u32 %v1947, 5
        %v1949 = vmul.u32 %v1948, 56
        %v1950 = vsub.s32 %v1941, %v1949
        %v1951 = vsub.s32 0, %v1950
        %v1952 = vsel %vm1939, %v1951, %v1950
        %vm1953 = vcmp.lt.s32.totalorder %v1746, 0
        %v1954 = vsub.s32 0, %v1746
        %v1955 = vsel %vm1953, %v1954, %v1746
        %v1956 = vmul.u32.u64.compose %v1955, 2454267026
        %v1957 = vextract.low.u32 %v1956
        %v1958 = vextract.high.u32 %v1956
        %vm1959 = vc.u32 %v1957, 2454267026
        %v1960 = vsel %vm1959, 1, 0
        %v1961 = vadd.s32 %v1958, %v1960
        %v1962 = vshrl.u32 %v1961, 5
        %v1963 = vmul.u32 %v1962, 56
        %v1964 = vsub.s32 %v1955, %v1963
        %v1965 = vsub.s32 0, %v1964
        %v1966 = vsel %vm1953, %v1965, %v1964
        %vm1967 = vcmp.lt.s32.totalorder %v1747, 0
        %v1968 = vsub.s32 0, %v1747
        %v1969 = vsel %vm1967, %v1968, %v1747
        %v1970 = vmul.u32.u64.compose %v1969, 2454267026
        %v1971 = vextract.low.u32 %v1970
        %v1972 = vextract.high.u32 %v1970
        %vm1973 = vc.u32 %v1971, 2454267026
        %v1974 = vsel %vm1973, 1, 0
        %v1975 = vadd.s32 %v1972, %v1974
        %v1976 = vshrl.u32 %v1975, 5
        %v1977 = vmul.u32 %v1976, 56
        %v1978 = vsub.s32 %v1969, %v1977
        %v1979 = vsub.s32 0, %v1978
        %v1980 = vsel %vm1967, %v1979, %v1978
        %vm1981 = vcmp.lt.s32.totalorder %v1748, 0
        %v1982 = vsub.s32 0, %v1748
        %v1983 = vsel %vm1981, %v1982, %v1748
        %v1984 = vmul.u32.u64.compose %v1983, 2454267026
        %v1985 = vextract.low.u32 %v1984
        %v1986 = vextract.high.u32 %v1984
        %vm1987 = vc.u32 %v1985, 2454267026
        %v1988 = vsel %vm1987, 1, 0
        %v1989 = vadd.s32 %v1986, %v1988
        %v1990 = vshrl.u32 %v1989, 5
        %v1991 = vmul.u32 %v1990, 56
        %v1992 = vsub.s32 %v1983, %v1991
        %v1993 = vsub.s32 0, %v1992
        %v1994 = vsel %vm1981, %v1993, %v1992
        %vm1995 = vcmp.lt.s32.totalorder %v1749, 0
        %v1996 = vsub.s32 0, %v1749
        %v1997 = vsel %vm1995, %v1996, %v1749
        %v1998 = vmul.u32.u64.compose %v1997, 2454267026
        %v1999 = vextract.low.u32 %v1998
        %v2000 = vextract.high.u32 %v1998
        %vm2001 = vc.u32 %v1999, 2454267026
        %v2002 = vsel %vm2001, 1, 0
        %v2003 = vadd.s32 %v2000, %v2002
        %v2004 = vshrl.u32 %v2003, 5
        %v2005 = vmul.u32 %v2004, 56
        %v2006 = vsub.s32 %v1997, %v2005
        %v2007 = vsub.s32 0, %v2006
        %v2008 = vsel %vm1995, %v2007, %v2006
        %vm2009 = vcmp.lt.s32.totalorder %v1750, 0
        %v2010 = vsub.s32 0, %v1750
        %v2011 = vsel %vm2009, %v2010, %v1750
        %v2012 = vmul.u32.u64.compose %v2011, 2454267026
        %v2013 = vextract.low.u32 %v2012
        %v2014 = vextract.high.u32 %v2012
        %vm2015 = vc.u32 %v2013, 2454267026
        %v2016 = vsel %vm2015, 1, 0
        %v2017 = vadd.s32 %v2014, %v2016
        %v2018 = vshrl.u32 %v2017, 5
        %v2019 = vmul.u32 %v2018, 56
        %v2020 = vsub.s32 %v2011, %v2019
        %v2021 = vsub.s32 0, %v2020
        %v2022 = vsel %vm2009, %v2021, %v2020
        %vm2023 = vcmp.lt.s32.totalorder %v1751, 0
        %v2024 = vsub.s32 0, %v1751
        %v2025 = vsel %vm2023, %v2024, %v1751
        %v2026 = vmul.u32.u64.compose %v2025, 2454267026
        %v2027 = vextract.low.u32 %v2026
        %v2028 = vextract.high.u32 %v2026
        %vm2029 = vc.u32 %v2027, 2454267026
        %v2030 = vsel %vm2029, 1, 0
        %v2031 = vadd.s32 %v2028, %v2030
        %v2032 = vshrl.u32 %v2031, 5
        %v2033 = vmul.u32 %v2032, 56
        %v2034 = vsub.s32 %v2025, %v2033
        %v2035 = vsub.s32 0, %v2034
        %v2036 = vsel %vm2023, %v2035, %v2034
        %vm2037 = vcmp.lt.s32.totalorder %v1752, 0
        %v2038 = vsub.s32 0, %v1752
        %v2039 = vsel %vm2037, %v2038, %v1752
        %v2040 = vmul.u32.u64.compose %v2039, 2454267026
        %v2041 = vextract.low.u32 %v2040
        %v2042 = vextract.high.u32 %v2040
        %vm2043 = vc.u32 %v2041, 2454267026
        %v2044 = vsel %vm2043, 1, 0
        %v2045 = vadd.s32 %v2042, %v2044
        %v2046 = vshrl.u32 %v2045, 5
        %v2047 = vmul.u32 %v2046, 56
        %v2048 = vsub.s32 %v2039, %v2047
        %v2049 = vsub.s32 0, %v2048
        %v2050 = vsel %vm2037, %v2049, %v2048
        %vm2051 = vcmp.lt.s32.totalorder %v1753, 0
        %v2052 = vsub.s32 0, %v1753
        %v2053 = vsel %vm2051, %v2052, %v1753
        %v2054 = vmul.u32.u64.compose %v2053, 2454267026
        %v2055 = vextract.low.u32 %v2054
        %v2056 = vextract.high.u32 %v2054
        %vm2057 = vc.u32 %v2055, 2454267026
        %v2058 = vsel %vm2057, 1, 0
        %v2059 = vadd.s32 %v2056, %v2058
        %v2060 = vshrl.u32 %v2059, 5
        %v2061 = vmul.u32 %v2060, 56
        %v2062 = vsub.s32 %v2053, %v2061
        %v2063 = vsub.s32 0, %v2062
        %v2064 = vsel %vm2051, %v2063, %v2062
        %vm2065 = vcmp.lt.s32.totalorder %v1754, 0
        %v2066 = vsub.s32 0, %v1754
        %v2067 = vsel %vm2065, %v2066, %v1754
        %v2068 = vmul.u32.u64.compose %v2067, 2454267026
        %v2069 = vextract.low.u32 %v2068
        %v2070 = vextract.high.u32 %v2068
        %vm2071 = vc.u32 %v2069, 2454267026
        %v2072 = vsel %vm2071, 1, 0
        %v2073 = vadd.s32 %v2070, %v2072
        %v2074 = vshrl.u32 %v2073, 5
        %v2075 = vmul.u32 %v2074, 56
        %v2076 = vsub.s32 %v2067, %v2075
        %v2077 = vsub.s32 0, %v2076
        %v2078 = vsel %vm2065, %v2077, %v2076
        %vm2079 = vcmp.lt.s32.totalorder %v1755, 0
        %v2080 = vsub.s32 0, %v1755
        %v2081 = vsel %vm2079, %v2080, %v1755
        %v2082 = vmul.u32.u64.compose %v2081, 2454267026
        %v2083 = vextract.low.u32 %v2082
        %v2084 = vextract.high.u32 %v2082
        %vm2085 = vc.u32 %v2083, 2454267026
        %v2086 = vsel %vm2085, 1, 0
        %v2087 = vadd.s32 %v2084, %v2086
        %v2088 = vshrl.u32 %v2087, 5
        %v2089 = vmul.u32 %v2088, 56
        %v2090 = vsub.s32 %v2081, %v2089
        %v2091 = vsub.s32 0, %v2090
        %v2092 = vsel %vm2079, %v2091, %v2090
        %vm2093 = vcmp.lt.s32.totalorder %v1756, 0
        %v2094 = vsub.s32 0, %v1756
        %v2095 = vsel %vm2093, %v2094, %v1756
        %v2096 = vmul.u32.u64.compose %v2095, 2454267026
        %v2097 = vextract.low.u32 %v2096
        %v2098 = vextract.high.u32 %v2096
        %vm2099 = vc.u32 %v2097, 2454267026
        %v2100 = vsel %vm2099, 1, 0
        %v2101 = vadd.s32 %v2098, %v2100
        %v2102 = vshrl.u32 %v2101, 5
        %v2103 = vmul.u32 %v2102, 56
        %v2104 = vsub.s32 %v2095, %v2103
        %v2105 = vsub.s32 0, %v2104
        %v2106 = vsel %vm2093, %v2105, %v2104
        %vm2107 = vcmp.ne.s32.totalorder %v1770, 0
        %vm2108 = vcmp.ne.s32.totalorder %v1784, 0
        %vm2109 = vcmp.ne.s32.totalorder %v1798, 0
        %vm2110 = vcmp.ne.s32.totalorder %v1812, 0
        %vm2111 = vcmp.ne.s32.totalorder %v1826, 0
        %vm2112 = vcmp.ne.s32.totalorder %v1840, 0
        %vm2113 = vcmp.ne.s32.totalorder %v1854, 0
        %vm2114 = vcmp.ne.s32.totalorder %v1868, 0
        %vm2115 = vcmp.ne.s32.totalorder %v1882, 0
        %vm2116 = vcmp.ne.s32.totalorder %v1896, 0
        %vm2117 = vcmp.ne.s32.totalorder %v1910, 0
        %vm2118 = vcmp.ne.s32.totalorder %v1924, 0
        %vm2119 = vcmp.ne.s32.totalorder %v1938, 0
        %vm2120 = vcmp.ne.s32.totalorder %v1952, 0
        %vm2121 = vcmp.ne.s32.totalorder %v1966, 0
        %vm2122 = vcmp.ne.s32.totalorder %v1980, 0
        %vm2123 = vcmp.ne.s32.totalorder %v1994, 0
        %vm2124 = vcmp.ne.s32.totalorder %v2008, 0
        %vm2125 = vcmp.ne.s32.totalorder %v2022, 0
        %vm2126 = vcmp.ne.s32.totalorder %v2036, 0
        %vm2127 = vcmp.ne.s32.totalorder %v2050, 0
        %vm2128 = vcmp.ne.s32.totalorder %v2064, 0
        %vm2129 = vcmp.ne.s32.totalorder %v2078, 0
        %vm2130 = vcmp.ne.s32.totalorder %v2092, 0
        %vm2131 = vcmp.ne.s32.totalorder %v2106, 0
        %vm2132 = vcmp.lt.s32.totalorder %v1770, 0
        %vm2133 = vcmp.lt.s32.totalorder %v1784, 0
        %vm2134 = vcmp.lt.s32.totalorder %v1798, 0
        %vm2135 = vcmp.lt.s32.totalorder %v1812, 0
        %vm2136 = vcmp.lt.s32.totalorder %v1826, 0
        %vm2137 = vcmp.lt.s32.totalorder %v1840, 0
        %vm2138 = vcmp.lt.s32.totalorder %v1854, 0
        %vm2139 = vcmp.lt.s32.totalorder %v1868, 0
        %vm2140 = vcmp.lt.s32.totalorder %v1882, 0
        %vm2141 = vcmp.lt.s32.totalorder %v1896, 0
        %vm2142 = vcmp.lt.s32.totalorder %v1910, 0
        %vm2143 = vcmp.lt.s32.totalorder %v1924, 0
        %vm2144 = vcmp.lt.s32.totalorder %v1938, 0
        %vm2145 = vcmp.lt.s32.totalorder %v1952, 0
        %vm2146 = vcmp.lt.s32.totalorder %v1966, 0
        %vm2147 = vcmp.lt.s32.totalorder %v1980, 0
        %vm2148 = vcmp.lt.s32.totalorder %v1994, 0
        %vm2149 = vcmp.lt.s32.totalorder %v2008, 0
        %vm2150 = vcmp.lt.s32.totalorder %v2022, 0
        %vm2151 = vcmp.lt.s32.totalorder %v2036, 0
        %vm2152 = vcmp.lt.s32.totalorder %v2050, 0
        %vm2153 = vcmp.lt.s32.totalorder %v2064, 0
        %vm2154 = vcmp.lt.s32.totalorder %v2078, 0
        %vm2155 = vcmp.lt.s32.totalorder %v2092, 0
        %vm2156 = vcmp.lt.s32.totalorder %v2106, 0
        %vm2157 = vmand %vm2132, %vm2107
        %vm2158 = vmand %vm2133, %vm2108
        %vm2159 = vmand %vm2134, %vm2109
        %vm2160 = vmand %vm2135, %vm2110
        %vm2161 = vmand %vm2136, %vm2111
        %vm2162 = vmand %vm2137, %vm2112
        %vm2163 = vmand %vm2138, %vm2113
        %vm2164 = vmand %vm2139, %vm2114
        %vm2165 = vmand %vm2140, %vm2115
        %vm2166 = vmand %vm2141, %vm2116
        %vm2167 = vmand %vm2142, %vm2117
        %vm2168 = vmand %vm2143, %vm2118
        %vm2169 = vmand %vm2144, %vm2119
        %vm2170 = vmand %vm2145, %vm2120
        %vm2171 = vmand %vm2146, %vm2121
        %vm2172 = vmand %vm2147, %vm2122
        %vm2173 = vmand %vm2148, %vm2123
        %vm2174 = vmand %vm2149, %vm2124
        %vm2175 = vmand %vm2150, %vm2125
        %vm2176 = vmand %vm2151, %vm2126
        %vm2177 = vmand %vm2152, %vm2127
        %vm2178 = vmand %vm2153, %vm2128
        %vm2179 = vmand %vm2154, %vm2129
        %vm2180 = vmand %vm2155, %vm2130
        %vm2181 = vmand %vm2156, %vm2131
        %v2182 = vadd.s32 %v1770, 56
        %v2183 = vadd.s32 %v1784, 56
        %v2184 = vadd.s32 %v1798, 56
        %v2185 = vadd.s32 %v1812, 56
        %v2186 = vadd.s32 %v1826, 56
        %v2187 = vadd.s32 %v1840, 56
        %v2188 = vadd.s32 %v1854, 56
        %v2189 = vadd.s32 %v1868, 56
        %v2190 = vadd.s32 %v1882, 56
        %v2191 = vadd.s32 %v1896, 56
        %v2192 = vadd.s32 %v1910, 56
        %v2193 = vadd.s32 %v1924, 56
        %v2194 = vadd.s32 %v1938, 56
        %v2195 = vadd.s32 %v1952, 56
        %v2196 = vadd.s32 %v1966, 56
        %v2197 = vadd.s32 %v1980, 56
        %v2198 = vadd.s32 %v1994, 56
        %v2199 = vadd.s32 %v2008, 56
        %v2200 = vadd.s32 %v2022, 56
        %v2201 = vadd.s32 %v2036, 56
        %v2202 = vadd.s32 %v2050, 56
        %v2203 = vadd.s32 %v2064, 56
        %v2204 = vadd.s32 %v2078, 56
        %v2205 = vadd.s32 %v2092, 56
        %v2206 = vadd.s32 %v2106, 56
        %v2207 = vsel %vm2157, %v2182, %v1770
        %v2208 = vsel %vm2158, %v2183, %v1784
        %v2209 = vsel %vm2159, %v2184, %v1798
        %v2210 = vsel %vm2160, %v2185, %v1812
        %v2211 = vsel %vm2161, %v2186, %v1826
        %v2212 = vsel %vm2162, %v2187, %v1840
        %v2213 = vsel %vm2163, %v2188, %v1854
        %v2214 = vsel %vm2164, %v2189, %v1868
        %v2215 = vsel %vm2165, %v2190, %v1882
        %v2216 = vsel %vm2166, %v2191, %v1896
        %v2217 = vsel %vm2167, %v2192, %v1910
        %v2218 = vsel %vm2168, %v2193, %v1924
        %v2219 = vsel %vm2169, %v2194, %v1938
        %v2220 = vsel %vm2170, %v2195, %v1952
        %v2221 = vsel %vm2171, %v2196, %v1966
        %v2222 = vsel %vm2172, %v2197, %v1980
        %v2223 = vsel %vm2173, %v2198, %v1994
        %v2224 = vsel %vm2174, %v2199, %v2008
        %v2225 = vsel %vm2175, %v2200, %v2022
        %v2226 = vsel %vm2176, %v2201, %v2036
        %v2227 = vsel %vm2177, %v2202, %v2050
        %v2228 = vsel %vm2178, %v2203, %v2064
        %v2229 = vsel %vm2179, %v2204, %v2078
        %v2230 = vsel %vm2180, %v2205, %v2092
        %v2231 = vsel %vm2181, %v2206, %v2106
        %vm2232 = vcmp.eq.s32.totalorder %v2207, 0
        %vm2233 = vcmp.eq.s32.totalorder %v2208, 0
        %vm2234 = vcmp.eq.s32.totalorder %v2209, 0
        %vm2235 = vcmp.eq.s32.totalorder %v2210, 0
        %vm2236 = vcmp.eq.s32.totalorder %v2211, 0
        %vm2237 = vcmp.eq.s32.totalorder %v2212, 0
        %vm2238 = vcmp.eq.s32.totalorder %v2213, 0
        %vm2239 = vcmp.eq.s32.totalorder %v2214, 0
        %vm2240 = vcmp.eq.s32.totalorder %v2215, 0
        %vm2241 = vcmp.eq.s32.totalorder %v2216, 0
        %vm2242 = vcmp.eq.s32.totalorder %v2217, 0
        %vm2243 = vcmp.eq.s32.totalorder %v2218, 0
        %vm2244 = vcmp.eq.s32.totalorder %v2219, 0
        %vm2245 = vcmp.eq.s32.totalorder %v2220, 0
        %vm2246 = vcmp.eq.s32.totalorder %v2221, 0
        %vm2247 = vcmp.eq.s32.totalorder %v2222, 0
        %vm2248 = vcmp.eq.s32.totalorder %v2223, 0
        %vm2249 = vcmp.eq.s32.totalorder %v2224, 0
        %vm2250 = vcmp.eq.s32.totalorder %v2225, 0
        %vm2251 = vcmp.eq.s32.totalorder %v2226, 0
        %vm2252 = vcmp.eq.s32.totalorder %v2227, 0
        %vm2253 = vcmp.eq.s32.totalorder %v2228, 0
        %vm2254 = vcmp.eq.s32.totalorder %v2229, 0
        %vm2255 = vcmp.eq.s32.totalorder %v2230, 0
        %vm2256 = vcmp.eq.s32.totalorder %v2231, 0
        %v2257 = vsel %vm2232, %v1725, %v1106
        %v2258 = vsel %vm2233, %v1431, %v818
        %v2259 = vsel %vm2234, %v1432, %v819
        %v2260 = vsel %vm2235, %v1433, %v820
        %v2261 = vsel %vm2236, %v1434, %v821
        %v2262 = vsel %vm2237, %v1435, %v822
        %v2263 = vsel %vm2238, %v1436, %v823
        %v2264 = vsel %vm2239, %v1437, %v824
        %v2265 = vsel %vm2240, %v1438, %v825
        %v2266 = vsel %vm2241, %v1439, %v826
        %v2267 = vsel %vm2242, %v1440, %v827
        %v2268 = vsel %vm2243, %v1441, %v828
        %v2269 = vsel %vm2244, %v1442, %v829
        %v2270 = vsel %vm2245, %v1443, %v830
        %v2271 = vsel %vm2246, %v1444, %v831
        %v2272 = vsel %vm2247, %v1445, %v832
        %v2273 = vsel %vm2248, %v1446, %v833
        %v2274 = vsel %vm2249, %v1447, %v834
        %v2275 = vsel %vm2250, %v1448, %v835
        %v2276 = vsel %vm2251, %v1449, %v836
        %v2277 = vsel %vm2252, %v1450, %v837
        %v2278 = vsel %vm2253, %v1451, %v838
        %v2279 = vsel %vm2254, %v1452, %v839
        %v2280 = vsel %vm2255, %v1453, %v840
        %v2281 = vsel %vm2256, %v1454, %v576
        %v2282 = vsel %vm2232, %v1726, %v1107
        %v2283 = vsel %vm2233, %v1455, %v841
        %v2284 = vsel %vm2234, %v1456, %v842
        %v2285 = vsel %vm2235, %v1457, %v843
        %v2286 = vsel %vm2236, %v1458, %v844
        %v2287 = vsel %vm2237, %v1459, %v845
        %v2288 = vsel %vm2238, %v1460, %v846
        %v2289 = vsel %vm2239, %v1461, %v847
        %v2290 = vsel %vm2240, %v1462, %v848
        %v2291 = vsel %vm2241, %v1463, %v849
        %v2292 = vsel %vm2242, %v1464, %v850
        %v2293 = vsel %vm2243, %v1465, %v851
        %v2294 = vsel %vm2244, %v1466, %v852
        %v2295 = vsel %vm2245, %v1467, %v853
        %v2296 = vsel %vm2246, %v1468, %v854
        %v2297 = vsel %vm2247, %v1469, %v855
        %v2298 = vsel %vm2248, %v1470, %v856
        %v2299 = vsel %vm2249, %v1471, %v857
        %v2300 = vsel %vm2250, %v1472, %v858
        %v2301 = vsel %vm2251, %v1473, %v859
        %v2302 = vsel %vm2252, %v1474, %v860
        %v2303 = vsel %vm2253, %v1475, %v861
        %v2304 = vsel %vm2254, %v1476, %v862
        %v2305 = vsel %vm2255, %v1477, %v863
        %v2306 = vsel %vm2256, %v1478, %v624
        %v2307 = vsel %vm2232, %v1727, %v1108
        %v2308 = vsel %vm2233, %v1479, %v864
        %v2309 = vsel %vm2234, %v1480, %v865
        %v2310 = vsel %vm2235, %v1481, %v866
        %v2311 = vsel %vm2236, %v1482, %v867
        %v2312 = vsel %vm2237, %v1483, %v868
        %v2313 = vsel %vm2238, %v1484, %v869
        %v2314 = vsel %vm2239, %v1485, %v870
        %v2315 = vsel %vm2240, %v1486, %v871
        %v2316 = vsel %vm2241, %v1487, %v872
        %v2317 = vsel %vm2242, %v1488, %v873
        %v2318 = vsel %vm2243, %v1489, %v874
        %v2319 = vsel %vm2244, %v1490, %v875
        %v2320 = vsel %vm2245, %v1491, %v876
        %v2321 = vsel %vm2246, %v1492, %v877
        %v2322 = vsel %vm2247, %v1493, %v878
        %v2323 = vsel %vm2248, %v1494, %v879
        %v2324 = vsel %vm2249, %v1495, %v880
        %v2325 = vsel %vm2250, %v1496, %v881
        %v2326 = vsel %vm2251, %v1497, %v882
        %v2327 = vsel %vm2252, %v1498, %v883
        %v2328 = vsel %vm2253, %v1499, %v884
        %v2329 = vsel %vm2254, %v1500, %v885
        %v2330 = vsel %vm2255, %v1501, %v886
        %v2331 = vsel %vm2256, %v1502, %v672
        %v2332 = vsel %vm2232, %v1728, %v1109
        %v2333 = vsel %vm2233, %v1503, %v887
        %v2334 = vsel %vm2234, %v1504, %v888
        %v2335 = vsel %vm2235, %v1505, %v889
        %v2336 = vsel %vm2236, %v1506, %v890
        %v2337 = vsel %vm2237, %v1507, %v891
        %v2338 = vsel %vm2238, %v1508, %v892
        %v2339 = vsel %vm2239, %v1509, %v893
        %v2340 = vsel %vm2240, %v1510, %v894
        %v2341 = vsel %vm2241, %v1511, %v895
        %v2342 = vsel %vm2242, %v1512, %v896
        %v2343 = vsel %vm2243, %v1513, %v897
        %v2344 = vsel %vm2244, %v1514, %v898
        %v2345 = vsel %vm2245, %v1515, %v899
        %v2346 = vsel %vm2246, %v1516, %v900
        %v2347 = vsel %vm2247, %v1517, %v901
        %v2348 = vsel %vm2248, %v1518, %v902
        %v2349 = vsel %vm2249, %v1519, %v903
        %v2350 = vsel %vm2250, %v1520, %v904
        %v2351 = vsel %vm2251, %v1521, %v905
        %v2352 = vsel %vm2252, %v1522, %v906
        %v2353 = vsel %vm2253, %v1523, %v907
        %v2354 = vsel %vm2254, %v1524, %v908
        %v2355 = vsel %vm2255, %v1525, %v909
        %v2356 = vsel %vm2256, %v1526, %v720
        %v2357 = vsel %vm2232, %v1729, %v1110
        %v2358 = vsel %vm2233, %v1527, %v910
        %v2359 = vsel %vm2234, %v1528, %v911
        %v2360 = vsel %vm2235, %v1529, %v912
        %v2361 = vsel %vm2236, %v1530, %v913
        %v2362 = vsel %vm2237, %v1531, %v914
        %v2363 = vsel %vm2238, %v1532, %v915
        %v2364 = vsel %vm2239, %v1533, %v916
        %v2365 = vsel %vm2240, %v1534, %v917
        %v2366 = vsel %vm2241, %v1535, %v918
        %v2367 = vsel %vm2242, %v1536, %v919
        %v2368 = vsel %vm2243, %v1537, %v920
        %v2369 = vsel %vm2244, %v1538, %v921
        %v2370 = vsel %vm2245, %v1539, %v922
        %v2371 = vsel %vm2246, %v1540, %v923
        %v2372 = vsel %vm2247, %v1541, %v924
        %v2373 = vsel %vm2248, %v1542, %v925
        %v2374 = vsel %vm2249, %v1543, %v926
        %v2375 = vsel %vm2250, %v1544, %v927
        %v2376 = vsel %vm2251, %v1545, %v928
        %v2377 = vsel %vm2252, %v1546, %v929
        %v2378 = vsel %vm2253, %v1547, %v930
        %v2379 = vsel %vm2254, %v1548, %v931
        %v2380 = vsel %vm2255, %v1549, %v932
        %v2381 = vsel %vm2256, %v1550, %v768
        %v2382 = vsel %vm2232, %v1730, %v1111
        %v2383 = vsel %vm2233, %v1551, %v933
        %v2384 = vsel %vm2234, %v1552, %v934
        %v2385 = vsel %vm2235, %v1553, %v935
        %v2386 = vsel %vm2236, %v1554, %v936
        %v2387 = vsel %vm2237, %v1555, %v937
        %v2388 = vsel %vm2238, %v1556, %v938
        %v2389 = vsel %vm2239, %v1557, %v939
        %v2390 = vsel %vm2240, %v1558, %v940
        %v2391 = vsel %vm2241, %v1559, %v941
        %v2392 = vsel %vm2242, %v1560, %v942
        %v2393 = vsel %vm2243, %v1561, %v943
        %v2394 = vsel %vm2244, %v1562, %v944
        %v2395 = vsel %vm2245, %v1563, %v945
        %v2396 = vsel %vm2246, %v1564, %v946
        %v2397 = vsel %vm2247, %v1565, %v947
        %v2398 = vsel %vm2248, %v1566, %v948
        %v2399 = vsel %vm2249, %v1567, %v949
        %v2400 = vsel %vm2250, %v1568, %v950
        %v2401 = vsel %vm2251, %v1569, %v951
        %v2402 = vsel %vm2252, %v1570, %v952
        %v2403 = vsel %vm2253, %v1571, %v953
        %v2404 = vsel %vm2254, %v1572, %v954
        %v2405 = vsel %vm2255, %v1573, %v955
        %v2406 = vsel %vm2256, %v1574, %v816
        %2551 = vrot.lane.b32.xlu0 %v2257, 112
        %v2552 = vpop.permute.xlu0 %2551
        %2553 = vrot.lane.b32.xlu0 %v2258, 112
        %v2554 = vpop.permute.xlu0 %2553
        %2555 = vrot.lane.b32.xlu0 %v2259, 112
        %v2556 = vpop.permute.xlu0 %2555
        %2557 = vrot.lane.b32.xlu0 %v2260, 112
        %v2558 = vpop.permute.xlu0 %2557
        %2559 = vrot.lane.b32.xlu0 %v2261, 112
        %v2560 = vpop.permute.xlu0 %2559
        %2561 = vrot.lane.b32.xlu0 %v2262, 112
        %v2562 = vpop.permute.xlu0 %2561
        %2563 = vrot.lane.b32.xlu0 %v2263, 112
        %v2564 = vpop.permute.xlu0 %2563
        %2565 = vrot.lane.b32.xlu0 %v2264, 112
        %v2566 = vpop.permute.xlu0 %2565
        %2567 = vrot.lane.b32.xlu0 %v2265, 112
        %v2568 = vpop.permute.xlu0 %2567
        %2569 = vrot.lane.b32.xlu0 %v2266, 112
        %v2570 = vpop.permute.xlu0 %2569
        %2571 = vrot.lane.b32.xlu0 %v2267, 112
        %v2572 = vpop.permute.xlu0 %2571
        %2573 = vrot.lane.b32.xlu0 %v2268, 112
        %v2574 = vpop.permute.xlu0 %2573
        %2575 = vrot.lane.b32.xlu0 %v2269, 112
        %v2576 = vpop.permute.xlu0 %2575
        %2577 = vrot.lane.b32.xlu0 %v2270, 112
        %v2578 = vpop.permute.xlu0 %2577
        %2579 = vrot.lane.b32.xlu0 %v2271, 112
        %v2580 = vpop.permute.xlu0 %2579
        %2581 = vrot.lane.b32.xlu0 %v2272, 112
        %v2582 = vpop.permute.xlu0 %2581
        %2583 = vrot.lane.b32.xlu0 %v2273, 112
        %v2584 = vpop.permute.xlu0 %2583
        %2585 = vrot.lane.b32.xlu0 %v2274, 112
        %v2586 = vpop.permute.xlu0 %2585
        %2587 = vrot.lane.b32.xlu0 %v2275, 112
        %v2588 = vpop.permute.xlu0 %2587
        %2589 = vrot.lane.b32.xlu0 %v2276, 112
        %v2590 = vpop.permute.xlu0 %2589
        %2591 = vrot.lane.b32.xlu0 %v2277, 112
        %v2592 = vpop.permute.xlu0 %2591
        %2593 = vrot.lane.b32.xlu0 %v2278, 112
        %v2594 = vpop.permute.xlu0 %2593
        %2595 = vrot.lane.b32.xlu0 %v2279, 112
        %v2596 = vpop.permute.xlu0 %2595
        %2597 = vrot.lane.b32.xlu0 %v2280, 112
        %v2598 = vpop.permute.xlu0 %2597
        %2599 = vrot.lane.b32.xlu0 %v2282, 112
        %v2600 = vpop.permute.xlu0 %2599
        %2601 = vrot.lane.b32.xlu0 %v2283, 112
        %v2602 = vpop.permute.xlu0 %2601
        %2603 = vrot.lane.b32.xlu0 %v2284, 112
        %v2604 = vpop.permute.xlu0 %2603
        %2605 = vrot.lane.b32.xlu0 %v2285, 112
        %v2606 = vpop.permute.xlu0 %2605
        %2607 = vrot.lane.b32.xlu0 %v2286, 112
        %v2608 = vpop.permute.xlu0 %2607
        %2609 = vrot.lane.b32.xlu0 %v2287, 112
        %v2610 = vpop.permute.xlu0 %2609
        %2611 = vrot.lane.b32.xlu0 %v2288, 112
        %v2612 = vpop.permute.xlu0 %2611
        %2613 = vrot.lane.b32.xlu0 %v2289, 112
        %v2614 = vpop.permute.xlu0 %2613
        %2615 = vrot.lane.b32.xlu0 %v2290, 112
        %v2616 = vpop.permute.xlu0 %2615
        %2617 = vrot.lane.b32.xlu0 %v2291, 112
        %v2618 = vpop.permute.xlu0 %2617
        %2619 = vrot.lane.b32.xlu0 %v2292, 112
        %v2620 = vpop.permute.xlu0 %2619
        %2621 = vrot.lane.b32.xlu0 %v2293, 112
        %v2622 = vpop.permute.xlu0 %2621
        %2623 = vrot.lane.b32.xlu0 %v2294, 112
        %v2624 = vpop.permute.xlu0 %2623
        %2625 = vrot.lane.b32.xlu0 %v2295, 112
        %v2626 = vpop.permute.xlu0 %2625
        %2627 = vrot.lane.b32.xlu0 %v2296, 112
        %v2628 = vpop.permute.xlu0 %2627
        %2629 = vrot.lane.b32.xlu0 %v2297, 112
        %v2630 = vpop.permute.xlu0 %2629
        %2631 = vrot.lane.b32.xlu0 %v2298, 112
        %v2632 = vpop.permute.xlu0 %2631
        %2633 = vrot.lane.b32.xlu0 %v2299, 112
        %v2634 = vpop.permute.xlu0 %2633
        %2635 = vrot.lane.b32.xlu0 %v2300, 112
        %v2636 = vpop.permute.xlu0 %2635
        %2637 = vrot.lane.b32.xlu0 %v2301, 112
        %v2638 = vpop.permute.xlu0 %2637
        %2639 = vrot.lane.b32.xlu0 %v2302, 112
        %v2640 = vpop.permute.xlu0 %2639
        %2641 = vrot.lane.b32.xlu0 %v2303, 112
        %v2642 = vpop.permute.xlu0 %2641
        %2643 = vrot.lane.b32.xlu0 %v2304, 112
        %v2644 = vpop.permute.xlu0 %2643
        %2645 = vrot.lane.b32.xlu0 %v2305, 112
        %v2646 = vpop.permute.xlu0 %2645
        %2647 = vrot.lane.b32.xlu0 %v2307, 112
        %v2648 = vpop.permute.xlu0 %2647
        %2649 = vrot.lane.b32.xlu0 %v2308, 112
        %v2650 = vpop.permute.xlu0 %2649
        %2651 = vrot.lane.b32.xlu0 %v2309, 112
        %v2652 = vpop.permute.xlu0 %2651
        %2653 = vrot.lane.b32.xlu0 %v2310, 112
        %v2654 = vpop.permute.xlu0 %2653
        %2655 = vrot.lane.b32.xlu0 %v2311, 112
        %v2656 = vpop.permute.xlu0 %2655
        %2657 = vrot.lane.b32.xlu0 %v2312, 112
        %v2658 = vpop.permute.xlu0 %2657
        %2659 = vrot.lane.b32.xlu0 %v2313, 112
        %v2660 = vpop.permute.xlu0 %2659
        %2661 = vrot.lane.b32.xlu0 %v2314, 112
        %v2662 = vpop.permute.xlu0 %2661
        %2663 = vrot.lane.b32.xlu0 %v2315, 112
        %v2664 = vpop.permute.xlu0 %2663
        %2665 = vrot.lane.b32.xlu0 %v2316, 112
        %v2666 = vpop.permute.xlu0 %2665
        %2667 = vrot.lane.b32.xlu0 %v2317, 112
        %v2668 = vpop.permute.xlu0 %2667
        %2669 = vrot.lane.b32.xlu0 %v2318, 112
        %v2670 = vpop.permute.xlu0 %2669
        %2671 = vrot.lane.b32.xlu0 %v2319, 112
        %v2672 = vpop.permute.xlu0 %2671
        %2673 = vrot.lane.b32.xlu0 %v2320, 112
        %v2674 = vpop.permute.xlu0 %2673
        %2675 = vrot.lane.b32.xlu0 %v2321, 112
        %v2676 = vpop.permute.xlu0 %2675
        %2677 = vrot.lane.b32.xlu0 %v2322, 112
        %v2678 = vpop.permute.xlu0 %2677
        %2679 = vrot.lane.b32.xlu0 %v2323, 112
        %v2680 = vpop.permute.xlu0 %2679
        %2681 = vrot.lane.b32.xlu0 %v2324, 112
        %v2682 = vpop.permute.xlu0 %2681
        %2683 = vrot.lane.b32.xlu0 %v2325, 112
        %v2684 = vpop.permute.xlu0 %2683
        %2685 = vrot.lane.b32.xlu0 %v2326, 112
        %v2686 = vpop.permute.xlu0 %2685
        %2687 = vrot.lane.b32.xlu0 %v2327, 112
        %v2688 = vpop.permute.xlu0 %2687
        %2689 = vrot.lane.b32.xlu0 %v2328, 112
        %v2690 = vpop.permute.xlu0 %2689
        %2691 = vrot.lane.b32.xlu0 %v2329, 112
        %v2692 = vpop.permute.xlu0 %2691
        %2693 = vrot.lane.b32.xlu0 %v2330, 112
        %v2694 = vpop.permute.xlu0 %2693
        %2695 = vrot.lane.b32.xlu0 %v2332, 112
        %v2696 = vpop.permute.xlu0 %2695
        %2697 = vrot.lane.b32.xlu0 %v2333, 112
        %v2698 = vpop.permute.xlu0 %2697
        %2699 = vrot.lane.b32.xlu0 %v2334, 112
        %v2700 = vpop.permute.xlu0 %2699
        %2701 = vrot.lane.b32.xlu0 %v2335, 112
        %v2702 = vpop.permute.xlu0 %2701
        %2703 = vrot.lane.b32.xlu0 %v2336, 112
        %v2704 = vpop.permute.xlu0 %2703
        %2705 = vrot.lane.b32.xlu0 %v2337, 112
        %v2706 = vpop.permute.xlu0 %2705
        %2707 = vrot.lane.b32.xlu0 %v2338, 112
        %v2708 = vpop.permute.xlu0 %2707
        %2709 = vrot.lane.b32.xlu0 %v2339, 112
        %v2710 = vpop.permute.xlu0 %2709
        %2711 = vrot.lane.b32.xlu0 %v2340, 112
        %v2712 = vpop.permute.xlu0 %2711
        %2713 = vrot.lane.b32.xlu0 %v2341, 112
        %v2714 = vpop.permute.xlu0 %2713
        %2715 = vrot.lane.b32.xlu0 %v2342, 112
        %v2716 = vpop.permute.xlu0 %2715
        %2717 = vrot.lane.b32.xlu0 %v2343, 112
        %v2718 = vpop.permute.xlu0 %2717
        %2719 = vrot.lane.b32.xlu0 %v2344, 112
        %v2720 = vpop.permute.xlu0 %2719
        %2721 = vrot.lane.b32.xlu0 %v2345, 112
        %v2722 = vpop.permute.xlu0 %2721
        %2723 = vrot.lane.b32.xlu0 %v2346, 112
        %v2724 = vpop.permute.xlu0 %2723
        %2725 = vrot.lane.b32.xlu0 %v2347, 112
        %v2726 = vpop.permute.xlu0 %2725
        %2727 = vrot.lane.b32.xlu0 %v2348, 112
        %v2728 = vpop.permute.xlu0 %2727
        %2729 = vrot.lane.b32.xlu0 %v2349, 112
        %v2730 = vpop.permute.xlu0 %2729
        %2731 = vrot.lane.b32.xlu0 %v2350, 112
        %v2732 = vpop.permute.xlu0 %2731
        %2733 = vrot.lane.b32.xlu0 %v2351, 112
        %v2734 = vpop.permute.xlu0 %2733
        %2735 = vrot.lane.b32.xlu0 %v2352, 112
        %v2736 = vpop.permute.xlu0 %2735
        %2737 = vrot.lane.b32.xlu0 %v2353, 112
        %v2738 = vpop.permute.xlu0 %2737
        %2739 = vrot.lane.b32.xlu0 %v2354, 112
        %v2740 = vpop.permute.xlu0 %2739
        %2741 = vrot.lane.b32.xlu0 %v2355, 112
        %v2742 = vpop.permute.xlu0 %2741
        %2743 = vrot.lane.b32.xlu0 %v2357, 112
        %v2744 = vpop.permute.xlu0 %2743
        %2745 = vrot.lane.b32.xlu0 %v2358, 112
        %v2746 = vpop.permute.xlu0 %2745
        %2747 = vrot.lane.b32.xlu0 %v2359, 112
        %v2748 = vpop.permute.xlu0 %2747
        %2749 = vrot.lane.b32.xlu0 %v2360, 112
        %v2750 = vpop.permute.xlu0 %2749
        %2751 = vrot.lane.b32.xlu0 %v2361, 112
        %v2752 = vpop.permute.xlu0 %2751
        %2753 = vrot.lane.b32.xlu0 %v2362, 112
        %v2754 = vpop.permute.xlu0 %2753
        %2755 = vrot.lane.b32.xlu0 %v2363, 112
        %v2756 = vpop.permute.xlu0 %2755
        %2757 = vrot.lane.b32.xlu0 %v2364, 112
        %v2758 = vpop.permute.xlu0 %2757
        %2759 = vrot.lane.b32.xlu0 %v2365, 112
        %v2760 = vpop.permute.xlu0 %2759
        %2761 = vrot.lane.b32.xlu0 %v2366, 112
        %v2762 = vpop.permute.xlu0 %2761
        %2763 = vrot.lane.b32.xlu0 %v2367, 112
        %v2764 = vpop.permute.xlu0 %2763
        %2765 = vrot.lane.b32.xlu0 %v2368, 112
        %v2766 = vpop.permute.xlu0 %2765
        %2767 = vrot.lane.b32.xlu0 %v2369, 112
        %v2768 = vpop.permute.xlu0 %2767
        %2769 = vrot.lane.b32.xlu0 %v2370, 112
        %v2770 = vpop.permute.xlu0 %2769
        %2771 = vrot.lane.b32.xlu0 %v2371, 112
        %v2772 = vpop.permute.xlu0 %2771
        %2773 = vrot.lane.b32.xlu0 %v2372, 112
        %v2774 = vpop.permute.xlu0 %2773
        %2775 = vrot.lane.b32.xlu0 %v2373, 112
        %v2776 = vpop.permute.xlu0 %2775
        %2777 = vrot.lane.b32.xlu0 %v2374, 112
        %v2778 = vpop.permute.xlu0 %2777
        %2779 = vrot.lane.b32.xlu0 %v2375, 112
        %v2780 = vpop.permute.xlu0 %2779
        %2781 = vrot.lane.b32.xlu0 %v2376, 112
        %v2782 = vpop.permute.xlu0 %2781
        %2783 = vrot.lane.b32.xlu0 %v2377, 112
        %v2784 = vpop.permute.xlu0 %2783
        %2785 = vrot.lane.b32.xlu0 %v2378, 112
        %v2786 = vpop.permute.xlu0 %2785
        %2787 = vrot.lane.b32.xlu0 %v2379, 112
        %v2788 = vpop.permute.xlu0 %2787
        %2789 = vrot.lane.b32.xlu0 %v2380, 112
        %v2790 = vpop.permute.xlu0 %2789
        %2791 = vrot.lane.b32.xlu0 %v2382, 112
        %v2792 = vpop.permute.xlu0 %2791
        %2793 = vrot.lane.b32.xlu0 %v2383, 112
        %v2794 = vpop.permute.xlu0 %2793
        %2795 = vrot.lane.b32.xlu0 %v2384, 112
        %v2796 = vpop.permute.xlu0 %2795
        %2797 = vrot.lane.b32.xlu0 %v2385, 112
        %v2798 = vpop.permute.xlu0 %2797
        %2799 = vrot.lane.b32.xlu0 %v2386, 112
        %v2800 = vpop.permute.xlu0 %2799
        %2801 = vrot.lane.b32.xlu0 %v2387, 112
        %v2802 = vpop.permute.xlu0 %2801
        %2803 = vrot.lane.b32.xlu0 %v2388, 112
        %v2804 = vpop.permute.xlu0 %2803
        %2805 = vrot.lane.b32.xlu0 %v2389, 112
        %v2806 = vpop.permute.xlu0 %2805
        %2807 = vrot.lane.b32.xlu0 %v2390, 112
        %v2808 = vpop.permute.xlu0 %2807
        %2809 = vrot.lane.b32.xlu0 %v2391, 112
        %v2810 = vpop.permute.xlu0 %2809
        %2811 = vrot.lane.b32.xlu0 %v2392, 112
        %v2812 = vpop.permute.xlu0 %2811
        %2813 = vrot.lane.b32.xlu0 %v2393, 112
        %v2814 = vpop.permute.xlu0 %2813
        %2815 = vrot.lane.b32.xlu0 %v2394, 112
        %v2816 = vpop.permute.xlu0 %2815
        %2817 = vrot.lane.b32.xlu0 %v2395, 112
        %v2818 = vpop.permute.xlu0 %2817
        %2819 = vrot.lane.b32.xlu0 %v2396, 112
        %v2820 = vpop.permute.xlu0 %2819
        %2821 = vrot.lane.b32.xlu0 %v2397, 112
        %v2822 = vpop.permute.xlu0 %2821
        %2823 = vrot.lane.b32.xlu0 %v2398, 112
        %v2824 = vpop.permute.xlu0 %2823
        %2825 = vrot.lane.b32.xlu0 %v2399, 112
        %v2826 = vpop.permute.xlu0 %2825
        %2827 = vrot.lane.b32.xlu0 %v2400, 112
        %v2828 = vpop.permute.xlu0 %2827
        %2829 = vrot.lane.b32.xlu0 %v2401, 112
        %v2830 = vpop.permute.xlu0 %2829
        %2831 = vrot.lane.b32.xlu0 %v2402, 112
        %v2832 = vpop.permute.xlu0 %2831
        %2833 = vrot.lane.b32.xlu0 %v2403, 112
        %v2834 = vpop.permute.xlu0 %2833
        %2835 = vrot.lane.b32.xlu0 %v2404, 112
        %v2836 = vpop.permute.xlu0 %2835
        %2837 = vrot.lane.b32.xlu0 %v2405, 112
        %v2838 = vpop.permute.xlu0 %2837
        %vm2839 = vcmask 916480
        %v2840 = vsel %vm2839, %v2552, %v2554
        %v2841 = vsel %vm2839, %v2554, %v2556
        %v2842 = vsel %vm2839, %v2556, %v2558
        %v2843 = vsel %vm2839, %v2558, %v2560
        %v2844 = vsel %vm2839, %v2560, %v2562
        %v2845 = vsel %vm2839, %v2562, %v2564
        %v2846 = vsel %vm2839, %v2564, %v2566
        %v2847 = vsel %vm2839, %v2566, %v2568
        %v2848 = vsel %vm2839, %v2568, %v2570
        %v2849 = vsel %vm2839, %v2570, %v2572
        %v2850 = vsel %vm2839, %v2572, %v2574
        %v2851 = vsel %vm2839, %v2574, %v2576
        %v2852 = vsel %vm2839, %v2576, %v2578
        %v2853 = vsel %vm2839, %v2578, %v2580
        %v2854 = vsel %vm2839, %v2580, %v2582
        %v2855 = vsel %vm2839, %v2582, %v2584
        %v2856 = vsel %vm2839, %v2584, %v2586
        %v2857 = vsel %vm2839, %v2586, %v2588
        %v2858 = vsel %vm2839, %v2588, %v2590
        %v2859 = vsel %vm2839, %v2590, %v2592
        %v2860 = vsel %vm2839, %v2592, %v2594
        %v2861 = vsel %vm2839, %v2594, %v2596
        %v2862 = vsel %vm2839, %v2596, %v2598
        %v2863 = vsel %vm2839, %v2600, %v2602
        %v2864 = vsel %vm2839, %v2602, %v2604
        %v2865 = vsel %vm2839, %v2604, %v2606
        %v2866 = vsel %vm2839, %v2606, %v2608
        %v2867 = vsel %vm2839, %v2608, %v2610
        %v2868 = vsel %vm2839, %v2610, %v2612
        %v2869 = vsel %vm2839, %v2612, %v2614
        %v2870 = vsel %vm2839, %v2614, %v2616
        %v2871 = vsel %vm2839, %v2616, %v2618
        %v2872 = vsel %vm2839, %v2618, %v2620
        %v2873 = vsel %vm2839, %v2620, %v2622
        %v2874 = vsel %vm2839, %v2622, %v2624
        %v2875 = vsel %vm2839, %v2624, %v2626
        %v2876 = vsel %vm2839, %v2626, %v2628
        %v2877 = vsel %vm2839, %v2628, %v2630
        %v2878 = vsel %vm2839, %v2630, %v2632
        %v2879 = vsel %vm2839, %v2632, %v2634
        %v2880 = vsel %vm2839, %v2634, %v2636
        %v2881 = vsel %vm2839, %v2636, %v2638
        %v2882 = vsel %vm2839, %v2638, %v2640
        %v2883 = vsel %vm2839, %v2640, %v2642
        %v2884 = vsel %vm2839, %v2642, %v2644
        %v2885 = vsel %vm2839, %v2644, %v2646
        %v2886 = vsel %vm2839, %v2648, %v2650
        %v2887 = vsel %vm2839, %v2650, %v2652
        %v2888 = vsel %vm2839, %v2652, %v2654
        %v2889 = vsel %vm2839, %v2654, %v2656
        %v2890 = vsel %vm2839, %v2656, %v2658
        %v2891 = vsel %vm2839, %v2658, %v2660
        %v2892 = vsel %vm2839, %v2660, %v2662
        %v2893 = vsel %vm2839, %v2662, %v2664
        %v2894 = vsel %vm2839, %v2664, %v2666
        %v2895 = vsel %vm2839, %v2666, %v2668
        %v2896 = vsel %vm2839, %v2668, %v2670
        %v2897 = vsel %vm2839, %v2670, %v2672
        %v2898 = vsel %vm2839, %v2672, %v2674
        %v2899 = vsel %vm2839, %v2674, %v2676
        %v2900 = vsel %vm2839, %v2676, %v2678
        %v2901 = vsel %vm2839, %v2678, %v2680
        %v2902 = vsel %vm2839, %v2680, %v2682
        %v2903 = vsel %vm2839, %v2682, %v2684
        %v2904 = vsel %vm2839, %v2684, %v2686
        %v2905 = vsel %vm2839, %v2686, %v2688
        %v2906 = vsel %vm2839, %v2688, %v2690
        %v2907 = vsel %vm2839, %v2690, %v2692
        %v2908 = vsel %vm2839, %v2692, %v2694
        %v2909 = vsel %vm2839, %v2696, %v2698
        %v2910 = vsel %vm2839, %v2698, %v2700
        %v2911 = vsel %vm2839, %v2700, %v2702
        %v2912 = vsel %vm2839, %v2702, %v2704
        %v2913 = vsel %vm2839, %v2704, %v2706
        %v2914 = vsel %vm2839, %v2706, %v2708
        %v2915 = vsel %vm2839, %v2708, %v2710
        %v2916 = vsel %vm2839, %v2710, %v2712
        %v2917 = vsel %vm2839, %v2712, %v2714
        %v2918 = vsel %vm2839, %v2714, %v2716
        %v2919 = vsel %vm2839, %v2716, %v2718
        %v2920 = vsel %vm2839, %v2718, %v2720
        %v2921 = vsel %vm2839, %v2720, %v2722
        %v2922 = vsel %vm2839, %v2722, %v2724
        %v2923 = vsel %vm2839, %v2724, %v2726
        %v2924 = vsel %vm2839, %v2726, %v2728
        %v2925 = vsel %vm2839, %v2728, %v2730
        %v2926 = vsel %vm2839, %v2730, %v2732
        %v2927 = vsel %vm2839, %v2732, %v2734
        %v2928 = vsel %vm2839, %v2734, %v2736
        %v2929 = vsel %vm2839, %v2736, %v2738
        %v2930 = vsel %vm2839, %v2738, %v2740
        %v2931 = vsel %vm2839, %v2740, %v2742
        %v2932 = vsel %vm2839, %v2744, %v2746
        %v2933 = vsel %vm2839, %v2746, %v2748
        %v2934 = vsel %vm2839, %v2748, %v2750
        %v2935 = vsel %vm2839, %v2750, %v2752
        %v2936 = vsel %vm2839, %v2752, %v2754
        %v2937 = vsel %vm2839, %v2754, %v2756
        %v2938 = vsel %vm2839, %v2756, %v2758
        %v2939 = vsel %vm2839, %v2758, %v2760
        %v2940 = vsel %vm2839, %v2760, %v2762
        %v2941 = vsel %vm2839, %v2762, %v2764
        %v2942 = vsel %vm2839, %v2764, %v2766
        %v2943 = vsel %vm2839, %v2766, %v2768
        %v2944 = vsel %vm2839, %v2768, %v2770
        %v2945 = vsel %vm2839, %v2770, %v2772
        %v2946 = vsel %vm2839, %v2772, %v2774
        %v2947 = vsel %vm2839, %v2774, %v2776
        %v2948 = vsel %vm2839, %v2776, %v2778
        %v2949 = vsel %vm2839, %v2778, %v2780
        %v2950 = vsel %vm2839, %v2780, %v2782
        %v2951 = vsel %vm2839, %v2782, %v2784
        %v2952 = vsel %vm2839, %v2784, %v2786
        %v2953 = vsel %vm2839, %v2786, %v2788
        %v2954 = vsel %vm2839, %v2788, %v2790
        %v2955 = vsel %vm2839, %v2792, %v2794
        %v2956 = vsel %vm2839, %v2794, %v2796
        %v2957 = vsel %vm2839, %v2796, %v2798
        %v2958 = vsel %vm2839, %v2798, %v2800
        %v2959 = vsel %vm2839, %v2800, %v2802
        %v2960 = vsel %vm2839, %v2802, %v2804
        %v2961 = vsel %vm2839, %v2804, %v2806
        %v2962 = vsel %vm2839, %v2806, %v2808
        %v2963 = vsel %vm2839, %v2808, %v2810
        %v2964 = vsel %vm2839, %v2810, %v2812
        %v2965 = vsel %vm2839, %v2812, %v2814
        %v2966 = vsel %vm2839, %v2814, %v2816
        %v2967 = vsel %vm2839, %v2816, %v2818
        %v2968 = vsel %vm2839, %v2818, %v2820
        %v2969 = vsel %vm2839, %v2820, %v2822
        %v2970 = vsel %vm2839, %v2822, %v2824
        %v2971 = vsel %vm2839, %v2824, %v2826
        %v2972 = vsel %vm2839, %v2826, %v2828
        %v2973 = vsel %vm2839, %v2828, %v2830
        %v2974 = vsel %vm2839, %v2830, %v2832
        %v2975 = vsel %vm2839, %v2832, %v2834
        %v2976 = vsel %vm2839, %v2834, %v2836
        %v2977 = vsel %vm2839, %v2836, %v2838
        %v3128 = vsel %vm2839, 0.0, %v2552
        %v3129 = vsel %vm2839, 0.0, %v2600
        %v3130 = vsel %vm2839, 0.0, %v2648
        %v3131 = vsel %vm2839, 0.0, %v2696
        %v3132 = vsel %vm2839, 0.0, %v2744
        %v3133 = vsel %vm2839, 0.0, %v2792
        %3134 = vst [vmem:[#allocation2] sm:$0xff] %v3128
        %3135 = vst [vmem:[#allocation2 + $0x8] sm:$0xff] %v2840
        %3136 = vst [vmem:[#allocation2 + $0x10] sm:$0xff] %v2841
        %3137 = vst [vmem:[#allocation2 + $0x18] sm:$0xff] %v2842
        %3138 = vst [vmem:[#allocation2 + $0x20] sm:$0xff] %v2843
        %3139 = vst [vmem:[#allocation2 + $0x28] sm:$0xff] %v2844
        %3140 = vst [vmem:[#allocation2 + $0x30] sm:$0xff] %v2845
        %3141 = vst [vmem:[#allocation2 + $0x38] sm:$0xff] %v2846
        %3142 = vst [vmem:[#allocation2 + $0x40] sm:$0xff] %v2847
        %3143 = vst [vmem:[#allocation2 + $0x48] sm:$0xff] %v2848
        %3144 = vst [vmem:[#allocation2 + $0x50] sm:$0xff] %v2849
        %3145 = vst [vmem:[#allocation2 + $0x58] sm:$0xff] %v2850
        %3146 = vst [vmem:[#allocation2 + $0x60] sm:$0xff] %v2851
        %3147 = vst [vmem:[#allocation2 + $0x68] sm:$0xff] %v2852
        %3148 = vst [vmem:[#allocation2 + $0x70] sm:$0xff] %v2853
        %3149 = vst [vmem:[#allocation2 + $0x78] sm:$0xff] %v2854
        %3150 = vst [vmem:[#allocation2 + $0x80] sm:$0xff] %v2855
        %3151 = vst [vmem:[#allocation2 + $0x88] sm:$0xff] %v2856
        %3152 = vst [vmem:[#allocation2 + $0x90] sm:$0xff] %v2857
        %3153 = vst [vmem:[#allocation2 + $0x98] sm:$0xff] %v2858
        %3154 = vst [vmem:[#allocation2 + $0xa0] sm:$0xff] %v2859
        %3155 = vst [vmem:[#allocation2 + $0xa8] sm:$0xff] %v2860
        %3156 = vst [vmem:[#allocation2 + $0xb0] sm:$0xff] %v2861
        %3157 = vst [vmem:[#allocation2 + $0xb8] sm:$0xff] %v2862
        %vm3158 = vcmask 523264
        %3159 = vst.msk [vmem:[#allocation2 + $0xc0] sm:$0xff] %vm3158, %v2598
        %3160 = vst [vmem:[#allocation2 + $0xc8] sm:$0xff] %v3129
        %3161 = vst [vmem:[#allocation2 + $0xd0] sm:$0xff] %v2863
        %3162 = vst [vmem:[#allocation2 + $0xd8] sm:$0xff] %v2864
        %3163 = vst [vmem:[#allocation2 + $0xe0] sm:$0xff] %v2865
        %3164 = vst [vmem:[#allocation2 + $0xe8] sm:$0xff] %v2866
        %3165 = vst [vmem:[#allocation2 + $0xf0] sm:$0xff] %v2867
        %3166 = vst [vmem:[#allocation2 + $0xf8] sm:$0xff] %v2868
        %3167 = vst [vmem:[#allocation2 + $0x100] sm:$0xff] %v2869
        %3168 = vst [vmem:[#allocation2 + $0x108] sm:$0xff] %v2870
        %3169 = vst [vmem:[#allocation2 + $0x110] sm:$0xff] %v2871
        %3170 = vst [vmem:[#allocation2 + $0x118] sm:$0xff] %v2872
        %3171 = vst [vmem:[#allocation2 + $0x120] sm:$0xff] %v2873
        %3172 = vst [vmem:[#allocation2 + $0x128] sm:$0xff] %v2874
        %3173 = vst [vmem:[#allocation2 + $0x130] sm:$0xff] %v2875
        %3174 = vst [vmem:[#allocation2 + $0x138] sm:$0xff] %v2876
        %3175 = vst [vmem:[#allocation2 + $0x140] sm:$0xff] %v2877
        %3176 = vst [vmem:[#allocation2 + $0x148] sm:$0xff] %v2878
        %3177 = vst [vmem:[#allocation2 + $0x150] sm:$0xff] %v2879
        %3178 = vst [vmem:[#allocation2 + $0x158] sm:$0xff] %v2880
        %3179 = vst [vmem:[#allocation2 + $0x160] sm:$0xff] %v2881
        %3180 = vst [vmem:[#allocation2 + $0x168] sm:$0xff] %v2882
        %3181 = vst [vmem:[#allocation2 + $0x170] sm:$0xff] %v2883
        %3182 = vst [vmem:[#allocation2 + $0x178] sm:$0xff] %v2884
        %3183 = vst [vmem:[#allocation2 + $0x180] sm:$0xff] %v2885
        %3184 = vst.msk [vmem:[#allocation2 + $0x188] sm:$0xff] %vm3158, %v2646
        %3185 = vst [vmem:[#allocation2 + $0x190] sm:$0xff] %v3130
        %3186 = vst [vmem:[#allocation2 + $0x198] sm:$0xff] %v2886
        %3187 = vst [vmem:[#allocation2 + $0x1a0] sm:$0xff] %v2887
        %3188 = vst [vmem:[#allocation2 + $0x1a8] sm:$0xff] %v2888
        %3189 = vst [vmem:[#allocation2 + $0x1b0] sm:$0xff] %v2889
        %3190 = vst [vmem:[#allocation2 + $0x1b8] sm:$0xff] %v2890
        %3191 = vst [vmem:[#allocation2 + $0x1c0] sm:$0xff] %v2891
        %3192 = vst [vmem:[#allocation2 + $0x1c8] sm:$0xff] %v2892
        %3193 = vst [vmem:[#allocation2 + $0x1d0] sm:$0xff] %v2893
        %3194 = vst [vmem:[#allocation2 + $0x1d8] sm:$0xff] %v2894
        %3195 = vst [vmem:[#allocation2 + $0x1e0] sm:$0xff] %v2895
        %3196 = vst [vmem:[#allocation2 + $0x1e8] sm:$0xff] %v2896
        %3197 = vst [vmem:[#allocation2 + $0x1f0] sm:$0xff] %v2897
        %3198 = vst [vmem:[#allocation2 + $0x1f8] sm:$0xff] %v2898
        %3199 = vst [vmem:[#allocation2 + $0x200] sm:$0xff] %v2899
        %3200 = vst [vmem:[#allocation2 + $0x208] sm:$0xff] %v2900
        %3201 = vst [vmem:[#allocation2 + $0x210] sm:$0xff] %v2901
        %3202 = vst [vmem:[#allocation2 + $0x218] sm:$0xff] %v2902
        %3203 = vst [vmem:[#allocation2 + $0x220] sm:$0xff] %v2903
        %3204 = vst [vmem:[#allocation2 + $0x228] sm:$0xff] %v2904
        %3205 = vst [vmem:[#allocation2 + $0x230] sm:$0xff] %v2905
        %3206 = vst [vmem:[#allocation2 + $0x238] sm:$0xff] %v2906
        %3207 = vst [vmem:[#allocation2 + $0x240] sm:$0xff] %v2907
        %3208 = vst [vmem:[#allocation2 + $0x248] sm:$0xff] %v2908
        %3209 = vst.msk [vmem:[#allocation2 + $0x250] sm:$0xff] %vm3158, %v2694
        %3210 = vst [vmem:[#allocation2 + $0x258] sm:$0xff] %v3131
        %3211 = vst [vmem:[#allocation2 + $0x260] sm:$0xff] %v2909
        %3212 = vst [vmem:[#allocation2 + $0x268] sm:$0xff] %v2910
        %3213 = vst [vmem:[#allocation2 + $0x270] sm:$0xff] %v2911
        %3214 = vst [vmem:[#allocation2 + $0x278] sm:$0xff] %v2912
        %3215 = vst [vmem:[#allocation2 + $0x280] sm:$0xff] %v2913
        %3216 = vst [vmem:[#allocation2 + $0x288] sm:$0xff] %v2914
        %3217 = vst [vmem:[#allocation2 + $0x290] sm:$0xff] %v2915
        %3218 = vst [vmem:[#allocation2 + $0x298] sm:$0xff] %v2916
        %3219 = vst [vmem:[#allocation2 + $0x2a0] sm:$0xff] %v2917
        %3220 = vst [vmem:[#allocation2 + $0x2a8] sm:$0xff] %v2918
        %3221 = vst [vmem:[#allocation2 + $0x2b0] sm:$0xff] %v2919
        %3222 = vst [vmem:[#allocation2 + $0x2b8] sm:$0xff] %v2920
        %3223 = vst [vmem:[#allocation2 + $0x2c0] sm:$0xff] %v2921
        %3224 = vst [vmem:[#allocation2 + $0x2c8] sm:$0xff] %v2922
        %3225 = vst [vmem:[#allocation2 + $0x2d0] sm:$0xff] %v2923
        %3226 = vst [vmem:[#allocation2 + $0x2d8] sm:$0xff] %v2924
        %3227 = vst [vmem:[#allocation2 + $0x2e0] sm:$0xff] %v2925
        %3228 = vst [vmem:[#allocation2 + $0x2e8] sm:$0xff] %v2926
        %3229 = vst [vmem:[#allocation2 + $0x2f0] sm:$0xff] %v2927
        %3230 = vst [vmem:[#allocation2 + $0x2f8] sm:$0xff] %v2928
        %3231 = vst [vmem:[#allocation2 + $0x300] sm:$0xff] %v2929
        %3232 = vst [vmem:[#allocation2 + $0x308] sm:$0xff] %v2930
        %3233 = vst [vmem:[#allocation2 + $0x310] sm:$0xff] %v2931
        %3234 = vst.msk [vmem:[#allocation2 + $0x318] sm:$0xff] %vm3158, %v2742
        %3235 = vst [vmem:[#allocation2 + $0x320] sm:$0xff] %v3132
        %3236 = vst [vmem:[#allocation2 + $0x328] sm:$0xff] %v2932
        %3237 = vst [vmem:[#allocation2 + $0x330] sm:$0xff] %v2933
        %3238 = vst [vmem:[#allocation2 + $0x338] sm:$0xff] %v2934
        %3239 = vst [vmem:[#allocation2 + $0x340] sm:$0xff] %v2935
        %3240 = vst [vmem:[#allocation2 + $0x348] sm:$0xff] %v2936
        %3241 = vst [vmem:[#allocation2 + $0x350] sm:$0xff] %v2937
        %3242 = vst [vmem:[#allocation2 + $0x358] sm:$0xff] %v2938
        %3243 = vst [vmem:[#allocation2 + $0x360] sm:$0xff] %v2939
        %3244 = vst [vmem:[#allocation2 + $0x368] sm:$0xff] %v2940
        %3245 = vst [vmem:[#allocation2 + $0x370] sm:$0xff] %v2941
        %3246 = vst [vmem:[#allocation2 + $0x378] sm:$0xff] %v2942
        %3247 = vst [vmem:[#allocation2 + $0x380] sm:$0xff] %v2943
        %3248 = vst [vmem:[#allocation2 + $0x388] sm:$0xff] %v2944
        %3249 = vst [vmem:[#allocation2 + $0x390] sm:$0xff] %v2945
        %3250 = vst [vmem:[#allocation2 + $0x398] sm:$0xff] %v2946
        %3251 = vst [vmem:[#allocation2 + $0x3a0] sm:$0xff] %v2947
        %3252 = vst [vmem:[#allocation2 + $0x3a8] sm:$0xff] %v2948
        %3253 = vst [vmem:[#allocation2 + $0x3b0] sm:$0xff] %v2949
        %3254 = vst [vmem:[#allocation2 + $0x3b8] sm:$0xff] %v2950
        %3255 = vst [vmem:[#allocation2 + $0x3c0] sm:$0xff] %v2951
        %3256 = vst [vmem:[#allocation2 + $0x3c8] sm:$0xff] %v2952
        %3257 = vst [vmem:[#allocation2 + $0x3d0] sm:$0xff] %v2953
        %3258 = vst [vmem:[#allocation2 + $0x3d8] sm:$0xff] %v2954
        %3259 = vst.msk [vmem:[#allocation2 + $0x3e0] sm:$0xff] %vm3158, %v2790
        %3260 = vst [vmem:[#allocation2 + $0x3e8] sm:$0xff] %v3133
        %3261 = vst [vmem:[#allocation2 + $0x3f0] sm:$0xff] %v2955
        %3262 = vst [vmem:[#allocation2 + $0x3f8] sm:$0xff] %v2956
        %3263 = vst [vmem:[#allocation2 + $0x400] sm:$0xff] %v2957
        %3264 = vst [vmem:[#allocation2 + $0x408] sm:$0xff] %v2958
        %3265 = vst [vmem:[#allocation2 + $0x410] sm:$0xff] %v2959
        %3266 = vst [vmem:[#allocation2 + $0x418] sm:$0xff] %v2960
        %3267 = vst [vmem:[#allocation2 + $0x420] sm:$0xff] %v2961
        %3268 = vst [vmem:[#allocation2 + $0x428] sm:$0xff] %v2962
        %3269 = vst [vmem:[#allocation2 + $0x430] sm:$0xff] %v2963
        %3270 = vst [vmem:[#allocation2 + $0x438] sm:$0xff] %v2964
        %3271 = vst [vmem:[#allocation2 + $0x440] sm:$0xff] %v2965
        %3272 = vst [vmem:[#allocation2 + $0x448] sm:$0xff] %v2966
        %3273 = vst [vmem:[#allocation2 + $0x450] sm:$0xff] %v2967
        %3274 = vst [vmem:[#allocation2 + $0x458] sm:$0xff] %v2968
        %3275 = vst [vmem:[#allocation2 + $0x460] sm:$0xff] %v2969
        %3276 = vst [vmem:[#allocation2 + $0x468] sm:$0xff] %v2970
        %3277 = vst [vmem:[#allocation2 + $0x470] sm:$0xff] %v2971
        %3278 = vst [vmem:[#allocation2 + $0x478] sm:$0xff] %v2972
        %3279 = vst [vmem:[#allocation2 + $0x480] sm:$0xff] %v2973
        %3280 = vst [vmem:[#allocation2 + $0x488] sm:$0xff] %v2974
        %3281 = vst [vmem:[#allocation2 + $0x490] sm:$0xff] %v2975
        %3282 = vst [vmem:[#allocation2 + $0x498] sm:$0xff] %v2976
        %3283 = vst [vmem:[#allocation2 + $0x4a0] sm:$0xff] %v2977
        %3284 = vst.msk [vmem:[#allocation2 + $0x4a8] sm:$0xff] %vm3158, %v2838
        %3285 = vst [vmem:[#allocation2 + $0x4b0] sm:$0xff] %v2257
        %3286 = vst [vmem:[#allocation2 + $0x4b8] sm:$0xff] %v2258
        %3287 = vst [vmem:[#allocation2 + $0x4c0] sm:$0xff] %v2259
        %3288 = vst [vmem:[#allocation2 + $0x4c8] sm:$0xff] %v2260
        %3289 = vst [vmem:[#allocation2 + $0x4d0] sm:$0xff] %v2261
        %3290 = vst [vmem:[#allocation2 + $0x4d8] sm:$0xff] %v2262
        %3291 = vst [vmem:[#allocation2 + $0x4e0] sm:$0xff] %v2263
        %3292 = vst [vmem:[#allocation2 + $0x4e8] sm:$0xff] %v2264
        %3293 = vst [vmem:[#allocation2 + $0x4f0] sm:$0xff] %v2265
        %3294 = vst [vmem:[#allocation2 + $0x4f8] sm:$0xff] %v2266
        %3295 = vst [vmem:[#allocation2 + $0x500] sm:$0xff] %v2267
        %3296 = vst [vmem:[#allocation2 + $0x508] sm:$0xff] %v2268
        %3297 = vst [vmem:[#allocation2 + $0x510] sm:$0xff] %v2269
        %3298 = vst [vmem:[#allocation2 + $0x518] sm:$0xff] %v2270
        %3299 = vst [vmem:[#allocation2 + $0x520] sm:$0xff] %v2271
        %3300 = vst [vmem:[#allocation2 + $0x528] sm:$0xff] %v2272
        %3301 = vst [vmem:[#allocation2 + $0x530] sm:$0xff] %v2273
        %3302 = vst [vmem:[#allocation2 + $0x538] sm:$0xff] %v2274
        %3303 = vst [vmem:[#allocation2 + $0x540] sm:$0xff] %v2275
        %3304 = vst [vmem:[#allocation2 + $0x548] sm:$0xff] %v2276
        %3305 = vst [vmem:[#allocation2 + $0x550] sm:$0xff] %v2277
        %3306 = vst [vmem:[#allocation2 + $0x558] sm:$0xff] %v2278
        %3307 = vst [vmem:[#allocation2 + $0x560] sm:$0xff] %v2279
        %3308 = vst [vmem:[#allocation2 + $0x568] sm:$0xff] %v2280
        %3309 = vst.msk [vmem:[#allocation2 + $0x570] sm:$0xff] %vm3158, %v2281
        %3310 = vst [vmem:[#allocation2 + $0x578] sm:$0xff] %v2282
        %3311 = vst [vmem:[#allocation2 + $0x580] sm:$0xff] %v2283
        %3312 = vst [vmem:[#allocation2 + $0x588] sm:$0xff] %v2284
        %3313 = vst [vmem:[#allocation2 + $0x590] sm:$0xff] %v2285
        %3314 = vst [vmem:[#allocation2 + $0x598] sm:$0xff] %v2286
        %3315 = vst [vmem:[#allocation2 + $0x5a0] sm:$0xff] %v2287
        %3316 = vst [vmem:[#allocation2 + $0x5a8] sm:$0xff] %v2288
        %3317 = vst [vmem:[#allocation2 + $0x5b0] sm:$0xff] %v2289
        %3318 = vst [vmem:[#allocation2 + $0x5b8] sm:$0xff] %v2290
        %3319 = vst [vmem:[#allocation2 + $0x5c0] sm:$0xff] %v2291
        %3320 = vst [vmem:[#allocation2 + $0x5c8] sm:$0xff] %v2292
        %3321 = vst [vmem:[#allocation2 + $0x5d0] sm:$0xff] %v2293
        %3322 = vst [vmem:[#allocation2 + $0x5d8] sm:$0xff] %v2294
        %3323 = vst [vmem:[#allocation2 + $0x5e0] sm:$0xff] %v2295
        %3324 = vst [vmem:[#allocation2 + $0x5e8] sm:$0xff] %v2296
        %3325 = vst [vmem:[#allocation2 + $0x5f0] sm:$0xff] %v2297
        %3326 = vst [vmem:[#allocation2 + $0x5f8] sm:$0xff] %v2298
        %3327 = vst [vmem:[#allocation2 + $0x600] sm:$0xff] %v2299
        %3328 = vst [vmem:[#allocation2 + $0x608] sm:$0xff] %v2300
        %3329 = vst [vmem:[#allocation2 + $0x610] sm:$0xff] %v2301
        %3330 = vst [vmem:[#allocation2 + $0x618] sm:$0xff] %v2302
        %3331 = vst [vmem:[#allocation2 + $0x620] sm:$0xff] %v2303
        %3332 = vst [vmem:[#allocation2 + $0x628] sm:$0xff] %v2304
        %3333 = vst [vmem:[#allocation2 + $0x630] sm:$0xff] %v2305
        %3334 = vst.msk [vmem:[#allocation2 + $0x638] sm:$0xff] %vm3158, %v2306
        %3335 = vst [vmem:[#allocation2 + $0x640] sm:$0xff] %v2307
        %3336 = vst [vmem:[#allocation2 + $0x648] sm:$0xff] %v2308
        %3337 = vst [vmem:[#allocation2 + $0x650] sm:$0xff] %v2309
        %3338 = vst [vmem:[#allocation2 + $0x658] sm:$0xff] %v2310
        %3339 = vst [vmem:[#allocation2 + $0x660] sm:$0xff] %v2311
        %3340 = vst [vmem:[#allocation2 + $0x668] sm:$0xff] %v2312
        %3341 = vst [vmem:[#allocation2 + $0x670] sm:$0xff] %v2313
        %3342 = vst [vmem:[#allocation2 + $0x678] sm:$0xff] %v2314
        %3343 = vst [vmem:[#allocation2 + $0x680] sm:$0xff] %v2315
        %3344 = vst [vmem:[#allocation2 + $0x688] sm:$0xff] %v2316
        %3345 = vst [vmem:[#allocation2 + $0x690] sm:$0xff] %v2317
        %3346 = vst [vmem:[#allocation2 + $0x698] sm:$0xff] %v2318
        %3347 = vst [vmem:[#allocation2 + $0x6a0] sm:$0xff] %v2319
        %3348 = vst [vmem:[#allocation2 + $0x6a8] sm:$0xff] %v2320
        %3349 = vst [vmem:[#allocation2 + $0x6b0] sm:$0xff] %v2321
        %3350 = vst [vmem:[#allocation2 + $0x6b8] sm:$0xff] %v2322
        %3351 = vst [vmem:[#allocation2 + $0x6c0] sm:$0xff] %v2323
        %3352 = vst [vmem:[#allocation2 + $0x6c8] sm:$0xff] %v2324
        %3353 = vst [vmem:[#allocation2 + $0x6d0] sm:$0xff] %v2325
        %3354 = vst [vmem:[#allocation2 + $0x6d8] sm:$0xff] %v2326
        %3355 = vst [vmem:[#allocation2 + $0x6e0] sm:$0xff] %v2327
        %3356 = vst [vmem:[#allocation2 + $0x6e8] sm:$0xff] %v2328
        %3357 = vst [vmem:[#allocation2 + $0x6f0] sm:$0xff] %v2329
        %3358 = vst [vmem:[#allocation2 + $0x6f8] sm:$0xff] %v2330
        %3359 = vst.msk [vmem:[#allocation2 + $0x700] sm:$0xff] %vm3158, %v2331
        %3360 = vst [vmem:[#allocation2 + $0x708] sm:$0xff] %v2332
        %3361 = vst [vmem:[#allocation2 + $0x710] sm:$0xff] %v2333
        %3362 = vst [vmem:[#allocation2 + $0x718] sm:$0xff] %v2334
        %3363 = vst [vmem:[#allocation2 + $0x720] sm:$0xff] %v2335
        %3364 = vst [vmem:[#allocation2 + $0x728] sm:$0xff] %v2336
        %3365 = vst [vmem:[#allocation2 + $0x730] sm:$0xff] %v2337
        %3366 = vst [vmem:[#allocation2 + $0x738] sm:$0xff] %v2338
        %3367 = vst [vmem:[#allocation2 + $0x740] sm:$0xff] %v2339
        %3368 = vst [vmem:[#allocation2 + $0x748] sm:$0xff] %v2340
        %3369 = vst [vmem:[#allocation2 + $0x750] sm:$0xff] %v2341
        %3370 = vst [vmem:[#allocation2 + $0x758] sm:$0xff] %v2342
        %3371 = vst [vmem:[#allocation2 + $0x760] sm:$0xff] %v2343
        %3372 = vst [vmem:[#allocation2 + $0x768] sm:$0xff] %v2344
        %3373 = vst [vmem:[#allocation2 + $0x770] sm:$0xff] %v2345
        %3374 = vst [vmem:[#allocation2 + $0x778] sm:$0xff] %v2346
        %3375 = vst [vmem:[#allocation2 + $0x780] sm:$0xff] %v2347
        %3376 = vst [vmem:[#allocation2 + $0x788] sm:$0xff] %v2348
        %3377 = vst [vmem:[#allocation2 + $0x790] sm:$0xff] %v2349
        %3378 = vst [vmem:[#allocation2 + $0x798] sm:$0xff] %v2350
        %3379 = vst [vmem:[#allocation2 + $0x7a0] sm:$0xff] %v2351
        %3380 = vst [vmem:[#allocation2 + $0x7a8] sm:$0xff] %v2352
        %3381 = vst [vmem:[#allocation2 + $0x7b0] sm:$0xff] %v2353
        %3382 = vst [vmem:[#allocation2 + $0x7b8] sm:$0xff] %v2354
        %3383 = vst [vmem:[#allocation2 + $0x7c0] sm:$0xff] %v2355
        %3384 = vst.msk [vmem:[#allocation2 + $0x7c8] sm:$0xff] %vm3158, %v2356
        %3385 = vst [vmem:[#allocation2 + $0x7d0] sm:$0xff] %v2357
        %3386 = vst [vmem:[#allocation2 + $0x7d8] sm:$0xff] %v2358
        %3387 = vst [vmem:[#allocation2 + $0x7e0] sm:$0xff] %v2359
        %3388 = vst [vmem:[#allocation2 + $0x7e8] sm:$0xff] %v2360
        %3389 = vst [vmem:[#allocation2 + $0x7f0] sm:$0xff] %v2361
        %3390 = vst [vmem:[#allocation2 + $0x7f8] sm:$0xff] %v2362
        %3391 = vst [vmem:[#allocation2 + $0x800] sm:$0xff] %v2363
        %3392 = vst [vmem:[#allocation2 + $0x808] sm:$0xff] %v2364
        %3393 = vst [vmem:[#allocation2 + $0x810] sm:$0xff] %v2365
        %3394 = vst [vmem:[#allocation2 + $0x818] sm:$0xff] %v2366
        %3395 = vst [vmem:[#allocation2 + $0x820] sm:$0xff] %v2367
        %3396 = vst [vmem:[#allocation2 + $0x828] sm:$0xff] %v2368
        %3397 = vst [vmem:[#allocation2 + $0x830] sm:$0xff] %v2369
        %3398 = vst [vmem:[#allocation2 + $0x838] sm:$0xff] %v2370
        %3399 = vst [vmem:[#allocation2 + $0x840] sm:$0xff] %v2371
        %3400 = vst [vmem:[#allocation2 + $0x848] sm:$0xff] %v2372
        %3401 = vst [vmem:[#allocation2 + $0x850] sm:$0xff] %v2373
        %3402 = vst [vmem:[#allocation2 + $0x858] sm:$0xff] %v2374
        %3403 = vst [vmem:[#allocation2 + $0x860] sm:$0xff] %v2375
        %3404 = vst [vmem:[#allocation2 + $0x868] sm:$0xff] %v2376
        %3405 = vst [vmem:[#allocation2 + $0x870] sm:$0xff] %v2377
        %3406 = vst [vmem:[#allocation2 + $0x878] sm:$0xff] %v2378
        %3407 = vst [vmem:[#allocation2 + $0x880] sm:$0xff] %v2379
        %3408 = vst [vmem:[#allocation2 + $0x888] sm:$0xff] %v2380
        %3409 = vst.msk [vmem:[#allocation2 + $0x890] sm:$0xff] %vm3158, %v2381
        %3410 = vst [vmem:[#allocation2 + $0x898] sm:$0xff] %v2382
        %3411 = vst [vmem:[#allocation2 + $0x8a0] sm:$0xff] %v2383
        %3412 = vst [vmem:[#allocation2 + $0x8a8] sm:$0xff] %v2384
        %3413 = vst [vmem:[#allocation2 + $0x8b0] sm:$0xff] %v2385
        %3414 = vst [vmem:[#allocation2 + $0x8b8] sm:$0xff] %v2386
        %3415 = vst [vmem:[#allocation2 + $0x8c0] sm:$0xff] %v2387
        %3416 = vst [vmem:[#allocation2 + $0x8c8] sm:$0xff] %v2388
        %3417 = vst [vmem:[#allocation2 + $0x8d0] sm:$0xff] %v2389
        %3418 = vst [vmem:[#allocation2 + $0x8d8] sm:$0xff] %v2390
        %3419 = vst [vmem:[#allocation2 + $0x8e0] sm:$0xff] %v2391
        %3420 = vst [vmem:[#allocation2 + $0x8e8] sm:$0xff] %v2392
        %3421 = vst [vmem:[#allocation2 + $0x8f0] sm:$0xff] %v2393
        %3422 = vst [vmem:[#allocation2 + $0x8f8] sm:$0xff] %v2394
        %3423 = vst [vmem:[#allocation2 + $0x900] sm:$0xff] %v2395
        %3424 = vst [vmem:[#allocation2 + $0x908] sm:$0xff] %v2396
        %3425 = vst [vmem:[#allocation2 + $0x910] sm:$0xff] %v2397
        %3426 = vst [vmem:[#allocation2 + $0x918] sm:$0xff] %v2398
        %3427 = vst [vmem:[#allocation2 + $0x920] sm:$0xff] %v2399
        %3428 = vst [vmem:[#allocation2 + $0x928] sm:$0xff] %v2400
        %3429 = vst [vmem:[#allocation2 + $0x930] sm:$0xff] %v2401
        %3430 = vst [vmem:[#allocation2 + $0x938] sm:$0xff] %v2402
        %3431 = vst [vmem:[#allocation2 + $0x940] sm:$0xff] %v2403
        %3432 = vst [vmem:[#allocation2 + $0x948] sm:$0xff] %v2404
        %3433 = vst [vmem:[#allocation2 + $0x950] sm:$0xff] %v2405
        %3434 = vst.msk [vmem:[#allocation2 + $0x958] sm:$0xff] %vm3158, %v2406
        %3441 = vrot.lane.b32.xlu0 %v2257, 16
        %v3442 = vpop.permute.xlu0 %3441
        %3443 = vrot.lane.b32.xlu0 %v2258, 16
        %v3444 = vpop.permute.xlu0 %3443
        %3445 = vrot.lane.b32.xlu0 %v2259, 16
        %v3446 = vpop.permute.xlu0 %3445
        %3447 = vrot.lane.b32.xlu0 %v2260, 16
        %v3448 = vpop.permute.xlu0 %3447
        %3449 = vrot.lane.b32.xlu0 %v2261, 16
        %v3450 = vpop.permute.xlu0 %3449
        %3451 = vrot.lane.b32.xlu0 %v2262, 16
        %v3452 = vpop.permute.xlu0 %3451
        %3453 = vrot.lane.b32.xlu0 %v2263, 16
        %v3454 = vpop.permute.xlu0 %3453
        %3455 = vrot.lane.b32.xlu0 %v2264, 16
        %v3456 = vpop.permute.xlu0 %3455
        %3457 = vrot.lane.b32.xlu0 %v2265, 16
        %v3458 = vpop.permute.xlu0 %3457
        %3459 = vrot.lane.b32.xlu0 %v2266, 16
        %v3460 = vpop.permute.xlu0 %3459
        %3461 = vrot.lane.b32.xlu0 %v2267, 16
        %v3462 = vpop.permute.xlu0 %3461
        %3463 = vrot.lane.b32.xlu0 %v2268, 16
        %v3464 = vpop.permute.xlu0 %3463
        %3465 = vrot.lane.b32.xlu0 %v2269, 16
        %v3466 = vpop.permute.xlu0 %3465
        %3467 = vrot.lane.b32.xlu0 %v2270, 16
        %v3468 = vpop.permute.xlu0 %3467
        %3469 = vrot.lane.b32.xlu0 %v2271, 16
        %v3470 = vpop.permute.xlu0 %3469
        %3471 = vrot.lane.b32.xlu0 %v2272, 16
        %v3472 = vpop.permute.xlu0 %3471
        %3473 = vrot.lane.b32.xlu0 %v2273, 16
        %v3474 = vpop.permute.xlu0 %3473
        %3475 = vrot.lane.b32.xlu0 %v2274, 16
        %v3476 = vpop.permute.xlu0 %3475
        %3477 = vrot.lane.b32.xlu0 %v2275, 16
        %v3478 = vpop.permute.xlu0 %3477
        %3479 = vrot.lane.b32.xlu0 %v2276, 16
        %v3480 = vpop.permute.xlu0 %3479
        %3481 = vrot.lane.b32.xlu0 %v2277, 16
        %v3482 = vpop.permute.xlu0 %3481
        %3483 = vrot.lane.b32.xlu0 %v2278, 16
        %v3484 = vpop.permute.xlu0 %3483
        %3485 = vrot.lane.b32.xlu0 %v2279, 16
        %v3486 = vpop.permute.xlu0 %3485
        %3487 = vrot.lane.b32.xlu0 %v2280, 16
        %v3488 = vpop.permute.xlu0 %3487
        %3489 = vrot.lane.b32.xlu0 %v2281, 16
        %v3490 = vpop.permute.xlu0 %3489
        %3491 = vrot.lane.b32.xlu0 %v2282, 16
        %v3492 = vpop.permute.xlu0 %3491
        %3493 = vrot.lane.b32.xlu0 %v2283, 16
        %v3494 = vpop.permute.xlu0 %3493
        %3495 = vrot.lane.b32.xlu0 %v2284, 16
        %v3496 = vpop.permute.xlu0 %3495
        %3497 = vrot.lane.b32.xlu0 %v2285, 16
        %v3498 = vpop.permute.xlu0 %3497
        %3499 = vrot.lane.b32.xlu0 %v2286, 16
        %v3500 = vpop.permute.xlu0 %3499
        %3501 = vrot.lane.b32.xlu0 %v2287, 16
        %v3502 = vpop.permute.xlu0 %3501
        %3503 = vrot.lane.b32.xlu0 %v2288, 16
        %v3504 = vpop.permute.xlu0 %3503
        %3505 = vrot.lane.b32.xlu0 %v2289, 16
        %v3506 = vpop.permute.xlu0 %3505
        %3507 = vrot.lane.b32.xlu0 %v2290, 16
        %v3508 = vpop.permute.xlu0 %3507
        %3509 = vrot.lane.b32.xlu0 %v2291, 16
        %v3510 = vpop.permute.xlu0 %3509
        %3511 = vrot.lane.b32.xlu0 %v2292, 16
        %v3512 = vpop.permute.xlu0 %3511
        %3513 = vrot.lane.b32.xlu0 %v2293, 16
        %v3514 = vpop.permute.xlu0 %3513
        %3515 = vrot.lane.b32.xlu0 %v2294, 16
        %v3516 = vpop.permute.xlu0 %3515
        %3517 = vrot.lane.b32.xlu0 %v2295, 16
        %v3518 = vpop.permute.xlu0 %3517
        %3519 = vrot.lane.b32.xlu0 %v2296, 16
        %v3520 = vpop.permute.xlu0 %3519
        %3521 = vrot.lane.b32.xlu0 %v2297, 16
        %v3522 = vpop.permute.xlu0 %3521
        %3523 = vrot.lane.b32.xlu0 %v2298, 16
        %v3524 = vpop.permute.xlu0 %3523
        %3525 = vrot.lane.b32.xlu0 %v2299, 16
        %v3526 = vpop.permute.xlu0 %3525
        %3527 = vrot.lane.b32.xlu0 %v2300, 16
        %v3528 = vpop.permute.xlu0 %3527
        %3529 = vrot.lane.b32.xlu0 %v2301, 16
        %v3530 = vpop.permute.xlu0 %3529
        %3531 = vrot.lane.b32.xlu0 %v2302, 16
        %v3532 = vpop.permute.xlu0 %3531
        %3533 = vrot.lane.b32.xlu0 %v2303, 16
        %v3534 = vpop.permute.xlu0 %3533
        %3535 = vrot.lane.b32.xlu0 %v2304, 16
        %v3536 = vpop.permute.xlu0 %3535
        %3537 = vrot.lane.b32.xlu0 %v2305, 16
        %v3538 = vpop.permute.xlu0 %3537
        %3539 = vrot.lane.b32.xlu0 %v2306, 16
        %v3540 = vpop.permute.xlu0 %3539
        %3541 = vrot.lane.b32.xlu0 %v2307, 16
        %v3542 = vpop.permute.xlu0 %3541
        %3543 = vrot.lane.b32.xlu0 %v2308, 16
        %v3544 = vpop.permute.xlu0 %3543
        %3545 = vrot.lane.b32.xlu0 %v2309, 16
        %v3546 = vpop.permute.xlu0 %3545
        %3547 = vrot.lane.b32.xlu0 %v2310, 16
        %v3548 = vpop.permute.xlu0 %3547
        %3549 = vrot.lane.b32.xlu0 %v2311, 16
        %v3550 = vpop.permute.xlu0 %3549
        %3551 = vrot.lane.b32.xlu0 %v2312, 16
        %v3552 = vpop.permute.xlu0 %3551
        %3553 = vrot.lane.b32.xlu0 %v2313, 16
        %v3554 = vpop.permute.xlu0 %3553
        %3555 = vrot.lane.b32.xlu0 %v2314, 16
        %v3556 = vpop.permute.xlu0 %3555
        %3557 = vrot.lane.b32.xlu0 %v2315, 16
        %v3558 = vpop.permute.xlu0 %3557
        %3559 = vrot.lane.b32.xlu0 %v2316, 16
        %v3560 = vpop.permute.xlu0 %3559
        %3561 = vrot.lane.b32.xlu0 %v2317, 16
        %v3562 = vpop.permute.xlu0 %3561
        %3563 = vrot.lane.b32.xlu0 %v2318, 16
        %v3564 = vpop.permute.xlu0 %3563
        %3565 = vrot.lane.b32.xlu0 %v2319, 16
        %v3566 = vpop.permute.xlu0 %3565
        %3567 = vrot.lane.b32.xlu0 %v2320, 16
        %v3568 = vpop.permute.xlu0 %3567
        %3569 = vrot.lane.b32.xlu0 %v2321, 16
        %v3570 = vpop.permute.xlu0 %3569
        %3571 = vrot.lane.b32.xlu0 %v2322, 16
        %v3572 = vpop.permute.xlu0 %3571
        %3573 = vrot.lane.b32.xlu0 %v2323, 16
        %v3574 = vpop.permute.xlu0 %3573
        %3575 = vrot.lane.b32.xlu0 %v2324, 16
        %v3576 = vpop.permute.xlu0 %3575
        %3577 = vrot.lane.b32.xlu0 %v2325, 16
        %v3578 = vpop.permute.xlu0 %3577
        %3579 = vrot.lane.b32.xlu0 %v2326, 16
        %v3580 = vpop.permute.xlu0 %3579
        %3581 = vrot.lane.b32.xlu0 %v2327, 16
        %v3582 = vpop.permute.xlu0 %3581
        %3583 = vrot.lane.b32.xlu0 %v2328, 16
        %v3584 = vpop.permute.xlu0 %3583
        %3585 = vrot.lane.b32.xlu0 %v2329, 16
        %v3586 = vpop.permute.xlu0 %3585
        %3587 = vrot.lane.b32.xlu0 %v2330, 16
        %v3588 = vpop.permute.xlu0 %3587
        %3589 = vrot.lane.b32.xlu0 %v2331, 16
        %v3590 = vpop.permute.xlu0 %3589
        %3591 = vrot.lane.b32.xlu0 %v2332, 16
        %v3592 = vpop.permute.xlu0 %3591
        %3593 = vrot.lane.b32.xlu0 %v2333, 16
        %v3594 = vpop.permute.xlu0 %3593
        %3595 = vrot.lane.b32.xlu0 %v2334, 16
        %v3596 = vpop.permute.xlu0 %3595
        %3597 = vrot.lane.b32.xlu0 %v2335, 16
        %v3598 = vpop.permute.xlu0 %3597
        %3599 = vrot.lane.b32.xlu0 %v2336, 16
        %v3600 = vpop.permute.xlu0 %3599
        %3601 = vrot.lane.b32.xlu0 %v2337, 16
        %v3602 = vpop.permute.xlu0 %3601
        %3603 = vrot.lane.b32.xlu0 %v2338, 16
        %v3604 = vpop.permute.xlu0 %3603
        %3605 = vrot.lane.b32.xlu0 %v2339, 16
        %v3606 = vpop.permute.xlu0 %3605
        %3607 = vrot.lane.b32.xlu0 %v2340, 16
        %v3608 = vpop.permute.xlu0 %3607
        %3609 = vrot.lane.b32.xlu0 %v2341, 16
        %v3610 = vpop.permute.xlu0 %3609
        %3611 = vrot.lane.b32.xlu0 %v2342, 16
        %v3612 = vpop.permute.xlu0 %3611
        %3613 = vrot.lane.b32.xlu0 %v2343, 16
        %v3614 = vpop.permute.xlu0 %3613
        %3615 = vrot.lane.b32.xlu0 %v2344, 16
        %v3616 = vpop.permute.xlu0 %3615
        %3617 = vrot.lane.b32.xlu0 %v2345, 16
        %v3618 = vpop.permute.xlu0 %3617
        %3619 = vrot.lane.b32.xlu0 %v2346, 16
        %v3620 = vpop.permute.xlu0 %3619
        %3621 = vrot.lane.b32.xlu0 %v2347, 16
        %v3622 = vpop.permute.xlu0 %3621
        %3623 = vrot.lane.b32.xlu0 %v2348, 16
        %v3624 = vpop.permute.xlu0 %3623
        %3625 = vrot.lane.b32.xlu0 %v2349, 16
        %v3626 = vpop.permute.xlu0 %3625
        %3627 = vrot.lane.b32.xlu0 %v2350, 16
        %v3628 = vpop.permute.xlu0 %3627
        %3629 = vrot.lane.b32.xlu0 %v2351, 16
        %v3630 = vpop.permute.xlu0 %3629
        %3631 = vrot.lane.b32.xlu0 %v2352, 16
        %v3632 = vpop.permute.xlu0 %3631
        %3633 = vrot.lane.b32.xlu0 %v2353, 16
        %v3634 = vpop.permute.xlu0 %3633
        %3635 = vrot.lane.b32.xlu0 %v2354, 16
        %v3636 = vpop.permute.xlu0 %3635
        %3637 = vrot.lane.b32.xlu0 %v2355, 16
        %v3638 = vpop.permute.xlu0 %3637
        %3639 = vrot.lane.b32.xlu0 %v2356, 16
        %v3640 = vpop.permute.xlu0 %3639
        %3641 = vrot.lane.b32.xlu0 %v2357, 16
        %v3642 = vpop.permute.xlu0 %3641
        %3643 = vrot.lane.b32.xlu0 %v2358, 16
        %v3644 = vpop.permute.xlu0 %3643
        %3645 = vrot.lane.b32.xlu0 %v2359, 16
        %v3646 = vpop.permute.xlu0 %3645
        %3647 = vrot.lane.b32.xlu0 %v2360, 16
        %v3648 = vpop.permute.xlu0 %3647
        %3649 = vrot.lane.b32.xlu0 %v2361, 16
        %v3650 = vpop.permute.xlu0 %3649
        %3651 = vrot.lane.b32.xlu0 %v2362, 16
        %v3652 = vpop.permute.xlu0 %3651
        %3653 = vrot.lane.b32.xlu0 %v2363, 16
        %v3654 = vpop.permute.xlu0 %3653
        %3655 = vrot.lane.b32.xlu0 %v2364, 16
        %v3656 = vpop.permute.xlu0 %3655
        %3657 = vrot.lane.b32.xlu0 %v2365, 16
        %v3658 = vpop.permute.xlu0 %3657
        %3659 = vrot.lane.b32.xlu0 %v2366, 16
        %v3660 = vpop.permute.xlu0 %3659
        %3661 = vrot.lane.b32.xlu0 %v2367, 16
        %v3662 = vpop.permute.xlu0 %3661
        %3663 = vrot.lane.b32.xlu0 %v2368, 16
        %v3664 = vpop.permute.xlu0 %3663
        %3665 = vrot.lane.b32.xlu0 %v2369, 16
        %v3666 = vpop.permute.xlu0 %3665
        %3667 = vrot.lane.b32.xlu0 %v2370, 16
        %v3668 = vpop.permute.xlu0 %3667
        %3669 = vrot.lane.b32.xlu0 %v2371, 16
        %v3670 = vpop.permute.xlu0 %3669
        %3671 = vrot.lane.b32.xlu0 %v2372, 16
        %v3672 = vpop.permute.xlu0 %3671
        %3673 = vrot.lane.b32.xlu0 %v2373, 16
        %v3674 = vpop.permute.xlu0 %3673
        %3675 = vrot.lane.b32.xlu0 %v2374, 16
        %v3676 = vpop.permute.xlu0 %3675
        %3677 = vrot.lane.b32.xlu0 %v2375, 16
        %v3678 = vpop.permute.xlu0 %3677
        %3679 = vrot.lane.b32.xlu0 %v2376, 16
        %v3680 = vpop.permute.xlu0 %3679
        %3681 = vrot.lane.b32.xlu0 %v2377, 16
        %v3682 = vpop.permute.xlu0 %3681
        %3683 = vrot.lane.b32.xlu0 %v2378, 16
        %v3684 = vpop.permute.xlu0 %3683
        %3685 = vrot.lane.b32.xlu0 %v2379, 16
        %v3686 = vpop.permute.xlu0 %3685
        %3687 = vrot.lane.b32.xlu0 %v2380, 16
        %v3688 = vpop.permute.xlu0 %3687
        %3689 = vrot.lane.b32.xlu0 %v2381, 16
        %v3690 = vpop.permute.xlu0 %3689
        %3691 = vrot.lane.b32.xlu0 %v2382, 16
        %v3692 = vpop.permute.xlu0 %3691
        %3693 = vrot.lane.b32.xlu0 %v2383, 16
        %v3694 = vpop.permute.xlu0 %3693
        %3695 = vrot.lane.b32.xlu0 %v2384, 16
        %v3696 = vpop.permute.xlu0 %3695
        %3697 = vrot.lane.b32.xlu0 %v2385, 16
        %v3698 = vpop.permute.xlu0 %3697
        %3699 = vrot.lane.b32.xlu0 %v2386, 16
        %v3700 = vpop.permute.xlu0 %3699
        %3701 = vrot.lane.b32.xlu0 %v2387, 16
        %v3702 = vpop.permute.xlu0 %3701
        %3703 = vrot.lane.b32.xlu0 %v2388, 16
        %v3704 = vpop.permute.xlu0 %3703
        %3705 = vrot.lane.b32.xlu0 %v2389, 16
        %v3706 = vpop.permute.xlu0 %3705
        %3707 = vrot.lane.b32.xlu0 %v2390, 16
        %v3708 = vpop.permute.xlu0 %3707
        %3709 = vrot.lane.b32.xlu0 %v2391, 16
        %v3710 = vpop.permute.xlu0 %3709
        %3711 = vrot.lane.b32.xlu0 %v2392, 16
        %v3712 = vpop.permute.xlu0 %3711
        %3713 = vrot.lane.b32.xlu0 %v2393, 16
        %v3714 = vpop.permute.xlu0 %3713
        %3715 = vrot.lane.b32.xlu0 %v2394, 16
        %v3716 = vpop.permute.xlu0 %3715
        %3717 = vrot.lane.b32.xlu0 %v2395, 16
        %v3718 = vpop.permute.xlu0 %3717
        %3719 = vrot.lane.b32.xlu0 %v2396, 16
        %v3720 = vpop.permute.xlu0 %3719
        %3721 = vrot.lane.b32.xlu0 %v2397, 16
        %v3722 = vpop.permute.xlu0 %3721
        %3723 = vrot.lane.b32.xlu0 %v2398, 16
        %v3724 = vpop.permute.xlu0 %3723
        %3725 = vrot.lane.b32.xlu0 %v2399, 16
        %v3726 = vpop.permute.xlu0 %3725
        %3727 = vrot.lane.b32.xlu0 %v2400, 16
        %v3728 = vpop.permute.xlu0 %3727
        %3729 = vrot.lane.b32.xlu0 %v2401, 16
        %v3730 = vpop.permute.xlu0 %3729
        %3731 = vrot.lane.b32.xlu0 %v2402, 16
        %v3732 = vpop.permute.xlu0 %3731
        %3733 = vrot.lane.b32.xlu0 %v2403, 16
        %v3734 = vpop.permute.xlu0 %3733
        %3735 = vrot.lane.b32.xlu0 %v2404, 16
        %v3736 = vpop.permute.xlu0 %3735
        %3737 = vrot.lane.b32.xlu0 %v2405, 16
        %v3738 = vpop.permute.xlu0 %3737
        %3739 = vrot.lane.b32.xlu0 %v2406, 16
        %v3740 = vpop.permute.xlu0 %3739
        %vm3741 = vcmask 130048
        %v3742 = vsel %vm3741, %v3442, %v3444
        %v3743 = vsel %vm3741, %v3444, %v3446
        %v3744 = vsel %vm3741, %v3446, %v3448
        %v3745 = vsel %vm3741, %v3448, %v3450
        %v3746 = vsel %vm3741, %v3450, %v3452
        %v3747 = vsel %vm3741, %v3452, %v3454
        %v3748 = vsel %vm3741, %v3454, %v3456
        %v3749 = vsel %vm3741, %v3456, %v3458
        %v3750 = vsel %vm3741, %v3458, %v3460
        %v3751 = vsel %vm3741, %v3460, %v3462
        %v3752 = vsel %vm3741, %v3462, %v3464
        %v3753 = vsel %vm3741, %v3464, %v3466
        %v3754 = vsel %vm3741, %v3466, %v3468
        %v3755 = vsel %vm3741, %v3468, %v3470
        %v3756 = vsel %vm3741, %v3470, %v3472
        %v3757 = vsel %vm3741, %v3472, %v3474
        %v3758 = vsel %vm3741, %v3474, %v3476
        %v3759 = vsel %vm3741, %v3476, %v3478
        %v3760 = vsel %vm3741, %v3478, %v3480
        %v3761 = vsel %vm3741, %v3480, %v3482
        %v3762 = vsel %vm3741, %v3482, %v3484
        %v3763 = vsel %vm3741, %v3484, %v3486
        %v3764 = vsel %vm3741, %v3486, %v3488
        %v3765 = vsel %vm3741, %v3488, %v3490
        %v3766 = vsel %vm3741, %v3492, %v3494
        %v3767 = vsel %vm3741, %v3494, %v3496
        %v3768 = vsel %vm3741, %v3496, %v3498
        %v3769 = vsel %vm3741, %v3498, %v3500
        %v3770 = vsel %vm3741, %v3500, %v3502
        %v3771 = vsel %vm3741, %v3502, %v3504
        %v3772 = vsel %vm3741, %v3504, %v3506
        %v3773 = vsel %vm3741, %v3506, %v3508
        %v3774 = vsel %vm3741, %v3508, %v3510
        %v3775 = vsel %vm3741, %v3510, %v3512
        %v3776 = vsel %vm3741, %v3512, %v3514
        %v3777 = vsel %vm3741, %v3514, %v3516
        %v3778 = vsel %vm3741, %v3516, %v3518
        %v3779 = vsel %vm3741, %v3518, %v3520
        %v3780 = vsel %vm3741, %v3520, %v3522
        %v3781 = vsel %vm3741, %v3522, %v3524
        %v3782 = vsel %vm3741, %v3524, %v3526
        %v3783 = vsel %vm3741, %v3526, %v3528
        %v3784 = vsel %vm3741, %v3528, %v3530
        %v3785 = vsel %vm3741, %v3530, %v3532
        %v3786 = vsel %vm3741, %v3532, %v3534
        %v3787 = vsel %vm3741, %v3534, %v3536
        %v3788 = vsel %vm3741, %v3536, %v3538
        %v3789 = vsel %vm3741, %v3538, %v3540
        %v3790 = vsel %vm3741, %v3542, %v3544
        %v3791 = vsel %vm3741, %v3544, %v3546
        %v3792 = vsel %vm3741, %v3546, %v3548
        %v3793 = vsel %vm3741, %v3548, %v3550
        %v3794 = vsel %vm3741, %v3550, %v3552
        %v3795 = vsel %vm3741, %v3552, %v3554
        %v3796 = vsel %vm3741, %v3554, %v3556
        %v3797 = vsel %vm3741, %v3556, %v3558
        %v3798 = vsel %vm3741, %v3558, %v3560
        %v3799 = vsel %vm3741, %v3560, %v3562
        %v3800 = vsel %vm3741, %v3562, %v3564
        %v3801 = vsel %vm3741, %v3564, %v3566
        %v3802 = vsel %vm3741, %v3566, %v3568
        %v3803 = vsel %vm3741, %v3568, %v3570
        %v3804 = vsel %vm3741, %v3570, %v3572
        %v3805 = vsel %vm3741, %v3572, %v3574
        %v3806 = vsel %vm3741, %v3574, %v3576
        %v3807 = vsel %vm3741, %v3576, %v3578
        %v3808 = vsel %vm3741, %v3578, %v3580
        %v3809 = vsel %vm3741, %v3580, %v3582
        %v3810 = vsel %vm3741, %v3582, %v3584
        %v3811 = vsel %vm3741, %v3584, %v3586
        %v3812 = vsel %vm3741, %v3586, %v3588
        %v3813 = vsel %vm3741, %v3588, %v3590
        %v3814 = vsel %vm3741, %v3592, %v3594
        %v3815 = vsel %vm3741, %v3594, %v3596
        %v3816 = vsel %vm3741, %v3596, %v3598
        %v3817 = vsel %vm3741, %v3598, %v3600
        %v3818 = vsel %vm3741, %v3600, %v3602
        %v3819 = vsel %vm3741, %v3602, %v3604
        %v3820 = vsel %vm3741, %v3604, %v3606
        %v3821 = vsel %vm3741, %v3606, %v3608
        %v3822 = vsel %vm3741, %v3608, %v3610
        %v3823 = vsel %vm3741, %v3610, %v3612
        %v3824 = vsel %vm3741, %v3612, %v3614
        %v3825 = vsel %vm3741, %v3614, %v3616
        %v3826 = vsel %vm3741, %v3616, %v3618
        %v3827 = vsel %vm3741, %v3618, %v3620
        %v3828 = vsel %vm3741, %v3620, %v3622
        %v3829 = vsel %vm3741, %v3622, %v3624
        %v3830 = vsel %vm3741, %v3624, %v3626
        %v3831 = vsel %vm3741, %v3626, %v3628
        %v3832 = vsel %vm3741, %v3628, %v3630
        %v3833 = vsel %vm3741, %v3630, %v3632
        %v3834 = vsel %vm3741, %v3632, %v3634
        %v3835 = vsel %vm3741, %v3634, %v3636
        %v3836 = vsel %vm3741, %v3636, %v3638
        %v3837 = vsel %vm3741, %v3638, %v3640
        %v3838 = vsel %vm3741, %v3642, %v3644
        %v3839 = vsel %vm3741, %v3644, %v3646
        %v3840 = vsel %vm3741, %v3646, %v3648
        %v3841 = vsel %vm3741, %v3648, %v3650
        %v3842 = vsel %vm3741, %v3650, %v3652
        %v3843 = vsel %vm3741, %v3652, %v3654
        %v3844 = vsel %vm3741, %v3654, %v3656
        %v3845 = vsel %vm3741, %v3656, %v3658
        %v3846 = vsel %vm3741, %v3658, %v3660
        %v3847 = vsel %vm3741, %v3660, %v3662
        %v3848 = vsel %vm3741, %v3662, %v3664
        %v3849 = vsel %vm3741, %v3664, %v3666
        %v3850 = vsel %vm3741, %v3666, %v3668
        %v3851 = vsel %vm3741, %v3668, %v3670
        %v3852 = vsel %vm3741, %v3670, %v3672
        %v3853 = vsel %vm3741, %v3672, %v3674
        %v3854 = vsel %vm3741, %v3674, %v3676
        %v3855 = vsel %vm3741, %v3676, %v3678
        %v3856 = vsel %vm3741, %v3678, %v3680
        %v3857 = vsel %vm3741, %v3680, %v3682
        %v3858 = vsel %vm3741, %v3682, %v3684
        %v3859 = vsel %vm3741, %v3684, %v3686
        %v3860 = vsel %vm3741, %v3686, %v3688
        %v3861 = vsel %vm3741, %v3688, %v3690
        %v3862 = vsel %vm3741, %v3692, %v3694
        %v3863 = vsel %vm3741, %v3694, %v3696
        %v3864 = vsel %vm3741, %v3696, %v3698
        %v3865 = vsel %vm3741, %v3698, %v3700
        %v3866 = vsel %vm3741, %v3700, %v3702
        %v3867 = vsel %vm3741, %v3702, %v3704
        %v3868 = vsel %vm3741, %v3704, %v3706
        %v3869 = vsel %vm3741, %v3706, %v3708
        %v3870 = vsel %vm3741, %v3708, %v3710
        %v3871 = vsel %vm3741, %v3710, %v3712
        %v3872 = vsel %vm3741, %v3712, %v3714
        %v3873 = vsel %vm3741, %v3714, %v3716
        %v3874 = vsel %vm3741, %v3716, %v3718
        %v3875 = vsel %vm3741, %v3718, %v3720
        %v3876 = vsel %vm3741, %v3720, %v3722
        %v3877 = vsel %vm3741, %v3722, %v3724
        %v3878 = vsel %vm3741, %v3724, %v3726
        %v3879 = vsel %vm3741, %v3726, %v3728
        %v3880 = vsel %vm3741, %v3728, %v3730
        %v3881 = vsel %vm3741, %v3730, %v3732
        %v3882 = vsel %vm3741, %v3732, %v3734
        %v3883 = vsel %vm3741, %v3734, %v3736
        %v3884 = vsel %vm3741, %v3736, %v3738
        %v3885 = vsel %vm3741, %v3738, %v3740
        %vm4030 = vcmask 654336
        %v4031 = vsel %vm4030, %v3765, 0.0
        %v4032 = vsel %vm4030, %v3789, 0.0
        %v4033 = vsel %vm4030, %v3813, 0.0
        %v4034 = vsel %vm4030, %v3837, 0.0
        %v4035 = vsel %vm4030, %v3861, 0.0
        %v4036 = vsel %vm4030, %v3885, 0.0
        %4037 = vst [vmem:[#allocation2 + $0x960] sm:$0xff] %v3742
        %4038 = vst [vmem:[#allocation2 + $0x968] sm:$0xff] %v3743
        %4039 = vst [vmem:[#allocation2 + $0x970] sm:$0xff] %v3744
        %4040 = vst [vmem:[#allocation2 + $0x978] sm:$0xff] %v3745
        %4041 = vst [vmem:[#allocation2 + $0x980] sm:$0xff] %v3746
        %4042 = vst [vmem:[#allocation2 + $0x988] sm:$0xff] %v3747
        %4043 = vst [vmem:[#allocation2 + $0x990] sm:$0xff] %v3748
        %4044 = vst [vmem:[#allocation2 + $0x998] sm:$0xff] %v3749
        %4045 = vst [vmem:[#allocation2 + $0x9a0] sm:$0xff] %v3750
        %4046 = vst [vmem:[#allocation2 + $0x9a8] sm:$0xff] %v3751
        %4047 = vst [vmem:[#allocation2 + $0x9b0] sm:$0xff] %v3752
        %4048 = vst [vmem:[#allocation2 + $0x9b8] sm:$0xff] %v3753
        %4049 = vst [vmem:[#allocation2 + $0x9c0] sm:$0xff] %v3754
        %4050 = vst [vmem:[#allocation2 + $0x9c8] sm:$0xff] %v3755
        %4051 = vst [vmem:[#allocation2 + $0x9d0] sm:$0xff] %v3756
        %4052 = vst [vmem:[#allocation2 + $0x9d8] sm:$0xff] %v3757
        %4053 = vst [vmem:[#allocation2 + $0x9e0] sm:$0xff] %v3758
        %4054 = vst [vmem:[#allocation2 + $0x9e8] sm:$0xff] %v3759
        %4055 = vst [vmem:[#allocation2 + $0x9f0] sm:$0xff] %v3760
        %4056 = vst [vmem:[#allocation2 + $0x9f8] sm:$0xff] %v3761
        %4057 = vst [vmem:[#allocation2 + $0xa00] sm:$0xff] %v3762
        %4058 = vst [vmem:[#allocation2 + $0xa08] sm:$0xff] %v3763
        %4059 = vst [vmem:[#allocation2 + $0xa10] sm:$0xff] %v3764
        %4060 = vst [vmem:[#allocation2 + $0xa18] sm:$0xff] %v4031
        %4061 = vst.msk [vmem:[#allocation2 + $0xa20] sm:$0xff] %vm3158, 0.0
        %4062 = vst [vmem:[#allocation2 + $0xa28] sm:$0xff] %v3766
        %4063 = vst [vmem:[#allocation2 + $0xa30] sm:$0xff] %v3767
        %4064 = vst [vmem:[#allocation2 + $0xa38] sm:$0xff] %v3768
        %4065 = vst [vmem:[#allocation2 + $0xa40] sm:$0xff] %v3769
        %4066 = vst [vmem:[#allocation2 + $0xa48] sm:$0xff] %v3770
        %4067 = vst [vmem:[#allocation2 + $0xa50] sm:$0xff] %v3771
        %4068 = vst [vmem:[#allocation2 + $0xa58] sm:$0xff] %v3772
        %4069 = vst [vmem:[#allocation2 + $0xa60] sm:$0xff] %v3773
        %4070 = vst [vmem:[#allocation2 + $0xa68] sm:$0xff] %v3774
        %4071 = vst [vmem:[#allocation2 + $0xa70] sm:$0xff] %v3775
        %4072 = vst [vmem:[#allocation2 + $0xa78] sm:$0xff] %v3776
        %4073 = vst [vmem:[#allocation2 + $0xa80] sm:$0xff] %v3777
        %4074 = vst [vmem:[#allocation2 + $0xa88] sm:$0xff] %v3778
        %4075 = vst [vmem:[#allocation2 + $0xa90] sm:$0xff] %v3779
        %4076 = vst [vmem:[#allocation2 + $0xa98] sm:$0xff] %v3780
        %4077 = vst [vmem:[#allocation2 + $0xaa0] sm:$0xff] %v3781
        %4078 = vst [vmem:[#allocation2 + $0xaa8] sm:$0xff] %v3782
        %4079 = vst [vmem:[#allocation2 + $0xab0] sm:$0xff] %v3783
        %4080 = vst [vmem:[#allocation2 + $0xab8] sm:$0xff] %v3784
        %4081 = vst [vmem:[#allocation2 + $0xac0] sm:$0xff] %v3785
        %4082 = vst [vmem:[#allocation2 + $0xac8] sm:$0xff] %v3786
        %4083 = vst [vmem:[#allocation2 + $0xad0] sm:$0xff] %v3787
        %4084 = vst [vmem:[#allocation2 + $0xad8] sm:$0xff] %v3788
        %4085 = vst [vmem:[#allocation2 + $0xae0] sm:$0xff] %v4032
        %4086 = vst.msk [vmem:[#allocation2 + $0xae8] sm:$0xff] %vm3158, 0.0
        %4087 = vst [vmem:[#allocation2 + $0xaf0] sm:$0xff] %v3790
        %4088 = vst [vmem:[#allocation2 + $0xaf8] sm:$0xff] %v3791
        %4089 = vst [vmem:[#allocation2 + $0xb00] sm:$0xff] %v3792
        %4090 = vst [vmem:[#allocation2 + $0xb08] sm:$0xff] %v3793
        %4091 = vst [vmem:[#allocation2 + $0xb10] sm:$0xff] %v3794
        %4092 = vst [vmem:[#allocation2 + $0xb18] sm:$0xff] %v3795
        %4093 = vst [vmem:[#allocation2 + $0xb20] sm:$0xff] %v3796
        %4094 = vst [vmem:[#allocation2 + $0xb28] sm:$0xff] %v3797
        %4095 = vst [vmem:[#allocation2 + $0xb30] sm:$0xff] %v3798
        %4096 = vst [vmem:[#allocation2 + $0xb38] sm:$0xff] %v3799
        %4097 = vst [vmem:[#allocation2 + $0xb40] sm:$0xff] %v3800
        %4098 = vst [vmem:[#allocation2 + $0xb48] sm:$0xff] %v3801
        %4099 = vst [vmem:[#allocation2 + $0xb50] sm:$0xff] %v3802
        %4100 = vst [vmem:[#allocation2 + $0xb58] sm:$0xff] %v3803
        %4101 = vst [vmem:[#allocation2 + $0xb60] sm:$0xff] %v3804
        %4102 = vst [vmem:[#allocation2 + $0xb68] sm:$0xff] %v3805
        %4103 = vst [vmem:[#allocation2 + $0xb70] sm:$0xff] %v3806
        %4104 = vst [vmem:[#allocation2 + $0xb78] sm:$0xff] %v3807
        %4105 = vst [vmem:[#allocation2 + $0xb80] sm:$0xff] %v3808
        %4106 = vst [vmem:[#allocation2 + $0xb88] sm:$0xff] %v3809
        %4107 = vst [vmem:[#allocation2 + $0xb90] sm:$0xff] %v3810
        %4108 = vst [vmem:[#allocation2 + $0xb98] sm:$0xff] %v3811
        %4109 = vst [vmem:[#allocation2 + $0xba0] sm:$0xff] %v3812
        %4110 = vst [vmem:[#allocation2 + $0xba8] sm:$0xff] %v4033
        %4111 = vst.msk [vmem:[#allocation2 + $0xbb0] sm:$0xff] %vm3158, 0.0
        %4112 = vst [vmem:[#allocation2 + $0xbb8] sm:$0xff] %v3814
        %4113 = vst [vmem:[#allocation2 + $0xbc0] sm:$0xff] %v3815
        %4114 = vst [vmem:[#allocation2 + $0xbc8] sm:$0xff] %v3816
        %4115 = vst [vmem:[#allocation2 + $0xbd0] sm:$0xff] %v3817
        %4116 = vst [vmem:[#allocation2 + $0xbd8] sm:$0xff] %v3818
        %4117 = vst [vmem:[#allocation2 + $0xbe0] sm:$0xff] %v3819
        %4118 = vst [vmem:[#allocation2 + $0xbe8] sm:$0xff] %v3820
        %4119 = vst [vmem:[#allocation2 + $0xbf0] sm:$0xff] %v3821
        %4120 = vst [vmem:[#allocation2 + $0xbf8] sm:$0xff] %v3822
        %4121 = vst [vmem:[#allocation2 + $0xc00] sm:$0xff] %v3823
        %4122 = vst [vmem:[#allocation2 + $0xc08] sm:$0xff] %v3824
        %4123 = vst [vmem:[#allocation2 + $0xc10] sm:$0xff] %v3825
        %4124 = vst [vmem:[#allocation2 + $0xc18] sm:$0xff] %v3826
        %4125 = vst [vmem:[#allocation2 + $0xc20] sm:$0xff] %v3827
        %4126 = vst [vmem:[#allocation2 + $0xc28] sm:$0xff] %v3828
        %4127 = vst [vmem:[#allocation2 + $0xc30] sm:$0xff] %v3829
        %4128 = vst [vmem:[#allocation2 + $0xc38] sm:$0xff] %v3830
        %4129 = vst [vmem:[#allocation2 + $0xc40] sm:$0xff] %v3831
        %4130 = vst [vmem:[#allocation2 + $0xc48] sm:$0xff] %v3832
        %4131 = vst [vmem:[#allocation2 + $0xc50] sm:$0xff] %v3833
        %4132 = vst [vmem:[#allocation2 + $0xc58] sm:$0xff] %v3834
        %4133 = vst [vmem:[#allocation2 + $0xc60] sm:$0xff] %v3835
        %4134 = vst [vmem:[#allocation2 + $0xc68] sm:$0xff] %v3836
        %4135 = vst [vmem:[#allocation2 + $0xc70] sm:$0xff] %v4034
        %4136 = vst.msk [vmem:[#allocation2 + $0xc78] sm:$0xff] %vm3158, 0.0
        %4137 = vst [vmem:[#allocation2 + $0xc80] sm:$0xff] %v3838
        %4138 = vst [vmem:[#allocation2 + $0xc88] sm:$0xff] %v3839
        %4139 = vst [vmem:[#allocation2 + $0xc90] sm:$0xff] %v3840
        %4140 = vst [vmem:[#allocation2 + $0xc98] sm:$0xff] %v3841
        %4141 = vst [vmem:[#allocation2 + $0xca0] sm:$0xff] %v3842
        %4142 = vst [vmem:[#allocation2 + $0xca8] sm:$0xff] %v3843
        %4143 = vst [vmem:[#allocation2 + $0xcb0] sm:$0xff] %v3844
        %4144 = vst [vmem:[#allocation2 + $0xcb8] sm:$0xff] %v3845
        %4145 = vst [vmem:[#allocation2 + $0xcc0] sm:$0xff] %v3846
        %4146 = vst [vmem:[#allocation2 + $0xcc8] sm:$0xff] %v3847
        %4147 = vst [vmem:[#allocation2 + $0xcd0] sm:$0xff] %v3848
        %4148 = vst [vmem:[#allocation2 + $0xcd8] sm:$0xff] %v3849
        %4149 = vst [vmem:[#allocation2 + $0xce0] sm:$0xff] %v3850
        %4150 = vst [vmem:[#allocation2 + $0xce8] sm:$0xff] %v3851
        %4151 = vst [vmem:[#allocation2 + $0xcf0] sm:$0xff] %v3852
        %4152 = vst [vmem:[#allocation2 + $0xcf8] sm:$0xff] %v3853
        %4153 = vst [vmem:[#allocation2 + $0xd00] sm:$0xff] %v3854
        %4154 = vst [vmem:[#allocation2 + $0xd08] sm:$0xff] %v3855
        %4155 = vst [vmem:[#allocation2 + $0xd10] sm:$0xff] %v3856
        %4156 = vst [vmem:[#allocation2 + $0xd18] sm:$0xff] %v3857
        %4157 = vst [vmem:[#allocation2 + $0xd20] sm:$0xff] %v3858
        %4158 = vst [vmem:[#allocation2 + $0xd28] sm:$0xff] %v3859
        %4159 = vst [vmem:[#allocation2 + $0xd30] sm:$0xff] %v3860
        %4160 = vst [vmem:[#allocation2 + $0xd38] sm:$0xff] %v4035
        %4161 = vst.msk [vmem:[#allocation2 + $0xd40] sm:$0xff] %vm3158, 0.0
        %4162 = vst [vmem:[#allocation2 + $0xd48] sm:$0xff] %v3862
        %4163 = vst [vmem:[#allocation2 + $0xd50] sm:$0xff] %v3863
        %4164 = vst [vmem:[#allocation2 + $0xd58] sm:$0xff] %v3864
        %4165 = vst [vmem:[#allocation2 + $0xd60] sm:$0xff] %v3865
        %4166 = vst [vmem:[#allocation2 + $0xd68] sm:$0xff] %v3866
        %4167 = vst [vmem:[#allocation2 + $0xd70] sm:$0xff] %v3867
        %4168 = vst [vmem:[#allocation2 + $0xd78] sm:$0xff] %v3868
        %4169 = vst [vmem:[#allocation2 + $0xd80] sm:$0xff] %v3869
        %4170 = vst [vmem:[#allocation2 + $0xd88] sm:$0xff] %v3870
        %4171 = vst [vmem:[#allocation2 + $0xd90] sm:$0xff] %v3871
        %4172 = vst [vmem:[#allocation2 + $0xd98] sm:$0xff] %v3872
        %4173 = vst [vmem:[#allocation2 + $0xda0] sm:$0xff] %v3873
        %4174 = vst [vmem:[#allocation2 + $0xda8] sm:$0xff] %v3874
        %4175 = vst [vmem:[#allocation2 + $0xdb0] sm:$0xff] %v3875
        %4176 = vst [vmem:[#allocation2 + $0xdb8] sm:$0xff] %v3876
        %4177 = vst [vmem:[#allocation2 + $0xdc0] sm:$0xff] %v3877
        %4178 = vst [vmem:[#allocation2 + $0xdc8] sm:$0xff] %v3878
        %4179 = vst [vmem:[#allocation2 + $0xdd0] sm:$0xff] %v3879
        %4180 = vst [vmem:[#allocation2 + $0xdd8] sm:$0xff] %v3880
        %4181 = vst [vmem:[#allocation2 + $0xde0] sm:$0xff] %v3881
        %4182 = vst [vmem:[#allocation2 + $0xde8] sm:$0xff] %v3882
        %4183 = vst [vmem:[#allocation2 + $0xdf0] sm:$0xff] %v3883
        %4184 = vst [vmem:[#allocation2 + $0xdf8] sm:$0xff] %v3884
        %4185 = vst [vmem:[#allocation2 + $0xe00] sm:$0xff] %v4036
        %4186 = vst.msk [vmem:[#allocation2 + $0xe08] sm:$0xff] %vm3158, 0.0
      $region32: #{forward.1} parent=27 // pred_fallthru
        _
      %v4187 = vld [vmem:[%s173] sm:$0xff]
      %v4188 = vld [vmem:[%s173 + $0x8] sm:$0xff]
      %v4189 = vld [vmem:[%s173 + $0x10] sm:$0xff]
      %v4190 = vld [vmem:[%s173 + $0x18] sm:$0xff]
      %v4191 = vld [vmem:[%s173 + $0x20] sm:$0xff]
      %v4192 = vld [vmem:[%s173 + $0x28] sm:$0xff]
      %v4193 = vld [vmem:[%s173 + $0x30] sm:$0xff]
      %v4194 = vld [vmem:[%s173 + $0x38] sm:$0xff]
      %v4195 = vld [vmem:[%s173 + $0x40] sm:$0xff]
      %v4196 = vld [vmem:[%s173 + $0x48] sm:$0xff]
      %v4197 = vld [vmem:[%s173 + $0x50] sm:$0xff]
      %v4198 = vld [vmem:[%s173 + $0x58] sm:$0xff]
      %v4199 = vld [vmem:[%s173 + $0x60] sm:$0xff]
      %v4200 = vld [vmem:[%s173 + $0x68] sm:$0xff]
      %v4201 = vld [vmem:[%s173 + $0x70] sm:$0xff]
      %v4202 = vld [vmem:[%s173 + $0x78] sm:$0xff]
      %v4203 = vld [vmem:[#allocation2] sm:$0xff]
      %v4204 = vld [vmem:[#allocation2 + $0x8] sm:$0xff]
      %v4205 = vld [vmem:[#allocation2 + $0x10] sm:$0xff]
      %v4206 = vld [vmem:[#allocation2 + $0x18] sm:$0xff]
      %v4207 = vld [vmem:[#allocation2 + $0x20] sm:$0xff]
      %v4208 = vld [vmem:[#allocation2 + $0x28] sm:$0xff]
      %v4209 = vld [vmem:[#allocation2 + $0x30] sm:$0xff]
      %v4210 = vld [vmem:[#allocation2 + $0x38] sm:$0xff]
      %v4211 = vld [vmem:[#allocation2 + $0x40] sm:$0xff]
      %v4212 = vld [vmem:[#allocation2 + $0x48] sm:$0xff]
      %v4213 = vld [vmem:[#allocation2 + $0x50] sm:$0xff]
      %v4214 = vld [vmem:[#allocation2 + $0x58] sm:$0xff]
      %v4215 = vld [vmem:[#allocation2 + $0x60] sm:$0xff]
      %v4216 = vld [vmem:[#allocation2 + $0x68] sm:$0xff]
      %v4217 = vld [vmem:[#allocation2 + $0x70] sm:$0xff]
      %v4218 = vld [vmem:[#allocation2 + $0x78] sm:$0xff]
      %v4219 = vld [vmem:[#allocation2 + $0x80] sm:$0xff]
      %v4220 = vld [vmem:[#allocation2 + $0x88] sm:$0xff]
      %v4221 = vld [vmem:[#allocation2 + $0x90] sm:$0xff]
      %v4222 = vld [vmem:[#allocation2 + $0x98] sm:$0xff]
      %v4223 = vld [vmem:[#allocation2 + $0xa0] sm:$0xff]
      %v4224 = vld [vmem:[#allocation2 + $0xa8] sm:$0xff]
      %v4225 = vld [vmem:[#allocation2 + $0xb0] sm:$0xff]
      %v4226 = vld [vmem:[#allocation2 + $0xb8] sm:$0xff]
      %v4227 = vld [vmem:[#allocation2 + $0xc0] sm:$0xff]
      %v4228 = vld [vmem:[#allocation2 + $0xc8] sm:$0xff]
      %v4229 = vld [vmem:[#allocation2 + $0xd0] sm:$0xff]
      %v4230 = vld [vmem:[#allocation2 + $0xd8] sm:$0xff]
      %v4231 = vld [vmem:[#allocation2 + $0xe0] sm:$0xff]
      %v4232 = vld [vmem:[#allocation2 + $0xe8] sm:$0xff]
      %v4233 = vld [vmem:[#allocation2 + $0xf0] sm:$0xff]
      %v4234 = vld [vmem:[#allocation2 + $0xf8] sm:$0xff]
      %v4235 = vld [vmem:[#allocation2 + $0x100] sm:$0xff]
      %v4236 = vld [vmem:[#allocation2 + $0x108] sm:$0xff]
      %v4237 = vld [vmem:[#allocation2 + $0x110] sm:$0xff]
      %v4238 = vld [vmem:[#allocation2 + $0x118] sm:$0xff]
      %v4239 = vld [vmem:[#allocation2 + $0x120] sm:$0xff]
      %v4240 = vld [vmem:[#allocation2 + $0x128] sm:$0xff]
      %v4241 = vld [vmem:[#allocation2 + $0x130] sm:$0xff]
      %v4242 = vld [vmem:[#allocation2 + $0x138] sm:$0xff]
      %v4243 = vld [vmem:[#allocation2 + $0x140] sm:$0xff]
      %v4244 = vld [vmem:[#allocation2 + $0x148] sm:$0xff]
      %v4245 = vld [vmem:[#allocation2 + $0x150] sm:$0xff]
      %v4246 = vld [vmem:[#allocation2 + $0x158] sm:$0xff]
      %v4247 = vld [vmem:[#allocation2 + $0x160] sm:$0xff]
      %v4248 = vld [vmem:[#allocation2 + $0x168] sm:$0xff]
      %v4249 = vld [vmem:[#allocation2 + $0x170] sm:$0xff]
      %v4250 = vld [vmem:[#allocation2 + $0x178] sm:$0xff]
      %v4251 = vld [vmem:[#allocation2 + $0x180] sm:$0xff]
      %v4252 = vld [vmem:[#allocation2 + $0x188] sm:$0xff]
      %v4253 = vld [vmem:[#allocation2 + $0x190] sm:$0xff]
      %v4254 = vld [vmem:[#allocation2 + $0x198] sm:$0xff]
      %v4255 = vld [vmem:[#allocation2 + $0x1a0] sm:$0xff]
      %v4256 = vld [vmem:[#allocation2 + $0x1a8] sm:$0xff]
      %v4257 = vld [vmem:[#allocation2 + $0x1b0] sm:$0xff]
      %v4258 = vld [vmem:[#allocation2 + $0x1b8] sm:$0xff]
      %v4259 = vld [vmem:[#allocation2 + $0x1c0] sm:$0xff]
      %v4260 = vld [vmem:[#allocation2 + $0x1c8] sm:$0xff]
      %v4261 = vld [vmem:[#allocation2 + $0x1d0] sm:$0xff]
      %v4262 = vld [vmem:[#allocation2 + $0x1d8] sm:$0xff]
      %v4263 = vld [vmem:[#allocation2 + $0x1e0] sm:$0xff]
      %v4264 = vld [vmem:[#allocation2 + $0x1e8] sm:$0xff]
      %v4265 = vld [vmem:[#allocation2 + $0x1f0] sm:$0xff]
      %v4266 = vld [vmem:[#allocation2 + $0x1f8] sm:$0xff]
      %v4267 = vld [vmem:[#allocation2 + $0x200] sm:$0xff]
      %v4268 = vld [vmem:[#allocation2 + $0x208] sm:$0xff]
      %v4269 = vld [vmem:[#allocation2 + $0x210] sm:$0xff]
      %v4270 = vld [vmem:[#allocation2 + $0x218] sm:$0xff]
      %v4271 = vld [vmem:[#allocation2 + $0x220] sm:$0xff]
      %v4272 = vld [vmem:[#allocation2 + $0x228] sm:$0xff]
      %v4273 = vld [vmem:[#allocation2 + $0x230] sm:$0xff]
      %v4274 = vld [vmem:[#allocation2 + $0x238] sm:$0xff]
      %v4275 = vld [vmem:[#allocation2 + $0x240] sm:$0xff]
      %v4276 = vld [vmem:[#allocation2 + $0x248] sm:$0xff]
      %v4277 = vld [vmem:[#allocation2 + $0x250] sm:$0xff]
      %v4278 = vld [vmem:[#allocation2 + $0x258] sm:$0xff]
      %v4279 = vld [vmem:[#allocation2 + $0x260] sm:$0xff]
      %v4280 = vld [vmem:[#allocation2 + $0x268] sm:$0xff]
      %v4281 = vld [vmem:[#allocation2 + $0x270] sm:$0xff]
      %v4282 = vld [vmem:[#allocation2 + $0x278] sm:$0xff]
      %v4283 = vld [vmem:[#allocation2 + $0x280] sm:$0xff]
      %v4284 = vld [vmem:[#allocation2 + $0x288] sm:$0xff]
      %v4285 = vld [vmem:[#allocation2 + $0x290] sm:$0xff]
      %v4286 = vld [vmem:[#allocation2 + $0x298] sm:$0xff]
      %v4287 = vld [vmem:[#allocation2 + $0x2a0] sm:$0xff]
      %v4288 = vld [vmem:[#allocation2 + $0x2a8] sm:$0xff]
      %v4289 = vld [vmem:[#allocation2 + $0x2b0] sm:$0xff]
      %v4290 = vld [vmem:[#allocation2 + $0x2b8] sm:$0xff]
      %v4291 = vld [vmem:[#allocation2 + $0x2c0] sm:$0xff]
      %v4292 = vld [vmem:[#allocation2 + $0x2c8] sm:$0xff]
      %v4293 = vld [vmem:[#allocation2 + $0x2d0] sm:$0xff]
      %v4294 = vld [vmem:[#allocation2 + $0x2d8] sm:$0xff]
      %v4295 = vld [vmem:[#allocation2 + $0x2e0] sm:$0xff]
      %v4296 = vld [vmem:[#allocation2 + $0x2e8] sm:$0xff]
      %v4297 = vld [vmem:[#allocation2 + $0x2f0] sm:$0xff]
      %v4298 = vld [vmem:[#allocation2 + $0x2f8] sm:$0xff]
      %v4299 = vld [vmem:[#allocation2 + $0x300] sm:$0xff]
      %v4300 = vld [vmem:[#allocation2 + $0x308] sm:$0xff]
      %v4301 = vld [vmem:[#allocation2 + $0x310] sm:$0xff]
      %v4302 = vld [vmem:[#allocation2 + $0x318] sm:$0xff]
      %v4303 = vld [vmem:[#allocation2 + $0x320] sm:$0xff]
      %v4304 = vld [vmem:[#allocation2 + $0x328] sm:$0xff]
      %v4305 = vld [vmem:[#allocation2 + $0x330] sm:$0xff]
      %v4306 = vld [vmem:[#allocation2 + $0x338] sm:$0xff]
      %v4307 = vld [vmem:[#allocation2 + $0x340] sm:$0xff]
      %v4308 = vld [vmem:[#allocation2 + $0x348] sm:$0xff]
      %v4309 = vld [vmem:[#allocation2 + $0x350] sm:$0xff]
      %v4310 = vld [vmem:[#allocation2 + $0x358] sm:$0xff]
      %v4311 = vld [vmem:[#allocation2 + $0x360] sm:$0xff]
      %v4312 = vld [vmem:[#allocation2 + $0x368] sm:$0xff]
      %v4313 = vld [vmem:[#allocation2 + $0x370] sm:$0xff]
      %v4314 = vld [vmem:[#allocation2 + $0x378] sm:$0xff]
      %v4315 = vld [vmem:[#allocation2 + $0x380] sm:$0xff]
      %v4316 = vld [vmem:[#allocation2 + $0x388] sm:$0xff]
      %v4317 = vld [vmem:[#allocation2 + $0x390] sm:$0xff]
      %v4318 = vld [vmem:[#allocation2 + $0x398] sm:$0xff]
      %v4319 = vld [vmem:[#allocation2 + $0x3a0] sm:$0xff]
      %v4320 = vld [vmem:[#allocation2 + $0x3a8] sm:$0xff]
      %v4321 = vld [vmem:[#allocation2 + $0x3b0] sm:$0xff]
      %v4322 = vld [vmem:[#allocation2 + $0x3b8] sm:$0xff]
      %v4323 = vld [vmem:[#allocation2 + $0x3c0] sm:$0xff]
      %v4324 = vld [vmem:[#allocation2 + $0x3c8] sm:$0xff]
      %v4325 = vld [vmem:[#allocation2 + $0x3d0] sm:$0xff]
      %v4326 = vld [vmem:[#allocation2 + $0x3d8] sm:$0xff]
      %v4327 = vld [vmem:[#allocation2 + $0x3e0] sm:$0xff]
      %v4328 = vld [vmem:[#allocation2 + $0x3e8] sm:$0xff]
      %v4329 = vld [vmem:[#allocation2 + $0x3f0] sm:$0xff]
      %v4330 = vld [vmem:[#allocation2 + $0x3f8] sm:$0xff]
      %v4331 = vld [vmem:[#allocation2 + $0x400] sm:$0xff]
      %v4332 = vld [vmem:[#allocation2 + $0x408] sm:$0xff]
      %v4333 = vld [vmem:[#allocation2 + $0x410] sm:$0xff]
      %v4334 = vld [vmem:[#allocation2 + $0x418] sm:$0xff]
      %v4335 = vld [vmem:[#allocation2 + $0x420] sm:$0xff]
      %v4336 = vld [vmem:[#allocation2 + $0x428] sm:$0xff]
      %v4337 = vld [vmem:[#allocation2 + $0x430] sm:$0xff]
      %v4338 = vld [vmem:[#allocation2 + $0x438] sm:$0xff]
      %v4339 = vld [vmem:[#allocation2 + $0x440] sm:$0xff]
      %v4340 = vld [vmem:[#allocation2 + $0x448] sm:$0xff]
      %v4341 = vld [vmem:[#allocation2 + $0x450] sm:$0xff]
      %v4342 = vld [vmem:[#allocation2 + $0x458] sm:$0xff]
      %v4343 = vld [vmem:[#allocation2 + $0x460] sm:$0xff]
      %v4344 = vld [vmem:[#allocation2 + $0x468] sm:$0xff]
      %v4345 = vld [vmem:[#allocation2 + $0x470] sm:$0xff]
      %v4346 = vld [vmem:[#allocation2 + $0x478] sm:$0xff]
      %v4347 = vld [vmem:[#allocation2 + $0x480] sm:$0xff]
      %v4348 = vld [vmem:[#allocation2 + $0x488] sm:$0xff]
      %v4349 = vld [vmem:[#allocation2 + $0x490] sm:$0xff]
      %v4350 = vld [vmem:[#allocation2 + $0x498] sm:$0xff]
      %v4351 = vld [vmem:[#allocation2 + $0x4a0] sm:$0xff]
      %v4352 = vld [vmem:[#allocation2 + $0x4a8] sm:$0xff]
      %v4353 = vld [vmem:[#allocation2 + $0x4b0] sm:$0xff]
      %v4354 = vld [vmem:[#allocation2 + $0x4b8] sm:$0xff]
      %v4355 = vld [vmem:[#allocation2 + $0x4c0] sm:$0xff]
      %v4356 = vld [vmem:[#allocation2 + $0x4c8] sm:$0xff]
      %v4357 = vld [vmem:[#allocation2 + $0x4d0] sm:$0xff]
      %v4358 = vld [vmem:[#allocation2 + $0x4d8] sm:$0xff]
      %v4359 = vld [vmem:[#allocation2 + $0x4e0] sm:$0xff]
      %v4360 = vld [vmem:[#allocation2 + $0x4e8] sm:$0xff]
      %v4361 = vld [vmem:[#allocation2 + $0x4f0] sm:$0xff]
      %v4362 = vld [vmem:[#allocation2 + $0x4f8] sm:$0xff]
      %v4363 = vld [vmem:[#allocation2 + $0x500] sm:$0xff]
      %v4364 = vld [vmem:[#allocation2 + $0x508] sm:$0xff]
      %v4365 = vld [vmem:[#allocation2 + $0x510] sm:$0xff]
      %v4366 = vld [vmem:[#allocation2 + $0x518] sm:$0xff]
      %v4367 = vld [vmem:[#allocation2 + $0x520] sm:$0xff]
      %v4368 = vld [vmem:[#allocation2 + $0x528] sm:$0xff]
      %v4369 = vld [vmem:[#allocation2 + $0x530] sm:$0xff]
      %v4370 = vld [vmem:[#allocation2 + $0x538] sm:$0xff]
      %v4371 = vld [vmem:[#allocation2 + $0x540] sm:$0xff]
      %v4372 = vld [vmem:[#allocation2 + $0x548] sm:$0xff]
      %v4373 = vld [vmem:[#allocation2 + $0x550] sm:$0xff]
      %v4374 = vld [vmem:[#allocation2 + $0x558] sm:$0xff]
      %v4375 = vld [vmem:[#allocation2 + $0x560] sm:$0xff]
      %v4376 = vld [vmem:[#allocation2 + $0x568] sm:$0xff]
      %v4377 = vld [vmem:[#allocation2 + $0x570] sm:$0xff]
      %v4378 = vld [vmem:[#allocation2 + $0x578] sm:$0xff]
      %v4379 = vld [vmem:[#allocation2 + $0x580] sm:$0xff]
      %v4380 = vld [vmem:[#allocation2 + $0x588] sm:$0xff]
      %v4381 = vld [vmem:[#allocation2 + $0x590] sm:$0xff]
      %v4382 = vld [vmem:[#allocation2 + $0x598] sm:$0xff]
      %v4383 = vld [vmem:[#allocation2 + $0x5a0] sm:$0xff]
      %v4384 = vld [vmem:[#allocation2 + $0x5a8] sm:$0xff]
      %v4385 = vld [vmem:[#allocation2 + $0x5b0] sm:$0xff]
      %v4386 = vld [vmem:[#allocation2 + $0x5b8] sm:$0xff]
      %v4387 = vld [vmem:[#allocation2 + $0x5c0] sm:$0xff]
      %v4388 = vld [vmem:[#allocation2 + $0x5c8] sm:$0xff]
      %v4389 = vld [vmem:[#allocation2 + $0x5d0] sm:$0xff]
      %v4390 = vld [vmem:[#allocation2 + $0x5d8] sm:$0xff]
      %v4391 = vld [vmem:[#allocation2 + $0x5e0] sm:$0xff]
      %v4392 = vld [vmem:[#allocation2 + $0x5e8] sm:$0xff]
      %v4393 = vld [vmem:[#allocation2 + $0x5f0] sm:$0xff]
      %v4394 = vld [vmem:[#allocation2 + $0x5f8] sm:$0xff]
      %v4395 = vld [vmem:[#allocation2 + $0x600] sm:$0xff]
      %v4396 = vld [vmem:[#allocation2 + $0x608] sm:$0xff]
      %v4397 = vld [vmem:[#allocation2 + $0x610] sm:$0xff]
      %v4398 = vld [vmem:[#allocation2 + $0x618] sm:$0xff]
      %v4399 = vld [vmem:[#allocation2 + $0x620] sm:$0xff]
      %v4400 = vld [vmem:[#allocation2 + $0x628] sm:$0xff]
      %v4401 = vld [vmem:[#allocation2 + $0x630] sm:$0xff]
      %v4402 = vld [vmem:[#allocation2 + $0x638] sm:$0xff]
      %v4403 = vld [vmem:[#allocation2 + $0x640] sm:$0xff]
      %v4404 = vld [vmem:[#allocation2 + $0x648] sm:$0xff]
      %v4405 = vld [vmem:[#allocation2 + $0x650] sm:$0xff]
      %v4406 = vld [vmem:[#allocation2 + $0x658] sm:$0xff]
      %v4407 = vld [vmem:[#allocation2 + $0x660] sm:$0xff]
      %v4408 = vld [vmem:[#allocation2 + $0x668] sm:$0xff]
      %v4409 = vld [vmem:[#allocation2 + $0x670] sm:$0xff]
      %v4410 = vld [vmem:[#allocation2 + $0x678] sm:$0xff]
      %v4411 = vld [vmem:[#allocation2 + $0x680] sm:$0xff]
      %v4412 = vld [vmem:[#allocation2 + $0x688] sm:$0xff]
      %v4413 = vld [vmem:[#allocation2 + $0x690] sm:$0xff]
      %v4414 = vld [vmem:[#allocation2 + $0x698] sm:$0xff]
      %v4415 = vld [vmem:[#allocation2 + $0x6a0] sm:$0xff]
      %v4416 = vld [vmem:[#allocation2 + $0x6a8] sm:$0xff]
      %v4417 = vld [vmem:[#allocation2 + $0x6b0] sm:$0xff]
      %v4418 = vld [vmem:[#allocation2 + $0x6b8] sm:$0xff]
      %v4419 = vld [vmem:[#allocation2 + $0x6c0] sm:$0xff]
      %v4420 = vld [vmem:[#allocation2 + $0x6c8] sm:$0xff]
      %v4421 = vld [vmem:[#allocation2 + $0x6d0] sm:$0xff]
      %v4422 = vld [vmem:[#allocation2 + $0x6d8] sm:$0xff]
      %v4423 = vld [vmem:[#allocation2 + $0x6e0] sm:$0xff]
      %v4424 = vld [vmem:[#allocation2 + $0x6e8] sm:$0xff]
      %v4425 = vld [vmem:[#allocation2 + $0x6f0] sm:$0xff]
      %v4426 = vld [vmem:[#allocation2 + $0x6f8] sm:$0xff]
      %v4427 = vld [vmem:[#allocation2 + $0x700] sm:$0xff]
      %v4428 = vld [vmem:[#allocation2 + $0x708] sm:$0xff]
      %v4429 = vld [vmem:[#allocation2 + $0x710] sm:$0xff]
      %v4430 = vld [vmem:[#allocation2 + $0x718] sm:$0xff]
      %v4431 = vld [vmem:[#allocation2 + $0x720] sm:$0xff]
      %v4432 = vld [vmem:[#allocation2 + $0x728] sm:$0xff]
      %v4433 = vld [vmem:[#allocation2 + $0x730] sm:$0xff]
      %v4434 = vld [vmem:[#allocation2 + $0x738] sm:$0xff]
      %v4435 = vld [vmem:[#allocation2 + $0x740] sm:$0xff]
      %v4436 = vld [vmem:[#allocation2 + $0x748] sm:$0xff]
      %v4437 = vld [vmem:[#allocation2 + $0x750] sm:$0xff]
      %v4438 = vld [vmem:[#allocation2 + $0x758] sm:$0xff]
      %v4439 = vld [vmem:[#allocation2 + $0x760] sm:$0xff]
      %v4440 = vld [vmem:[#allocation2 + $0x768] sm:$0xff]
      %v4441 = vld [vmem:[#allocation2 + $0x770] sm:$0xff]
      %v4442 = vld [vmem:[#allocation2 + $0x778] sm:$0xff]
      %v4443 = vld [vmem:[#allocation2 + $0x780] sm:$0xff]
      %v4444 = vld [vmem:[#allocation2 + $0x788] sm:$0xff]
      %v4445 = vld [vmem:[#allocation2 + $0x790] sm:$0xff]
      %v4446 = vld [vmem:[#allocation2 + $0x798] sm:$0xff]
      %v4447 = vld [vmem:[#allocation2 + $0x7a0] sm:$0xff]
      %v4448 = vld [vmem:[#allocation2 + $0x7a8] sm:$0xff]
      %v4449 = vld [vmem:[#allocation2 + $0x7b0] sm:$0xff]
      %v4450 = vld [vmem:[#allocation2 + $0x7b8] sm:$0xff]
      %v4451 = vld [vmem:[#allocation2 + $0x7c0] sm:$0xff]
      %v4452 = vld [vmem:[#allocation2 + $0x7c8] sm:$0xff]
      %v4453 = vld [vmem:[#allocation2 + $0x7d0] sm:$0xff]
      %v4454 = vld [vmem:[#allocation2 + $0x7d8] sm:$0xff]
      %v4455 = vld [vmem:[#allocation2 + $0x7e0] sm:$0xff]
      %v4456 = vld [vmem:[#allocation2 + $0x7e8] sm:$0xff]
      %v4457 = vld [vmem:[#allocation2 + $0x7f0] sm:$0xff]
      %v4458 = vld [vmem:[#allocation2 + $0x7f8] sm:$0xff]
      %v4459 = vld [vmem:[#allocation2 + $0x800] sm:$0xff]
      %v4460 = vld [vmem:[#allocation2 + $0x808] sm:$0xff]
      %v4461 = vld [vmem:[#allocation2 + $0x810] sm:$0xff]
      %v4462 = vld [vmem:[#allocation2 + $0x818] sm:$0xff]
      %v4463 = vld [vmem:[#allocation2 + $0x820] sm:$0xff]
      %v4464 = vld [vmem:[#allocation2 + $0x828] sm:$0xff]
      %v4465 = vld [vmem:[#allocation2 + $0x830] sm:$0xff]
      %v4466 = vld [vmem:[#allocation2 + $0x838] sm:$0xff]
      %v4467 = vld [vmem:[#allocation2 + $0x840] sm:$0xff]
      %v4468 = vld [vmem:[#allocation2 + $0x848] sm:$0xff]
      %v4469 = vld [vmem:[#allocation2 + $0x850] sm:$0xff]
      %v4470 = vld [vmem:[#allocation2 + $0x858] sm:$0xff]
      %v4471 = vld [vmem:[#allocation2 + $0x860] sm:$0xff]
      %v4472 = vld [vmem:[#allocation2 + $0x868] sm:$0xff]
      %v4473 = vld [vmem:[#allocation2 + $0x870] sm:$0xff]
      %v4474 = vld [vmem:[#allocation2 + $0x878] sm:$0xff]
      %v4475 = vld [vmem:[#allocation2 + $0x880] sm:$0xff]
      %v4476 = vld [vmem:[#allocation2 + $0x888] sm:$0xff]
      %v4477 = vld [vmem:[#allocation2 + $0x890] sm:$0xff]
      %v4478 = vld [vmem:[#allocation2 + $0x898] sm:$0xff]
      %v4479 = vld [vmem:[#allocation2 + $0x8a0] sm:$0xff]
      %v4480 = vld [vmem:[#allocation2 + $0x8a8] sm:$0xff]
      %v4481 = vld [vmem:[#allocation2 + $0x8b0] sm:$0xff]
      %v4482 = vld [vmem:[#allocation2 + $0x8b8] sm:$0xff]
      %v4483 = vld [vmem:[#allocation2 + $0x8c0] sm:$0xff]
      %v4484 = vld [vmem:[#allocation2 + $0x8c8] sm:$0xff]
      %v4485 = vld [vmem:[#allocation2 + $0x8d0] sm:$0xff]
      %v4486 = vld [vmem:[#allocation2 + $0x8d8] sm:$0xff]
      %v4487 = vld [vmem:[#allocation2 + $0x8e0] sm:$0xff]
      %v4488 = vld [vmem:[#allocation2 + $0x8e8] sm:$0xff]
      %v4489 = vld [vmem:[#allocation2 + $0x8f0] sm:$0xff]
      %v4490 = vld [vmem:[#allocation2 + $0x8f8] sm:$0xff]
      %v4491 = vld [vmem:[#allocation2 + $0x900] sm:$0xff]
      %v4492 = vld [vmem:[#allocation2 + $0x908] sm:$0xff]
      %v4493 = vld [vmem:[#allocation2 + $0x910] sm:$0xff]
      %v4494 = vld [vmem:[#allocation2 + $0x918] sm:$0xff]
      %v4495 = vld [vmem:[#allocation2 + $0x920] sm:$0xff]
      %v4496 = vld [vmem:[#allocation2 + $0x928] sm:$0xff]
      %v4497 = vld [vmem:[#allocation2 + $0x930] sm:$0xff]
      %v4498 = vld [vmem:[#allocation2 + $0x938] sm:$0xff]
      %v4499 = vld [vmem:[#allocation2 + $0x940] sm:$0xff]
      %v4500 = vld [vmem:[#allocation2 + $0x948] sm:$0xff]
      %v4501 = vld [vmem:[#allocation2 + $0x950] sm:$0xff]
      %v4502 = vld [vmem:[#allocation2 + $0x958] sm:$0xff]
      %v4503 = vld [vmem:[#allocation2 + $0x960] sm:$0xff]
      %v4504 = vld [vmem:[#allocation2 + $0x968] sm:$0xff]
      %v4505 = vld [vmem:[#allocation2 + $0x970] sm:$0xff]
      %v4506 = vld [vmem:[#allocation2 + $0x978] sm:$0xff]
      %v4507 = vld [vmem:[#allocation2 + $0x980] sm:$0xff]
      %v4508 = vld [vmem:[#allocation2 + $0x988] sm:$0xff]
      %v4509 = vld [vmem:[#allocation2 + $0x990] sm:$0xff]
      %v4510 = vld [vmem:[#allocation2 + $0x998] sm:$0xff]
      %v4511 = vld [vmem:[#allocation2 + $0x9a0] sm:$0xff]
      %v4512 = vld [vmem:[#allocation2 + $0x9a8] sm:$0xff]
      %v4513 = vld [vmem:[#allocation2 + $0x9b0] sm:$0xff]
      %v4514 = vld [vmem:[#allocation2 + $0x9b8] sm:$0xff]
      %v4515 = vld [vmem:[#allocation2 + $0x9c0] sm:$0xff]
      %v4516 = vld [vmem:[#allocation2 + $0x9c8] sm:$0xff]
      %v4517 = vld [vmem:[#allocation2 + $0x9d0] sm:$0xff]
      %v4518 = vld [vmem:[#allocation2 + $0x9d8] sm:$0xff]
      %v4519 = vld [vmem:[#allocation2 + $0x9e0] sm:$0xff]
      %v4520 = vld [vmem:[#allocation2 + $0x9e8] sm:$0xff]
      %v4521 = vld [vmem:[#allocation2 + $0x9f0] sm:$0xff]
      %v4522 = vld [vmem:[#allocation2 + $0x9f8] sm:$0xff]
      %v4523 = vld [vmem:[#allocation2 + $0xa00] sm:$0xff]
      %v4524 = vld [vmem:[#allocation2 + $0xa08] sm:$0xff]
      %v4525 = vld [vmem:[#allocation2 + $0xa10] sm:$0xff]
      %v4526 = vld [vmem:[#allocation2 + $0xa18] sm:$0xff]
      %v4527 = vld [vmem:[#allocation2 + $0xa20] sm:$0xff]
      %v4528 = vld [vmem:[#allocation2 + $0xa28] sm:$0xff]
      %v4529 = vld [vmem:[#allocation2 + $0xa30] sm:$0xff]
      %v4530 = vld [vmem:[#allocation2 + $0xa38] sm:$0xff]
      %v4531 = vld [vmem:[#allocation2 + $0xa40] sm:$0xff]
      %v4532 = vld [vmem:[#allocation2 + $0xa48] sm:$0xff]
      %v4533 = vld [vmem:[#allocation2 + $0xa50] sm:$0xff]
      %v4534 = vld [vmem:[#allocation2 + $0xa58] sm:$0xff]
      %v4535 = vld [vmem:[#allocation2 + $0xa60] sm:$0xff]
      %v4536 = vld [vmem:[#allocation2 + $0xa68] sm:$0xff]
      %v4537 = vld [vmem:[#allocation2 + $0xa70] sm:$0xff]
      %v4538 = vld [vmem:[#allocation2 + $0xa78] sm:$0xff]
      %v4539 = vld [vmem:[#allocation2 + $0xa80] sm:$0xff]
      %v4540 = vld [vmem:[#allocation2 + $0xa88] sm:$0xff]
      %v4541 = vld [vmem:[#allocation2 + $0xa90] sm:$0xff]
      %v4542 = vld [vmem:[#allocation2 + $0xa98] sm:$0xff]
      %v4543 = vld [vmem:[#allocation2 + $0xaa0] sm:$0xff]
      %v4544 = vld [vmem:[#allocation2 + $0xaa8] sm:$0xff]
      %v4545 = vld [vmem:[#allocation2 + $0xab0] sm:$0xff]
      %v4546 = vld [vmem:[#allocation2 + $0xab8] sm:$0xff]
      %v4547 = vld [vmem:[#allocation2 + $0xac0] sm:$0xff]
      %v4548 = vld [vmem:[#allocation2 + $0xac8] sm:$0xff]
      %v4549 = vld [vmem:[#allocation2 + $0xad0] sm:$0xff]
      %v4550 = vld [vmem:[#allocation2 + $0xad8] sm:$0xff]
      %v4551 = vld [vmem:[#allocation2 + $0xae0] sm:$0xff]
      %v4552 = vld [vmem:[#allocation2 + $0xae8] sm:$0xff]
      %v4553 = vld [vmem:[#allocation2 + $0xaf0] sm:$0xff]
      %v4554 = vld [vmem:[#allocation2 + $0xaf8] sm:$0xff]
      %v4555 = vld [vmem:[#allocation2 + $0xb00] sm:$0xff]
      %v4556 = vld [vmem:[#allocation2 + $0xb08] sm:$0xff]
      %v4557 = vld [vmem:[#allocation2 + $0xb10] sm:$0xff]
      %v4558 = vld [vmem:[#allocation2 + $0xb18] sm:$0xff]
      %v4559 = vld [vmem:[#allocation2 + $0xb20] sm:$0xff]
      %v4560 = vld [vmem:[#allocation2 + $0xb28] sm:$0xff]
      %v4561 = vld [vmem:[#allocation2 + $0xb30] sm:$0xff]
      %v4562 = vld [vmem:[#allocation2 + $0xb38] sm:$0xff]
      %v4563 = vld [vmem:[#allocation2 + $0xb40] sm:$0xff]
      %v4564 = vld [vmem:[#allocation2 + $0xb48] sm:$0xff]
      %v4565 = vld [vmem:[#allocation2 + $0xb50] sm:$0xff]
      %v4566 = vld [vmem:[#allocation2 + $0xb58] sm:$0xff]
      %v4567 = vld [vmem:[#allocation2 + $0xb60] sm:$0xff]
      %v4568 = vld [vmem:[#allocation2 + $0xb68] sm:$0xff]
      %v4569 = vld [vmem:[#allocation2 + $0xb70] sm:$0xff]
      %v4570 = vld [vmem:[#allocation2 + $0xb78] sm:$0xff]
      %v4571 = vld [vmem:[#allocation2 + $0xb80] sm:$0xff]
      %v4572 = vld [vmem:[#allocation2 + $0xb88] sm:$0xff]
      %v4573 = vld [vmem:[#allocation2 + $0xb90] sm:$0xff]
      %v4574 = vld [vmem:[#allocation2 + $0xb98] sm:$0xff]
      %v4575 = vld [vmem:[#allocation2 + $0xba0] sm:$0xff]
      %v4576 = vld [vmem:[#allocation2 + $0xba8] sm:$0xff]
      %v4577 = vld [vmem:[#allocation2 + $0xbb0] sm:$0xff]
      %v4578 = vld [vmem:[#allocation2 + $0xbb8] sm:$0xff]
      %v4579 = vld [vmem:[#allocation2 + $0xbc0] sm:$0xff]
      %v4580 = vld [vmem:[#allocation2 + $0xbc8] sm:$0xff]
      %v4581 = vld [vmem:[#allocation2 + $0xbd0] sm:$0xff]
      %v4582 = vld [vmem:[#allocation2 + $0xbd8] sm:$0xff]
      %v4583 = vld [vmem:[#allocation2 + $0xbe0] sm:$0xff]
      %v4584 = vld [vmem:[#allocation2 + $0xbe8] sm:$0xff]
      %v4585 = vld [vmem:[#allocation2 + $0xbf0] sm:$0xff]
      %v4586 = vld [vmem:[#allocation2 + $0xbf8] sm:$0xff]
      %v4587 = vld [vmem:[#allocation2 + $0xc00] sm:$0xff]
      %v4588 = vld [vmem:[#allocation2 + $0xc08] sm:$0xff]
      %v4589 = vld [vmem:[#allocation2 + $0xc10] sm:$0xff]
      %v4590 = vld [vmem:[#allocation2 + $0xc18] sm:$0xff]
      %v4591 = vld [vmem:[#allocation2 + $0xc20] sm:$0xff]
      %v4592 = vld [vmem:[#allocation2 + $0xc28] sm:$0xff]
      %v4593 = vld [vmem:[#allocation2 + $0xc30] sm:$0xff]
      %v4594 = vld [vmem:[#allocation2 + $0xc38] sm:$0xff]
      %v4595 = vld [vmem:[#allocation2 + $0xc40] sm:$0xff]
      %v4596 = vld [vmem:[#allocation2 + $0xc48] sm:$0xff]
      %v4597 = vld [vmem:[#allocation2 + $0xc50] sm:$0xff]
      %v4598 = vld [vmem:[#allocation2 + $0xc58] sm:$0xff]
      %v4599 = vld [vmem:[#allocation2 + $0xc60] sm:$0xff]
      %v4600 = vld [vmem:[#allocation2 + $0xc68] sm:$0xff]
      %v4601 = vld [vmem:[#allocation2 + $0xc70] sm:$0xff]
      %v4602 = vld [vmem:[#allocation2 + $0xc78] sm:$0xff]
      %v4603 = vld [vmem:[#allocation2 + $0xc80] sm:$0xff]
      %v4604 = vld [vmem:[#allocation2 + $0xc88] sm:$0xff]
      %v4605 = vld [vmem:[#allocation2 + $0xc90] sm:$0xff]
      %v4606 = vld [vmem:[#allocation2 + $0xc98] sm:$0xff]
      %v4607 = vld [vmem:[#allocation2 + $0xca0] sm:$0xff]
      %v4608 = vld [vmem:[#allocation2 + $0xca8] sm:$0xff]
      %v4609 = vld [vmem:[#allocation2 + $0xcb0] sm:$0xff]
      %v4610 = vld [vmem:[#allocation2 + $0xcb8] sm:$0xff]
      %v4611 = vld [vmem:[#allocation2 + $0xcc0] sm:$0xff]
      %v4612 = vld [vmem:[#allocation2 + $0xcc8] sm:$0xff]
      %v4613 = vld [vmem:[#allocation2 + $0xcd0] sm:$0xff]
      %v4614 = vld [vmem:[#allocation2 + $0xcd8] sm:$0xff]
      %v4615 = vld [vmem:[#allocation2 + $0xce0] sm:$0xff]
      %v4616 = vld [vmem:[#allocation2 + $0xce8] sm:$0xff]
      %v4617 = vld [vmem:[#allocation2 + $0xcf0] sm:$0xff]
      %v4618 = vld [vmem:[#allocation2 + $0xcf8] sm:$0xff]
      %v4619 = vld [vmem:[#allocation2 + $0xd00] sm:$0xff]
      %v4620 = vld [vmem:[#allocation2 + $0xd08] sm:$0xff]
      %v4621 = vld [vmem:[#allocation2 + $0xd10] sm:$0xff]
      %v4622 = vld [vmem:[#allocation2 + $0xd18] sm:$0xff]
      %v4623 = vld [vmem:[#allocation2 + $0xd20] sm:$0xff]
      %v4624 = vld [vmem:[#allocation2 + $0xd28] sm:$0xff]
      %v4625 = vld [vmem:[#allocation2 + $0xd30] sm:$0xff]
      %v4626 = vld [vmem:[#allocation2 + $0xd38] sm:$0xff]
      %v4627 = vld [vmem:[#allocation2 + $0xd40] sm:$0xff]
      %v4628 = vld [vmem:[#allocation2 + $0xd48] sm:$0xff]
      %v4629 = vld [vmem:[#allocation2 + $0xd50] sm:$0xff]
      %v4630 = vld [vmem:[#allocation2 + $0xd58] sm:$0xff]
      %v4631 = vld [vmem:[#allocation2 + $0xd60] sm:$0xff]
      %v4632 = vld [vmem:[#allocation2 + $0xd68] sm:$0xff]
      %v4633 = vld [vmem:[#allocation2 + $0xd70] sm:$0xff]
      %v4634 = vld [vmem:[#allocation2 + $0xd78] sm:$0xff]
      %v4635 = vld [vmem:[#allocation2 + $0xd80] sm:$0xff]
      %v4636 = vld [vmem:[#allocation2 + $0xd88] sm:$0xff]
      %v4637 = vld [vmem:[#allocation2 + $0xd90] sm:$0xff]
      %v4638 = vld [vmem:[#allocation2 + $0xd98] sm:$0xff]
      %v4639 = vld [vmem:[#allocation2 + $0xda0] sm:$0xff]
      %v4640 = vld [vmem:[#allocation2 + $0xda8] sm:$0xff]
      %v4641 = vld [vmem:[#allocation2 + $0xdb0] sm:$0xff]
      %v4642 = vld [vmem:[#allocation2 + $0xdb8] sm:$0xff]
      %v4643 = vld [vmem:[#allocation2 + $0xdc0] sm:$0xff]
      %v4644 = vld [vmem:[#allocation2 + $0xdc8] sm:$0xff]
      %v4645 = vld [vmem:[#allocation2 + $0xdd0] sm:$0xff]
      %v4646 = vld [vmem:[#allocation2 + $0xdd8] sm:$0xff]
      %v4647 = vld [vmem:[#allocation2 + $0xde0] sm:$0xff]
      %v4648 = vld [vmem:[#allocation2 + $0xde8] sm:$0xff]
      %v4649 = vld [vmem:[#allocation2 + $0xdf0] sm:$0xff]
      %v4650 = vld [vmem:[#allocation2 + $0xdf8] sm:$0xff]
      %v4651 = vld [vmem:[#allocation2 + $0xe00] sm:$0xff]
      %v4652 = vld [vmem:[#allocation2 + $0xe08] sm:$0xff]
      %vm4653 = vcmask 130048
      %v4655 = vsel %vm4653, %v4188, 0
      %v4658 = vsel %vm4653, %v4190, 0
      %v4661 = vsel %vm4653, %v4192, 0
      %v4664 = vsel %vm4653, %v4194, 0
      %v4667 = vsel %vm4653, %v4196, 0
      %v4670 = vsel %vm4653, %v4198, 0
      %v4673 = vsel %vm4653, %v4200, 0
      %v4676 = vsel %vm4653, %v4202, 0
      %4678 = vmatprep.subr.mxu0 %v4204
      %4679 = vmatpush1.msra.mxu0 %v4203
      %4680 = vmatprep.subr.mxu0 %v4229
      %4681 = vmatpush1.msra.mxu0 %v4228
      %4682 = vmatprep.subr.mxu0 %v4254
      %4683 = vmatpush1.msra.mxu0 %v4253
      %4684 = vmatprep.subr.mxu0 %v4279
      %4685 = vmatpush1.msra.mxu0 %v4278
      %4686 = vmatprep.subr.mxu0 %v4304
      %4687 = vmatpush1.msra.mxu0 %v4303
      %4688 = vmatprep.subr.mxu0 %v4329
      %4689 = vmatpush1.msra.mxu0 %v4328
      %4690 = vmatprep.subr.mxu0 %v4354
      %4691 = vmatpush1.msra.mxu0 %v4353
      %4692 = vmatprep.subr.mxu0 %v4379
      %4693 = vmatpush1.msra.mxu0 %v4378
      %4694 = vmatprep.subr.mxu0 %v4404
      %4695 = vmatpush1.msra.mxu0 %v4403
      %4696 = vmatprep.subr.mxu0 %v4429
      %4697 = vmatpush1.msra.mxu0 %v4428
      %4698 = vmatprep.subr.mxu0 %v4454
      %4699 = vmatpush1.msra.mxu0 %v4453
      %4700 = vmatprep.subr.mxu0 %v4479
      %4701 = vmatpush1.msra.mxu0 %v4478
      %4702 = vmatprep.subr.mxu0 %v4504
      %4703 = vmatpush1.msra.mxu0 %v4503
      %4704 = vmatprep.subr.mxu0 %v4529
      %4705 = vmatpush1.msra.mxu0 %v4528
      %4706 = vmatprep.subr.mxu0 %v4554
      %4707 = vmatpush1.msra.mxu0 %v4553
      %4708 = vmatprep.subr.mxu0 %v4579
      %4709 = vmatpush1.msra.mxu0 %v4578
      %4710 = vmatprep.subr.mxu0 %v4604
      %4711 = vmatpush1.msra.mxu0 %v4603
      %4712 = vmatprep.subr.mxu0 %v4629
      %4713 = vmatpush1.msra.mxu0 %v4628
      %4714 = vmatprep.subr.mxu0 0.0
      %4715 = vmatpush1.msra.mxu0 0.0
      %4716 = vmatprep.subr.mxu0 0.0
      %4717 = vmatpush1.msra.mxu0 0.0
      %4718 = vmatprep.subr.mxu0 0.0
      %4719 = vmatpush1.msra.mxu0 0.0
      %4720 = vmatprep.subr.mxu0 0.0
      %4721 = vmatpush1.msra.mxu0 0.0
      %4722 = vmatprep.subr.mxu0 0.0
      %4723 = vmatpush1.msra.mxu0 0.0
      %4724 = vmatprep.subr.mxu0 0.0
      %4725 = vmatpush1.msra.mxu0 0.0
      %4726 = vmatprep.subr.mxu0 0.0
      %4727 = vmatpush1.msra.mxu0 0.0
      %4728 = vmatprep.subr.mxu0 0.0
      %4729 = vmatpush1.msra.mxu0 0.0
      %4730 = vmatprep.subr.mxu0 0.0
      %4731 = vmatpush1.msra.mxu0 0.0
      %4732 = vmatprep.subr.mxu0 0.0
      %4733 = vmatpush1.msra.mxu0 0.0
      %4734 = vmatprep.subr.mxu0 0.0
      %4735 = vmatpush1.msra.mxu0 0.0
      %4736 = vmatprep.subr.mxu0 0.0
      %4737 = vmatpush1.msra.mxu0 0.0
      %4738 = vmatprep.subr.mxu0 0.0
      %4739 = vmatpush1.msra.mxu0 0.0
      %4740 = vmatprep.subr.mxu0 0.0
      %4741 = vmatpush1.msra.mxu0 0.0
      %4742 = vmatprep.mubr.f32.mxu0 %v4655
      %4743 = vmatmul.mubr.f32.gmra.mrb[0].mxu0 %v4187
      %v4744 = vpop.f32.mrb[0].mxu0
      %v4745 = vadd.f32 0.0, %v4744
      %v4746 = vpop.f32.mrb[0].mxu0
      %v4747 = vadd.f32 0.0, %v4746
      %4748 = vmatprep.mubr.f32.mxu0 %v4658
      %4749 = vmatmul.mubr.f32.gmra.mrb[0].mxu0 %v4189
      %v4750 = vpop.f32.mrb[0].mxu0
      %v4751 = vadd.f32 0.0, %v4750
      %v4752 = vpop.f32.mrb[0].mxu0
      %v4753 = vadd.f32 0.0, %v4752
      %4754 = vmatprep.mubr.f32.mxu0 %v4661
      %4755 = vmatmul.mubr.f32.gmra.mrb[0].mxu0 %v4191
      %v4756 = vpop.f32.mrb[0].mxu0
      %v4757 = vadd.f32 0.0, %v4756
      %v4758 = vpop.f32.mrb[0].mxu0
      %v4759 = vadd.f32 0.0, %v4758
      %4760 = vmatprep.mubr.f32.mxu0 %v4664
      %4761 = vmatmul.mubr.f32.gmra.mrb[0].mxu0 %v4193
      %v4762 = vpop.f32.mrb[0].mxu0
      %v4763 = vadd.f32 0.0, %v4762
      %v4764 = vpop.f32.mrb[0].mxu0
      %v4765 = vadd.f32 0.0, %v4764
      %4766 = vmatprep.mubr.f32.mxu0 %v4667
      %4767 = vmatmul.mubr.f32.gmra.mrb[0].mxu0 %v4195
      %v4768 = vpop.f32.mrb[0].mxu0
      %v4769 = vadd.f32 0.0, %v4768
      %v4770 = vpop.f32.mrb[0].mxu0
      %v4771 = vadd.f32 0.0, %v4770
      %4772 = vmatprep.mubr.f32.mxu0 %v4670
      %4773 = vmatmul.mubr.f32.gmra.mrb[0].mxu0 %v4197
      %v4774 = vpop.f32.mrb[0].mxu0
      %v4775 = vadd.f32 0.0, %v4774
      %v4776 = vpop.f32.mrb[0].mxu0
      %v4777 = vadd.f32 0.0, %v4776
      %4778 = vmatprep.mubr.f32.mxu0 %v4673
      %4779 = vmatmul.mubr.f32.gmra.mrb[0].mxu0 %v4199
      %v4780 = vpop.f32.mrb[0].mxu0
      %v4781 = vadd.f32 0.0, %v4780
      %v4782 = vpop.f32.mrb[0].mxu0
      %v4783 = vadd.f32 0.0, %v4782
      %4784 = vmatprep.mubr.f32.mxu0 %v4676
      %4785 = vmatmul.mubr.f32.gmra.mrb[0].mxu0 %v4201
      %v4786 = vpop.f32.mrb[0].mxu0
      %v4787 = vadd.f32 0.0, %v4786
      %v4788 = vpop.f32.mrb[0].mxu0
      %v4789 = vadd.f32 0.0, %v4788
      %4790 = vdwg.mxu0
      %4791 = vmatprep.subr.mxu0 %v4206
      %4792 = vmatpush1.msra.mxu0 %v4205
      %4793 = vmatprep.subr.mxu0 %v4231
      %4794 = vmatpush1.msra.mxu0 %v4230
      %4795 = vmatprep.subr.mxu0 %v4256
      %4796 = vmatpush1.msra.mxu0 %v4255
      %4797 = vmatprep.subr.mxu0 %v4281
      %4798 = vmatpush1.msra.mxu0 %v4280
      %4799 = vmatprep.subr.mxu0 %v4306
      %4800 = vmatpush1.msra.mxu0 %v4305
      %4801 = vmatprep.subr.mxu0 %v4331
      %4802 = vmatpush1.msra.mxu0 %v4330
      %4803 = vmatprep.subr.mxu0 %v4356
      %4804 = vmatpush1.msra.mxu0 %v4355
      %4805 = vmatprep.subr.mxu0 %v4381
      %4806 = vmatpush1.msra.mxu0 %v4380
      %4807 = vmatprep.subr.mxu0 %v4406
      %4808 = vmatpush1.msra.mxu0 %v4405
      %4809 = vmatprep.subr.mxu0 %v4431
      %4810 = vmatpush1.msra.mxu0 %v4430
      %4811 = vmatprep.subr.mxu0 %v4456
      %4812 = vmatpush1.msra.mxu0 %v4455
      %4813 = vmatprep.subr.mxu0 %v4481
      %4814 = vmatpush1.msra.mxu0 %v4480
      %4815 = vmatprep.subr.mxu0 %v4506
      %4816 = vmatpush1.msra.mxu0 %v4505
      %4817 = vmatprep.subr.mxu0 %v4531
      %4818 = vmatpush1.msra.mxu0 %v4530
      %4819 = vmatprep.subr.mxu0 %v4556
      %4820 = vmatpush1.msra.mxu0 %v4555
      %4821 = vmatprep.subr.mxu0 %v4581
      %4822 = vmatpush1.msra.mxu0 %v4580
      %4823 = vmatprep.subr.mxu0 %v4606
      %4824 = vmatpush1.msra.mxu0 %v4605
      %4825 = vmatprep.subr.mxu0 %v4631
      %4826 = vmatpush1.msra.mxu0 %v4630
      %4827 = vmatprep.subr.mxu0 0.0
      %4828 = vmatpush1.msra.mxu0 0.0
      %4829 = vmatprep.subr.mxu0 0.0
      %4830 = vmatpush1.msra.mxu0 0.0
      %4831 = vmatprep.subr.mxu0 0.0
      %4832 = vmatpush1.msra.mxu0 0.0
      %4833 = vmatprep.subr.mxu0 0.0
      %4834 = vmatpush1.msra.mxu0 0.0
      %4835 = vmatprep.subr.mxu0 0.0
      %4836 = vmatpush1.msra.mxu0 0.0
      %4837 = vmatprep.subr.mxu0 0.0
      %4838 = vmatpush1.msra.mxu0 0.0
      %4839 = vmatprep.subr.mxu0 0.0
      %4840 = vmatpush1.msra.mxu0 0.0
      %4841 = vmatprep.subr.mxu0 0.0
      %4842 = vmatpush1.msra.mxu0 0.0
      %4843 = vmatprep.subr.mxu0 0.0
      %4844 = vmatpush1.msra.mxu0 0.0
      %4845 = vmatprep.subr.mxu0 0.0
      %4846 = vmatpush1.msra.mxu0 0.0
      %4847 = vmatprep.subr.mxu0 0.0
      %4848 = vmatpush1.msra.mxu0 0.0
      %4849 = vmatprep.subr.mxu0 0.0
      %4850 = vmatpush1.msra.mxu0 0.0
      %4851 = vmatprep.subr.mxu0 0.0
      %4852 = vmatpush1.msra.mxu0 0.0
      %4853 = vmatprep.subr.mxu0 0.0
      %4854 = vmatpush1.msra.mxu0 0.0
      %4855 = vmatprep.mubr.f32.mxu0 %v4655
      %4856 = vmatmul.mubr.f32.gmra.mrb[0].mxu0 %v4187
      %v4857 = vpop.f32.mrb[0].mxu0
      %v4858 = vadd.f32 0.0, %v4857
      %v4859 = vpop.f32.mrb[0].mxu0
      %v4860 = vadd.f32 0.0, %v4859
      %4861 = vmatprep.mubr.f32.mxu0 %v4658
      %4862 = vmatmul.mubr.f32.gmra.mrb[0].mxu0 %v4189
      %v4863 = vpop.f32.mrb[0].mxu0
      %v4864 = vadd.f32 0.0, %v4863
      %v4865 = vpop.f32.mrb[0].mxu0
      %v4866 = vadd.f32 0.0, %v4865
      %4867 = vmatprep.mubr.f32.mxu0 %v4661
      %4868 = vmatmul.mubr.f32.gmra.mrb[0].mxu0 %v4191
      %v4869 = vpop.f32.mrb[0].mxu0
      %v4870 = vadd.f32 0.0, %v4869
      %v4871 = vpop.f32.mrb[0].mxu0
      %v4872 = vadd.f32 0.0, %v4871
      %4873 = vmatprep.mubr.f32.mxu0 %v4664
      %4874 = vmatmul.mubr.f32.gmra.mrb[0].mxu0 %v4193
      %v4875 = vpop.f32.mrb[0].mxu0
      %v4876 = vadd.f32 0.0, %v4875
      %v4877 = vpop.f32.mrb[0].mxu0
      %v4878 = vadd.f32 0.0, %v4877
      %4879 = vmatprep.mubr.f32.mxu0 %v4667
      %4880 = vmatmul.mubr.f32.gmra.mrb[0].mxu0 %v4195
      %v4881 = vpop.f32.mrb[0].mxu0
      %v4882 = vadd.f32 0.0, %v4881
      %v4883 = vpop.f32.mrb[0].mxu0
      %v4884 = vadd.f32 0.0, %v4883
      %4885 = vmatprep.mubr.f32.mxu0 %v4670
      %4886 = vmatmul.mubr.f32.gmra.mrb[0].mxu0 %v4197
      %v4887 = vpop.f32.mrb[0].mxu0
      %v4888 = vadd.f32 0.0, %v4887
      %v4889 = vpop.f32.mrb[0].mxu0
      %v4890 = vadd.f32 0.0, %v4889
      %4891 = vmatprep.mubr.f32.mxu0 %v4673
      %4892 = vmatmul.mubr.f32.gmra.mrb[0].mxu0 %v4199
      %v4893 = vpop.f32.mrb[0].mxu0
      %v4894 = vadd.f32 0.0, %v4893
      %v4895 = vpop.f32.mrb[0].mxu0
      %v4896 = vadd.f32 0.0, %v4895
      %4897 = vmatprep.mubr.f32.mxu0 %v4676
      %4898 = vmatmul.mubr.f32.gmra.mrb[0].mxu0 %v4201
      %v4899 = vpop.f32.mrb[0].mxu0
      %v4900 = vadd.f32 0.0, %v4899
      %v4901 = vpop.f32.mrb[0].mxu0
      %v4902 = vadd.f32 0.0, %v4901
      %4903 = vdwg.mxu0
      %4904 = vmatprep.subr.mxu0 %v4208
      %4905 = vmatpush1.msra.mxu0 %v4207
      %4906 = vmatprep.subr.mxu0 %v4233
      %4907 = vmatpush1.msra.mxu0 %v4232
      %4908 = vmatprep.subr.mxu0 %v4258
      %4909 = vmatpush1.msra.mxu0 %v4257
      %4910 = vmatprep.subr.mxu0 %v4283
      %4911 = vmatpush1.msra.mxu0 %v4282
      %4912 = vmatprep.subr.mxu0 %v4308
      %4913 = vmatpush1.msra.mxu0 %v4307
      %4914 = vmatprep.subr.mxu0 %v4333
      %4915 = vmatpush1.msra.mxu0 %v4332
      %4916 = vmatprep.subr.mxu0 %v4358
      %4917 = vmatpush1.msra.mxu0 %v4357
      %4918 = vmatprep.subr.mxu0 %v4383
      %4919 = vmatpush1.msra.mxu0 %v4382
      %4920 = vmatprep.subr.mxu0 %v4408
      %4921 = vmatpush1.msra.mxu0 %v4407
      %4922 = vmatprep.subr.mxu0 %v4433
      %4923 = vmatpush1.msra.mxu0 %v4432
      %4924 = vmatprep.subr.mxu0 %v4458
      %4925 = vmatpush1.msra.mxu0 %v4457
      %4926 = vmatprep.subr.mxu0 %v4483
      %4927 = vmatpush1.msra.mxu0 %v4482
      %4928 = vmatprep.subr.mxu0 %v4508
      %4929 = vmatpush1.msra.mxu0 %v4507
      %4930 = vmatprep.subr.mxu0 %v4533
      %4931 = vmatpush1.msra.mxu0 %v4532
      %4932 = vmatprep.subr.mxu0 %v4558
      %4933 = vmatpush1.msra.mxu0 %v4557
      %4934 = vmatprep.subr.mxu0 %v4583
      %4935 = vmatpush1.msra.mxu0 %v4582
      %4936 = vmatprep.subr.mxu0 %v4608
      %4937 = vmatpush1.msra.mxu0 %v4607
      %4938 = vmatprep.subr.mxu0 %v4633
      %4939 = vmatpush1.msra.mxu0 %v4632
      %4940 = vmatprep.subr.mxu0 0.0
      %4941 = vmatpush1.msra.mxu0 0.0
      %4942 = vmatprep.subr.mxu0 0.0
      %4943 = vmatpush1.msra.mxu0 0.0
      %4944 = vmatprep.subr.mxu0 0.0
      %4945 = vmatpush1.msra.mxu0 0.0
      %4946 = vmatprep.subr.mxu0 0.0
      %4947 = vmatpush1.msra.mxu0 0.0
      %4948 = vmatprep.subr.mxu0 0.0
      %4949 = vmatpush1.msra.mxu0 0.0
      %4950 = vmatprep.subr.mxu0 0.0
      %4951 = vmatpush1.msra.mxu0 0.0
      %4952 = vmatprep.subr.mxu0 0.0
      %4953 = vmatpush1.msra.mxu0 0.0
      %4954 = vmatprep.subr.mxu0 0.0
      %4955 = vmatpush1.msra.mxu0 0.0
      %4956 = vmatprep.subr.mxu0 0.0
      %4957 = vmatpush1.msra.mxu0 0.0
      %4958 = vmatprep.subr.mxu0 0.0
      %4959 = vmatpush1.msra.mxu0 0.0
      %4960 = vmatprep.subr.mxu0 0.0
      %4961 = vmatpush1.msra.mxu0 0.0
      %4962 = vmatprep.subr.mxu0 0.0
      %4963 = vmatpush1.msra.mxu0 0.0
      %4964 = vmatprep.subr.mxu0 0.0
      %4965 = vmatpush1.msra.mxu0 0.0
      %4966 = vmatprep.subr.mxu0 0.0
      %4967 = vmatpush1.msra.mxu0 0.0
      %4968 = vmatprep.mubr.f32.mxu0 %v4655
      %4969 = vmatmul.mubr.f32.gmra.mrb[0].mxu0 %v4187
      %v4970 = vpop.f32.mrb[0].mxu0
      %v4971 = vadd.f32 0.0, %v4970
      %v4972 = vpop.f32.mrb[0].mxu0
      %v4973 = vadd.f32 0.0, %v4972
      %4974 = vmatprep.mubr.f32.mxu0 %v4658
      %4975 = vmatmul.mubr.f32.gmra.mrb[0].mxu0 %v4189
      %v4976 = vpop.f32.mrb[0].mxu0
      %v4977 = vadd.f32 0.0, %v4976
      %v4978 = vpop.f32.mrb[0].mxu0
      %v4979 = vadd.f32 0.0, %v4978
      %4980 = vmatprep.mubr.f32.mxu0 %v4661
      %4981 = vmatmul.mubr.f32.gmra.mrb[0].mxu0 %v4191
      %v4982 = vpop.f32.mrb[0].mxu0
      %v4983 = vadd.f32 0.0, %v4982
      %v4984 = vpop.f32.mrb[0].mxu0
      %v4985 = vadd.f32 0.0, %v4984
      %4986 = vmatprep.mubr.f32.mxu0 %v4664
      %4987 = vmatmul.mubr.f32.gmra.mrb[0].mxu0 %v4193
      %v4988 = vpop.f32.mrb[0].mxu0
      %v4989 = vadd.f32 0.0, %v4988
      %v4990 = vpop.f32.mrb[0].mxu0
      %v4991 = vadd.f32 0.0, %v4990
      %4992 = vmatprep.mubr.f32.mxu0 %v4667
      %4993 = vmatmul.mubr.f32.gmra.mrb[0].mxu0 %v4195
      %v4994 = vpop.f32.mrb[0].mxu0
      %v4995 = vadd.f32 0.0, %v4994
      %v4996 = vpop.f32.mrb[0].mxu0
      %v4997 = vadd.f32 0.0, %v4996
      %4998 = vmatprep.mubr.f32.mxu0 %v4670
      %4999 = vmatmul.mubr.f32.gmra.mrb[0].mxu0 %v4197
      %v5000 = vpop.f32.mrb[0].mxu0
      %v5001 = vadd.f32 0.0, %v5000
      %v5002 = vpop.f32.mrb[0].mxu0
      %v5003 = vadd.f32 0.0, %v5002
      %5004 = vmatprep.mubr.f32.mxu0 %v4673
      %5005 = vmatmul.mubr.f32.gmra.mrb[0].mxu0 %v4199
      %v5006 = vpop.f32.mrb[0].mxu0
      %v5007 = vadd.f32 0.0, %v5006
      %v5008 = vpop.f32.mrb[0].mxu0
      %v5009 = vadd.f32 0.0, %v5008
      %5010 = vmatprep.mubr.f32.mxu0 %v4676
      %5011 = vmatmul.mubr.f32.gmra.mrb[0].mxu0 %v4201
      %v5012 = vpop.f32.mrb[0].mxu0
      %v5013 = vadd.f32 0.0, %v5012
      %v5014 = vpop.f32.mrb[0].mxu0
      %v5015 = vadd.f32 0.0, %v5014
      %5016 = vdwg.mxu0
      %5017 = vmatprep.subr.mxu0 %v4210
      %5018 = vmatpush1.msra.mxu0 %v4209
      %5019 = vmatprep.subr.mxu0 %v4235
      %5020 = vmatpush1.msra.mxu0 %v4234
      %5021 = vmatprep.subr.mxu0 %v4260
      %5022 = vmatpush1.msra.mxu0 %v4259
      %5023 = vmatprep.subr.mxu0 %v4285
      %5024 = vmatpush1.msra.mxu0 %v4284
      %5025 = vmatprep.subr.mxu0 %v4310
      %5026 = vmatpush1.msra.mxu0 %v4309
      %5027 = vmatprep.subr.mxu0 %v4335
      %5028 = vmatpush1.msra.mxu0 %v4334
      %5029 = vmatprep.subr.mxu0 %v4360
      %5030 = vmatpush1.msra.mxu0 %v4359
      %5031 = vmatprep.subr.mxu0 %v4385
      %5032 = vmatpush1.msra.mxu0 %v4384
      %5033 = vmatprep.subr.mxu0 %v4410
      %5034 = vmatpush1.msra.mxu0 %v4409
      %5035 = vmatprep.subr.mxu0 %v4435
      %5036 = vmatpush1.msra.mxu0 %v4434
      %5037 = vmatprep.subr.mxu0 %v4460
      %5038 = vmatpush1.msra.mxu0 %v4459
      %5039 = vmatprep.subr.mxu0 %v4485
      %5040 = vmatpush1.msra.mxu0 %v4484
      %5041 = vmatprep.subr.mxu0 %v4510
      %5042 = vmatpush1.msra.mxu0 %v4509
      %5043 = vmatprep.subr.mxu0 %v4535
      %5044 = vmatpush1.msra.mxu0 %v4534
      %5045 = vmatprep.subr.mxu0 %v4560
      %5046 = vmatpush1.msra.mxu0 %v4559
      %5047 = vmatprep.subr.mxu0 %v4585
      %5048 = vmatpush1.msra.mxu0 %v4584
      %5049 = vmatprep.subr.mxu0 %v4610
      %5050 = vmatpush1.msra.mxu0 %v4609
      %5051 = vmatprep.subr.mxu0 %v4635
      %5052 = vmatpush1.msra.mxu0 %v4634
      %5053 = vmatprep.subr.mxu0 0.0
      %5054 = vmatpush1.msra.mxu0 0.0
      %5055 = vmatprep.subr.mxu0 0.0
      %5056 = vmatpush1.msra.mxu0 0.0
      %5057 = vmatprep.subr.mxu0 0.0
      %5058 = vmatpush1.msra.mxu0 0.0
      %5059 = vmatprep.subr.mxu0 0.0
      %5060 = vmatpush1.msra.mxu0 0.0
      %5061 = vmatprep.subr.mxu0 0.0
      %5062 = vmatpush1.msra.mxu0 0.0
      %5063 = vmatprep.subr.mxu0 0.0
      %5064 = vmatpush1.msra.mxu0 0.0
      %5065 = vmatprep.subr.mxu0 0.0
      %5066 = vmatpush1.msra.mxu0 0.0
      %5067 = vmatprep.subr.mxu0 0.0
      %5068 = vmatpush1.msra.mxu0 0.0
      %5069 = vmatprep.subr.mxu0 0.0
      %5070 = vmatpush1.msra.mxu0 0.0
      %5071 = vmatprep.subr.mxu0 0.0
      %5072 = vmatpush1.msra.mxu0 0.0
      %5073 = vmatprep.subr.mxu0 0.0
      %5074 = vmatpush1.msra.mxu0 0.0
      %5075 = vmatprep.subr.mxu0 0.0
      %5076 = vmatpush1.msra.mxu0 0.0
      %5077 = vmatprep.subr.mxu0 0.0
      %5078 = vmatpush1.msra.mxu0 0.0
      %5079 = vmatprep.subr.mxu0 0.0
      %5080 = vmatpush1.msra.mxu0 0.0
      %5081 = vmatprep.mubr.f32.mxu0 %v4655
      %5082 = vmatmul.mubr.f32.gmra.mrb[0].mxu0 %v4187
      %v5083 = vpop.f32.mrb[0].mxu0
      %v5084 = vadd.f32 0.0, %v5083
      %v5085 = vpop.f32.mrb[0].mxu0
      %v5086 = vadd.f32 0.0, %v5085
      %5087 = vmatprep.mubr.f32.mxu0 %v4658
      %5088 = vmatmul.mubr.f32.gmra.mrb[0].mxu0 %v4189
      %v5089 = vpop.f32.mrb[0].mxu0
      %v5090 = vadd.f32 0.0, %v5089
      %v5091 = vpop.f32.mrb[0].mxu0
      %v5092 = vadd.f32 0.0, %v5091
      %5093 = vmatprep.mubr.f32.mxu0 %v4661
      %5094 = vmatmul.mubr.f32.gmra.mrb[0].mxu0 %v4191
      %v5095 = vpop.f32.mrb[0].mxu0
      %v5096 = vadd.f32 0.0, %v5095
      %v5097 = vpop.f32.mrb[0].mxu0
      %v5098 = vadd.f32 0.0, %v5097
      %5099 = vmatprep.mubr.f32.mxu0 %v4664
      %5100 = vmatmul.mubr.f32.gmra.mrb[0].mxu0 %v4193
      %v5101 = vpop.f32.mrb[0].mxu0
      %v5102 = vadd.f32 0.0, %v5101
      %v5103 = vpop.f32.mrb[0].mxu0
      %v5104 = vadd.f32 0.0, %v5103
      %5105 = vmatprep.mubr.f32.mxu0 %v4667
      %5106 = vmatmul.mubr.f32.gmra.mrb[0].mxu0 %v4195
      %v5107 = vpop.f32.mrb[0].mxu0
      %v5108 = vadd.f32 0.0, %v5107
      %v5109 = vpop.f32.mrb[0].mxu0
      %v5110 = vadd.f32 0.0, %v5109
      %5111 = vmatprep.mubr.f32.mxu0 %v4670
      %5112 = vmatmul.mubr.f32.gmra.mrb[0].mxu0 %v4197
      %v5113 = vpop.f32.mrb[0].mxu0
      %v5114 = vadd.f32 0.0, %v5113
      %v5115 = vpop.f32.mrb[0].mxu0
      %v5116 = vadd.f32 0.0, %v5115
      %5117 = vmatprep.mubr.f32.mxu0 %v4673
      %5118 = vmatmul.mubr.f32.gmra.mrb[0].mxu0 %v4199
      %v5119 = vpop.f32.mrb[0].mxu0
      %v5120 = vadd.f32 0.0, %v5119
      %v5121 = vpop.f32.mrb[0].mxu0
      %v5122 = vadd.f32 0.0, %v5121
      %5123 = vmatprep.mubr.f32.mxu0 %v4676
      %5124 = vmatmul.mubr.f32.gmra.mrb[0].mxu0 %v4201
      %v5125 = vpop.f32.mrb[0].mxu0
      %v5126 = vadd.f32 0.0, %v5125
      %v5127 = vpop.f32.mrb[0].mxu0
      %v5128 = vadd.f32 0.0, %v5127
      %5129 = vdwg.mxu0
      %5130 = vmatprep.subr.mxu0 %v4212
      %5131 = vmatpush1.msra.mxu0 %v4211
      %5132 = vmatprep.subr.mxu0 %v4237
      %5133 = vmatpush1.msra.mxu0 %v4236
      %5134 = vmatprep.subr.mxu0 %v4262
      %5135 = vmatpush1.msra.mxu0 %v4261
      %5136 = vmatprep.subr.mxu0 %v4287
      %5137 = vmatpush1.msra.mxu0 %v4286
      %5138 = vmatprep.subr.mxu0 %v4312
      %5139 = vmatpush1.msra.mxu0 %v4311
      %5140 = vmatprep.subr.mxu0 %v4337
      %5141 = vmatpush1.msra.mxu0 %v4336
      %5142 = vmatprep.subr.mxu0 %v4362
      %5143 = vmatpush1.msra.mxu0 %v4361
      %5144 = vmatprep.subr.mxu0 %v4387
      %5145 = vmatpush1.msra.mxu0 %v4386
      %5146 = vmatprep.subr.mxu0 %v4412
      %5147 = vmatpush1.msra.mxu0 %v4411
      %5148 = vmatprep.subr.mxu0 %v4437
      %5149 = vmatpush1.msra.mxu0 %v4436
      %5150 = vmatprep.subr.mxu0 %v4462
      %5151 = vmatpush1.msra.mxu0 %v4461
      %5152 = vmatprep.subr.mxu0 %v4487
      %5153 = vmatpush1.msra.mxu0 %v4486
      %5154 = vmatprep.subr.mxu0 %v4512
      %5155 = vmatpush1.msra.mxu0 %v4511
      %5156 = vmatprep.subr.mxu0 %v4537
      %5157 = vmatpush1.msra.mxu0 %v4536
      %5158 = vmatprep.subr.mxu0 %v4562
      %5159 = vmatpush1.msra.mxu0 %v4561
      %5160 = vmatprep.subr.mxu0 %v4587
      %5161 = vmatpush1.msra.mxu0 %v4586
      %5162 = vmatprep.subr.mxu0 %v4612
      %5163 = vmatpush1.msra.mxu0 %v4611
      %5164 = vmatprep.subr.mxu0 %v4637
      %5165 = vmatpush1.msra.mxu0 %v4636
      %5166 = vmatprep.subr.mxu0 0.0
      %5167 = vmatpush1.msra.mxu0 0.0
      %5168 = vmatprep.subr.mxu0 0.0
      %5169 = vmatpush1.msra.mxu0 0.0
      %5170 = vmatprep.subr.mxu0 0.0
      %5171 = vmatpush1.msra.mxu0 0.0
      %5172 = vmatprep.subr.mxu0 0.0
      %5173 = vmatpush1.msra.mxu0 0.0
      %5174 = vmatprep.subr.mxu0 0.0
      %5175 = vmatpush1.msra.mxu0 0.0
      %5176 = vmatprep.subr.mxu0 0.0
      %5177 = vmatpush1.msra.mxu0 0.0
      %5178 = vmatprep.subr.mxu0 0.0
      %5179 = vmatpush1.msra.mxu0 0.0
      %5180 = vmatprep.subr.mxu0 0.0
      %5181 = vmatpush1.msra.mxu0 0.0
      %5182 = vmatprep.subr.mxu0 0.0
      %5183 = vmatpush1.msra.mxu0 0.0
      %5184 = vmatprep.subr.mxu0 0.0
      %5185 = vmatpush1.msra.mxu0 0.0
      %5186 = vmatprep.subr.mxu0 0.0
      %5187 = vmatpush1.msra.mxu0 0.0
      %5188 = vmatprep.subr.mxu0 0.0
      %5189 = vmatpush1.msra.mxu0 0.0
      %5190 = vmatprep.subr.mxu0 0.0
      %5191 = vmatpush1.msra.mxu0 0.0
      %5192 = vmatprep.subr.mxu0 0.0
      %5193 = vmatpush1.msra.mxu0 0.0
      %5194 = vmatprep.mubr.f32.mxu0 %v4655
      %5195 = vmatmul.mubr.f32.gmra.mrb[0].mxu0 %v4187
      %v5196 = vpop.f32.mrb[0].mxu0
      %v5197 = vadd.f32 0.0, %v5196
      %v5198 = vpop.f32.mrb[0].mxu0
      %v5199 = vadd.f32 0.0, %v5198
      %5200 = vmatprep.mubr.f32.mxu0 %v4658
      %5201 = vmatmul.mubr.f32.gmra.mrb[0].mxu0 %v4189
      %v5202 = vpop.f32.mrb[0].mxu0
      %v5203 = vadd.f32 0.0, %v5202
      %v5204 = vpop.f32.mrb[0].mxu0
      %v5205 = vadd.f32 0.0, %v5204
      %5206 = vmatprep.mubr.f32.mxu0 %v4661
      %5207 = vmatmul.mubr.f32.gmra.mrb[0].mxu0 %v4191
      %v5208 = vpop.f32.mrb[0].mxu0
      %v5209 = vadd.f32 0.0, %v5208
      %v5210 = vpop.f32.mrb[0].mxu0
      %v5211 = vadd.f32 0.0, %v5210
      %5212 = vmatprep.mubr.f32.mxu0 %v4664
      %5213 = vmatmul.mubr.f32.gmra.mrb[0].mxu0 %v4193
      %v5214 = vpop.f32.mrb[0].mxu0
      %v5215 = vadd.f32 0.0, %v5214
      %v5216 = vpop.f32.mrb[0].mxu0
      %v5217 = vadd.f32 0.0, %v5216
      %5218 = vmatprep.mubr.f32.mxu0 %v4667
      %5219 = vmatmul.mubr.f32.gmra.mrb[0].mxu0 %v4195
      %v5220 = vpop.f32.mrb[0].mxu0
      %v5221 = vadd.f32 0.0, %v5220
      %v5222 = vpop.f32.mrb[0].mxu0
      %v5223 = vadd.f32 0.0, %v5222
      %5224 = vmatprep.mubr.f32.mxu0 %v4670
      %5225 = vmatmul.mubr.f32.gmra.mrb[0].mxu0 %v4197
      %v5226 = vpop.f32.mrb[0].mxu0
      %v5227 = vadd.f32 0.0, %v5226
      %v5228 = vpop.f32.mrb[0].mxu0
      %v5229 = vadd.f32 0.0, %v5228
      %5230 = vmatprep.mubr.f32.mxu0 %v4673
      %5231 = vmatmul.mubr.f32.gmra.mrb[0].mxu0 %v4199
      %v5232 = vpop.f32.mrb[0].mxu0
      %v5233 = vadd.f32 0.0, %v5232
      %v5234 = vpop.f32.mrb[0].mxu0
      %v5235 = vadd.f32 0.0, %v5234
      %5236 = vmatprep.mubr.f32.mxu0 %v4676
      %5237 = vmatmul.mubr.f32.gmra.mrb[0].mxu0 %v4201
      %v5238 = vpop.f32.mrb[0].mxu0
      %v5239 = vadd.f32 0.0, %v5238
      %v5240 = vpop.f32.mrb[0].mxu0
      %v5241 = vadd.f32 0.0, %v5240
      %5242 = vdwg.mxu0
      %5243 = vmatprep.subr.mxu0 %v4214
      %5244 = vmatpush1.msra.mxu0 %v4213
      %5245 = vmatprep.subr.mxu0 %v4239
      %5246 = vmatpush1.msra.mxu0 %v4238
      %5247 = vmatprep.subr.mxu0 %v4264
      %5248 = vmatpush1.msra.mxu0 %v4263
      %5249 = vmatprep.subr.mxu0 %v4289
      %5250 = vmatpush1.msra.mxu0 %v4288
      %5251 = vmatprep.subr.mxu0 %v4314
      %5252 = vmatpush1.msra.mxu0 %v4313
      %5253 = vmatprep.subr.mxu0 %v4339
      %5254 = vmatpush1.msra.mxu0 %v4338
      %5255 = vmatprep.subr.mxu0 %v4364
      %5256 = vmatpush1.msra.mxu0 %v4363
      %5257 = vmatprep.subr.mxu0 %v4389
      %5258 = vmatpush1.msra.mxu0 %v4388
      %5259 = vmatprep.subr.mxu0 %v4414
      %5260 = vmatpush1.msra.mxu0 %v4413
      %5261 = vmatprep.subr.mxu0 %v4439
      %5262 = vmatpush1.msra.mxu0 %v4438
      %5263 = vmatprep.subr.mxu0 %v4464
      %5264 = vmatpush1.msra.mxu0 %v4463
      %5265 = vmatprep.subr.mxu0 %v4489
      %5266 = vmatpush1.msra.mxu0 %v4488
      %5267 = vmatprep.subr.mxu0 %v4514
      %5268 = vmatpush1.msra.mxu0 %v4513
      %5269 = vmatprep.subr.mxu0 %v4539
      %5270 = vmatpush1.msra.mxu0 %v4538
      %5271 = vmatprep.subr.mxu0 %v4564
      %5272 = vmatpush1.msra.mxu0 %v4563
      %5273 = vmatprep.subr.mxu0 %v4589
      %5274 = vmatpush1.msra.mxu0 %v4588
      %5275 = vmatprep.subr.mxu0 %v4614
      %5276 = vmatpush1.msra.mxu0 %v4613
      %5277 = vmatprep.subr.mxu0 %v4639
      %5278 = vmatpush1.msra.mxu0 %v4638
      %5279 = vmatprep.subr.mxu0 0.0
      %5280 = vmatpush1.msra.mxu0 0.0
      %5281 = vmatprep.subr.mxu0 0.0
      %5282 = vmatpush1.msra.mxu0 0.0
      %5283 = vmatprep.subr.mxu0 0.0
      %5284 = vmatpush1.msra.mxu0 0.0
      %5285 = vmatprep.subr.mxu0 0.0
      %5286 = vmatpush1.msra.mxu0 0.0
      %5287 = vmatprep.subr.mxu0 0.0
      %5288 = vmatpush1.msra.mxu0 0.0
      %5289 = vmatprep.subr.mxu0 0.0
      %5290 = vmatpush1.msra.mxu0 0.0
      %5291 = vmatprep.subr.mxu0 0.0
      %5292 = vmatpush1.msra.mxu0 0.0
      %5293 = vmatprep.subr.mxu0 0.0
      %5294 = vmatpush1.msra.mxu0 0.0
      %5295 = vmatprep.subr.mxu0 0.0
      %5296 = vmatpush1.msra.mxu0 0.0
      %5297 = vmatprep.subr.mxu0 0.0
      %5298 = vmatpush1.msra.mxu0 0.0
      %5299 = vmatprep.subr.mxu0 0.0
      %5300 = vmatpush1.msra.mxu0 0.0
      %5301 = vmatprep.subr.mxu0 0.0
      %5302 = vmatpush1.msra.mxu0 0.0
      %5303 = vmatprep.subr.mxu0 0.0
      %5304 = vmatpush1.msra.mxu0 0.0
      %5305 = vmatprep.subr.mxu0 0.0
      %5306 = vmatpush1.msra.mxu0 0.0
      %5307 = vmatprep.mubr.f32.mxu0 %v4655
      %5308 = vmatmul.mubr.f32.gmra.mrb[0].mxu0 %v4187
      %v5309 = vpop.f32.mrb[0].mxu0
      %v5310 = vadd.f32 0.0, %v5309
      %v5311 = vpop.f32.mrb[0].mxu0
      %v5312 = vadd.f32 0.0, %v5311
      %5313 = vmatprep.mubr.f32.mxu0 %v4658
      %5314 = vmatmul.mubr.f32.gmra.mrb[0].mxu0 %v4189
      %v5315 = vpop.f32.mrb[0].mxu0
      %v5316 = vadd.f32 0.0, %v5315
      %v5317 = vpop.f32.mrb[0].mxu0
      %v5318 = vadd.f32 0.0, %v5317
      %5319 = vmatprep.mubr.f32.mxu0 %v4661
      %5320 = vmatmul.mubr.f32.gmra.mrb[0].mxu0 %v4191
      %v5321 = vpop.f32.mrb[0].mxu0
      %v5322 = vadd.f32 0.0, %v5321
      %v5323 = vpop.f32.mrb[0].mxu0
      %v5324 = vadd.f32 0.0, %v5323
      %5325 = vmatprep.mubr.f32.mxu0 %v4664
      %5326 = vmatmul.mubr.f32.gmra.mrb[0].mxu0 %v4193
      %v5327 = vpop.f32.mrb[0].mxu0
      %v5328 = vadd.f32 0.0, %v5327
      %v5329 = vpop.f32.mrb[0].mxu0
      %v5330 = vadd.f32 0.0, %v5329
      %5331 = vmatprep.mubr.f32.mxu0 %v4667
      %5332 = vmatmul.mubr.f32.gmra.mrb[0].mxu0 %v4195
      %v5333 = vpop.f32.mrb[0].mxu0
      %v5334 = vadd.f32 0.0, %v5333
      %v5335 = vpop.f32.mrb[0].mxu0
      %v5336 = vadd.f32 0.0, %v5335
      %5337 = vmatprep.mubr.f32.mxu0 %v4670
      %5338 = vmatmul.mubr.f32.gmra.mrb[0].mxu0 %v4197
      %v5339 = vpop.f32.mrb[0].mxu0
      %v5340 = vadd.f32 0.0, %v5339
      %v5341 = vpop.f32.mrb[0].mxu0
      %v5342 = vadd.f32 0.0, %v5341
      %5343 = vmatprep.mubr.f32.mxu0 %v4673
      %5344 = vmatmul.mubr.f32.gmra.mrb[0].mxu0 %v4199
      %v5345 = vpop.f32.mrb[0].mxu0
      %v5346 = vadd.f32 0.0, %v5345
      %v5347 = vpop.f32.mrb[0].mxu0
      %v5348 = vadd.f32 0.0, %v5347
      %5349 = vmatprep.mubr.f32.mxu0 %v4676
      %5350 = vmatmul.mubr.f32.gmra.mrb[0].mxu0 %v4201
      %v5351 = vpop.f32.mrb[0].mxu0
      %v5352 = vadd.f32 0.0, %v5351
      %v5353 = vpop.f32.mrb[0].mxu0
      %v5354 = vadd.f32 0.0, %v5353
      %5355 = vdwg.mxu0
      %5356 = vmatprep.subr.mxu0 %v4216
      %5357 = vmatpush1.msra.mxu0 %v4215
      %5358 = vmatprep.subr.mxu0 %v4241
      %5359 = vmatpush1.msra.mxu0 %v4240
      %5360 = vmatprep.subr.mxu0 %v4266
      %5361 = vmatpush1.msra.mxu0 %v4265
      %5362 = vmatprep.subr.mxu0 %v4291
      %5363 = vmatpush1.msra.mxu0 %v4290
      %5364 = vmatprep.subr.mxu0 %v4316
      %5365 = vmatpush1.msra.mxu0 %v4315
      %5366 = vmatprep.subr.mxu0 %v4341
      %5367 = vmatpush1.msra.mxu0 %v4340
      %5368 = vmatprep.subr.mxu0 %v4366
      %5369 = vmatpush1.msra.mxu0 %v4365
      %5370 = vmatprep.subr.mxu0 %v4391
      %5371 = vmatpush1.msra.mxu0 %v4390
      %5372 = vmatprep.subr.mxu0 %v4416
      %5373 = vmatpush1.msra.mxu0 %v4415
      %5374 = vmatprep.subr.mxu0 %v4441
      %5375 = vmatpush1.msra.mxu0 %v4440
      %5376 = vmatprep.subr.mxu0 %v4466
      %5377 = vmatpush1.msra.mxu0 %v4465
      %5378 = vmatprep.subr.mxu0 %v4491
      %5379 = vmatpush1.msra.mxu0 %v4490
      %5380 = vmatprep.subr.mxu0 %v4516
      %5381 = vmatpush1.msra.mxu0 %v4515
      %5382 = vmatprep.subr.mxu0 %v4541
      %5383 = vmatpush1.msra.mxu0 %v4540
      %5384 = vmatprep.subr.mxu0 %v4566
      %5385 = vmatpush1.msra.mxu0 %v4565
      %5386 = vmatprep.subr.mxu0 %v4591
      %5387 = vmatpush1.msra.mxu0 %v4590
      %5388 = vmatprep.subr.mxu0 %v4616
      %5389 = vmatpush1.msra.mxu0 %v4615
      %5390 = vmatprep.subr.mxu0 %v4641
      %5391 = vmatpush1.msra.mxu0 %v4640
      %5392 = vmatprep.subr.mxu0 0.0
      %5393 = vmatpush1.msra.mxu0 0.0
      %5394 = vmatprep.subr.mxu0 0.0
      %5395 = vmatpush1.msra.mxu0 0.0
      %5396 = vmatprep.subr.mxu0 0.0
      %5397 = vmatpush1.msra.mxu0 0.0
      %5398 = vmatprep.subr.mxu0 0.0
      %5399 = vmatpush1.msra.mxu0 0.0
      %5400 = vmatprep.subr.mxu0 0.0
      %5401 = vmatpush1.msra.mxu0 0.0
      %5402 = vmatprep.subr.mxu0 0.0
      %5403 = vmatpush1.msra.mxu0 0.0
      %5404 = vmatprep.subr.mxu0 0.0
      %5405 = vmatpush1.msra.mxu0 0.0
      %5406 = vmatprep.subr.mxu0 0.0
      %5407 = vmatpush1.msra.mxu0 0.0
      %5408 = vmatprep.subr.mxu0 0.0
      %5409 = vmatpush1.msra.mxu0 0.0
      %5410 = vmatprep.subr.mxu0 0.0
      %5411 = vmatpush1.msra.mxu0 0.0
      %5412 = vmatprep.subr.mxu0 0.0
      %5413 = vmatpush1.msra.mxu0 0.0
      %5414 = vmatprep.subr.mxu0 0.0
      %5415 = vmatpush1.msra.mxu0 0.0
      %5416 = vmatprep.subr.mxu0 0.0
      %5417 = vmatpush1.msra.mxu0 0.0
      %5418 = vmatprep.subr.mxu0 0.0
      %5419 = vmatpush1.msra.mxu0 0.0
      %5420 = vmatprep.mubr.f32.mxu0 %v4655
      %5421 = vmatmul.mubr.f32.gmra.mrb[0].mxu0 %v4187
      %v5422 = vpop.f32.mrb[0].mxu0
      %v5423 = vadd.f32 0.0, %v5422
      %v5424 = vpop.f32.mrb[0].mxu0
      %v5425 = vadd.f32 0.0, %v5424
      %5426 = vmatprep.mubr.f32.mxu0 %v4658
      %5427 = vmatmul.mubr.f32.gmra.mrb[0].mxu0 %v4189
      %v5428 = vpop.f32.mrb[0].mxu0
      %v5429 = vadd.f32 0.0, %v5428
      %v5430 = vpop.f32.mrb[0].mxu0
      %v5431 = vadd.f32 0.0, %v5430
      %5432 = vmatprep.mubr.f32.mxu0 %v4661
      %5433 = vmatmul.mubr.f32.gmra.mrb[0].mxu0 %v4191
      %v5434 = vpop.f32.mrb[0].mxu0
      %v5435 = vadd.f32 0.0, %v5434
      %v5436 = vpop.f32.mrb[0].mxu0
      %v5437 = vadd.f32 0.0, %v5436
      %5438 = vmatprep.mubr.f32.mxu0 %v4664
      %5439 = vmatmul.mubr.f32.gmra.mrb[0].mxu0 %v4193
      %v5440 = vpop.f32.mrb[0].mxu0
      %v5441 = vadd.f32 0.0, %v5440
      %v5442 = vpop.f32.mrb[0].mxu0
      %v5443 = vadd.f32 0.0, %v5442
      %5444 = vmatprep.mubr.f32.mxu0 %v4667
      %5445 = vmatmul.mubr.f32.gmra.mrb[0].mxu0 %v4195
      %v5446 = vpop.f32.mrb[0].mxu0
      %v5447 = vadd.f32 0.0, %v5446
      %v5448 = vpop.f32.mrb[0].mxu0
      %v5449 = vadd.f32 0.0, %v5448
      %5450 = vmatprep.mubr.f32.mxu0 %v4670
      %5451 = vmatmul.mubr.f32.gmra.mrb[0].mxu0 %v4197
      %v5452 = vpop.f32.mrb[0].mxu0
      %v5453 = vadd.f32 0.0, %v5452
      %v5454 = vpop.f32.mrb[0].mxu0
      %v5455 = vadd.f32 0.0, %v5454
      %5456 = vmatprep.mubr.f32.mxu0 %v4673
      %5457 = vmatmul.mubr.f32.gmra.mrb[0].mxu0 %v4199
      %v5458 = vpop.f32.mrb[0].mxu0
      %v5459 = vadd.f32 0.0, %v5458
      %v5460 = vpop.f32.mrb[0].mxu0
      %v5461 = vadd.f32 0.0, %v5460
      %5462 = vmatprep.mubr.f32.mxu0 %v4676
      %5463 = vmatmul.mubr.f32.gmra.mrb[0].mxu0 %v4201
      %v5464 = vpop.f32.mrb[0].mxu0
      %v5465 = vadd.f32 0.0, %v5464
      %v5466 = vpop.f32.mrb[0].mxu0
      %v5467 = vadd.f32 0.0, %v5466
      %5468 = vdwg.mxu0
      %5469 = vmatprep.subr.mxu0 %v4218
      %5470 = vmatpush1.msra.mxu0 %v4217
      %5471 = vmatprep.subr.mxu0 %v4243
      %5472 = vmatpush1.msra.mxu0 %v4242
      %5473 = vmatprep.subr.mxu0 %v4268
      %5474 = vmatpush1.msra.mxu0 %v4267
      %5475 = vmatprep.subr.mxu0 %v4293
      %5476 = vmatpush1.msra.mxu0 %v4292
      %5477 = vmatprep.subr.mxu0 %v4318
      %5478 = vmatpush1.msra.mxu0 %v4317
      %5479 = vmatprep.subr.mxu0 %v4343
      %5480 = vmatpush1.msra.mxu0 %v4342
      %5481 = vmatprep.subr.mxu0 %v4368
      %5482 = vmatpush1.msra.mxu0 %v4367
      %5483 = vmatprep.subr.mxu0 %v4393
      %5484 = vmatpush1.msra.mxu0 %v4392
      %5485 = vmatprep.subr.mxu0 %v4418
      %5486 = vmatpush1.msra.mxu0 %v4417
      %5487 = vmatprep.subr.mxu0 %v4443
      %5488 = vmatpush1.msra.mxu0 %v4442
      %5489 = vmatprep.subr.mxu0 %v4468
      %5490 = vmatpush1.msra.mxu0 %v4467
      %5491 = vmatprep.subr.mxu0 %v4493
      %5492 = vmatpush1.msra.mxu0 %v4492
      %5493 = vmatprep.subr.mxu0 %v4518
      %5494 = vmatpush1.msra.mxu0 %v4517
      %5495 = vmatprep.subr.mxu0 %v4543
      %5496 = vmatpush1.msra.mxu0 %v4542
      %5497 = vmatprep.subr.mxu0 %v4568
      %5498 = vmatpush1.msra.mxu0 %v4567
      %5499 = vmatprep.subr.mxu0 %v4593
      %5500 = vmatpush1.msra.mxu0 %v4592
      %5501 = vmatprep.subr.mxu0 %v4618
      %5502 = vmatpush1.msra.mxu0 %v4617
      %5503 = vmatprep.subr.mxu0 %v4643
      %5504 = vmatpush1.msra.mxu0 %v4642
      %5505 = vmatprep.subr.mxu0 0.0
      %5506 = vmatpush1.msra.mxu0 0.0
      %5507 = vmatprep.subr.mxu0 0.0
      %5508 = vmatpush1.msra.mxu0 0.0
      %5509 = vmatprep.subr.mxu0 0.0
      %5510 = vmatpush1.msra.mxu0 0.0
      %5511 = vmatprep.subr.mxu0 0.0
      %5512 = vmatpush1.msra.mxu0 0.0
      %5513 = vmatprep.subr.mxu0 0.0
      %5514 = vmatpush1.msra.mxu0 0.0
      %5515 = vmatprep.subr.mxu0 0.0
      %5516 = vmatpush1.msra.mxu0 0.0
      %5517 = vmatprep.subr.mxu0 0.0
      %5518 = vmatpush1.msra.mxu0 0.0
      %5519 = vmatprep.subr.mxu0 0.0
      %5520 = vmatpush1.msra.mxu0 0.0
      %5521 = vmatprep.subr.mxu0 0.0
      %5522 = vmatpush1.msra.mxu0 0.0
      %5523 = vmatprep.subr.mxu0 0.0
      %5524 = vmatpush1.msra.mxu0 0.0
      %5525 = vmatprep.subr.mxu0 0.0
      %5526 = vmatpush1.msra.mxu0 0.0
      %5527 = vmatprep.subr.mxu0 0.0
      %5528 = vmatpush1.msra.mxu0 0.0
      %5529 = vmatprep.subr.mxu0 0.0
      %5530 = vmatpush1.msra.mxu0 0.0
      %5531 = vmatprep.subr.mxu0 0.0
      %5532 = vmatpush1.msra.mxu0 0.0
      %5533 = vmatprep.mubr.f32.mxu0 %v4655
      %5534 = vmatmul.mubr.f32.gmra.mrb[0].mxu0 %v4187
      %v5535 = vpop.f32.mrb[0].mxu0
      %v5536 = vadd.f32 0.0, %v5535
      %v5537 = vpop.f32.mrb[0].mxu0
      %v5538 = vadd.f32 0.0, %v5537
      %5539 = vmatprep.mubr.f32.mxu0 %v4658
      %5540 = vmatmul.mubr.f32.gmra.mrb[0].mxu0 %v4189
      %v5541 = vpop.f32.mrb[0].mxu0
      %v5542 = vadd.f32 0.0, %v5541
      %v5543 = vpop.f32.mrb[0].mxu0
      %v5544 = vadd.f32 0.0, %v5543
      %5545 = vmatprep.mubr.f32.mxu0 %v4661
      %5546 = vmatmul.mubr.f32.gmra.mrb[0].mxu0 %v4191
      %v5547 = vpop.f32.mrb[0].mxu0
      %v5548 = vadd.f32 0.0, %v5547
      %v5549 = vpop.f32.mrb[0].mxu0
      %v5550 = vadd.f32 0.0, %v5549
      %5551 = vmatprep.mubr.f32.mxu0 %v4664
      %5552 = vmatmul.mubr.f32.gmra.mrb[0].mxu0 %v4193
      %v5553 = vpop.f32.mrb[0].mxu0
      %v5554 = vadd.f32 0.0, %v5553
      %v5555 = vpop.f32.mrb[0].mxu0
      %v5556 = vadd.f32 0.0, %v5555
      %5557 = vmatprep.mubr.f32.mxu0 %v4667
      %5558 = vmatmul.mubr.f32.gmra.mrb[0].mxu0 %v4195
      %v5559 = vpop.f32.mrb[0].mxu0
      %v5560 = vadd.f32 0.0, %v5559
      %v5561 = vpop.f32.mrb[0].mxu0
      %v5562 = vadd.f32 0.0, %v5561
      %5563 = vmatprep.mubr.f32.mxu0 %v4670
      %5564 = vmatmul.mubr.f32.gmra.mrb[0].mxu0 %v4197
      %v5565 = vpop.f32.mrb[0].mxu0
      %v5566 = vadd.f32 0.0, %v5565
      %v5567 = vpop.f32.mrb[0].mxu0
      %v5568 = vadd.f32 0.0, %v5567
      %5569 = vmatprep.mubr.f32.mxu0 %v4673
      %5570 = vmatmul.mubr.f32.gmra.mrb[0].mxu0 %v4199
      %v5571 = vpop.f32.mrb[0].mxu0
      %v5572 = vadd.f32 0.0, %v5571
      %v5573 = vpop.f32.mrb[0].mxu0
      %v5574 = vadd.f32 0.0, %v5573
      %5575 = vmatprep.mubr.f32.mxu0 %v4676
      %5576 = vmatmul.mubr.f32.gmra.mrb[0].mxu0 %v4201
      %v5577 = vpop.f32.mrb[0].mxu0
      %v5578 = vadd.f32 0.0, %v5577
      %v5579 = vpop.f32.mrb[0].mxu0
      %v5580 = vadd.f32 0.0, %v5579
      %5581 = vdwg.mxu0
      %5582 = vmatprep.subr.mxu0 %v4220
      %5583 = vmatpush1.msra.mxu0 %v4219
      %5584 = vmatprep.subr.mxu0 %v4245
      %5585 = vmatpush1.msra.mxu0 %v4244
      %5586 = vmatprep.subr.mxu0 %v4270
      %5587 = vmatpush1.msra.mxu0 %v4269
      %5588 = vmatprep.subr.mxu0 %v4295
      %5589 = vmatpush1.msra.mxu0 %v4294
      %5590 = vmatprep.subr.mxu0 %v4320
      %5591 = vmatpush1.msra.mxu0 %v4319
      %5592 = vmatprep.subr.mxu0 %v4345
      %5593 = vmatpush1.msra.mxu0 %v4344
      %5594 = vmatprep.subr.mxu0 %v4370
      %5595 = vmatpush1.msra.mxu0 %v4369
      %5596 = vmatprep.subr.mxu0 %v4395
      %5597 = vmatpush1.msra.mxu0 %v4394
      %5598 = vmatprep.subr.mxu0 %v4420
      %5599 = vmatpush1.msra.mxu0 %v4419
      %5600 = vmatprep.subr.mxu0 %v4445
      %5601 = vmatpush1.msra.mxu0 %v4444
      %5602 = vmatprep.subr.mxu0 %v4470
      %5603 = vmatpush1.msra.mxu0 %v4469
      %5604 = vmatprep.subr.mxu0 %v4495
      %5605 = vmatpush1.msra.mxu0 %v4494
      %5606 = vmatprep.subr.mxu0 %v4520
      %5607 = vmatpush1.msra.mxu0 %v4519
      %5608 = vmatprep.subr.mxu0 %v4545
      %5609 = vmatpush1.msra.mxu0 %v4544
      %5610 = vmatprep.subr.mxu0 %v4570
      %5611 = vmatpush1.msra.mxu0 %v4569
      %5612 = vmatprep.subr.mxu0 %v4595
      %5613 = vmatpush1.msra.mxu0 %v4594
      %5614 = vmatprep.subr.mxu0 %v4620
      %5615 = vmatpush1.msra.mxu0 %v4619
      %5616 = vmatprep.subr.mxu0 %v4645
      %5617 = vmatpush1.msra.mxu0 %v4644
      %5618 = vmatprep.subr.mxu0 0.0
      %5619 = vmatpush1.msra.mxu0 0.0
      %5620 = vmatprep.subr.mxu0 0.0
      %5621 = vmatpush1.msra.mxu0 0.0
      %5622 = vmatprep.subr.mxu0 0.0
      %5623 = vmatpush1.msra.mxu0 0.0
      %5624 = vmatprep.subr.mxu0 0.0
      %5625 = vmatpush1.msra.mxu0 0.0
      %5626 = vmatprep.subr.mxu0 0.0
      %5627 = vmatpush1.msra.mxu0 0.0
      %5628 = vmatprep.subr.mxu0 0.0
      %5629 = vmatpush1.msra.mxu0 0.0
      %5630 = vmatprep.subr.mxu0 0.0
      %5631 = vmatpush1.msra.mxu0 0.0
      %5632 = vmatprep.subr.mxu0 0.0
      %5633 = vmatpush1.msra.mxu0 0.0
      %5634 = vmatprep.subr.mxu0 0.0
      %5635 = vmatpush1.msra.mxu0 0.0
      %5636 = vmatprep.subr.mxu0 0.0
      %5637 = vmatpush1.msra.mxu0 0.0
      %5638 = vmatprep.subr.mxu0 0.0
      %5639 = vmatpush1.msra.mxu0 0.0
      %5640 = vmatprep.subr.mxu0 0.0
      %5641 = vmatpush1.msra.mxu0 0.0
      %5642 = vmatprep.subr.mxu0 0.0
      %5643 = vmatpush1.msra.mxu0 0.0
      %5644 = vmatprep.subr.mxu0 0.0
      %5645 = vmatpush1.msra.mxu0 0.0
      %5646 = vmatprep.mubr.f32.mxu0 %v4655
      %5647 = vmatmul.mubr.f32.gmra.mrb[0].mxu0 %v4187
      %v5648 = vpop.f32.mrb[0].mxu0
      %v5649 = vadd.f32 0.0, %v5648
      %v5650 = vpop.f32.mrb[0].mxu0
      %v5651 = vadd.f32 0.0, %v5650
      %5652 = vmatprep.mubr.f32.mxu0 %v4658
      %5653 = vmatmul.mubr.f32.gmra.mrb[0].mxu0 %v4189
      %v5654 = vpop.f32.mrb[0].mxu0
      %v5655 = vadd.f32 0.0, %v5654
      %v5656 = vpop.f32.mrb[0].mxu0
      %v5657 = vadd.f32 0.0, %v5656
      %5658 = vmatprep.mubr.f32.mxu0 %v4661
      %5659 = vmatmul.mubr.f32.gmra.mrb[0].mxu0 %v4191
      %v5660 = vpop.f32.mrb[0].mxu0
      %v5661 = vadd.f32 0.0, %v5660
      %v5662 = vpop.f32.mrb[0].mxu0
      %v5663 = vadd.f32 0.0, %v5662
      %5664 = vmatprep.mubr.f32.mxu0 %v4664
      %5665 = vmatmul.mubr.f32.gmra.mrb[0].mxu0 %v4193
      %v5666 = vpop.f32.mrb[0].mxu0
      %v5667 = vadd.f32 0.0, %v5666
      %v5668 = vpop.f32.mrb[0].mxu0
      %v5669 = vadd.f32 0.0, %v5668
      %5670 = vmatprep.mubr.f32.mxu0 %v4667
      %5671 = vmatmul.mubr.f32.gmra.mrb[0].mxu0 %v4195
      %v5672 = vpop.f32.mrb[0].mxu0
      %v5673 = vadd.f32 0.0, %v5672
      %v5674 = vpop.f32.mrb[0].mxu0
      %v5675 = vadd.f32 0.0, %v5674
      %5676 = vmatprep.mubr.f32.mxu0 %v4670
      %5677 = vmatmul.mubr.f32.gmra.mrb[0].mxu0 %v4197
      %v5678 = vpop.f32.mrb[0].mxu0
      %v5679 = vadd.f32 0.0, %v5678
      %v5680 = vpop.f32.mrb[0].mxu0
      %v5681 = vadd.f32 0.0, %v5680
      %5682 = vmatprep.mubr.f32.mxu0 %v4673
      %5683 = vmatmul.mubr.f32.gmra.mrb[0].mxu0 %v4199
      %v5684 = vpop.f32.mrb[0].mxu0
      %v5685 = vadd.f32 0.0, %v5684
      %v5686 = vpop.f32.mrb[0].mxu0
      %v5687 = vadd.f32 0.0, %v5686
      %5688 = vmatprep.mubr.f32.mxu0 %v4676
      %5689 = vmatmul.mubr.f32.gmra.mrb[0].mxu0 %v4201
      %v5690 = vpop.f32.mrb[0].mxu0
      %v5691 = vadd.f32 0.0, %v5690
      %v5692 = vpop.f32.mrb[0].mxu0
      %v5693 = vadd.f32 0.0, %v5692
      %5694 = vdwg.mxu0
      %5695 = vmatprep.subr.mxu0 %v4222
      %5696 = vmatpush1.msra.mxu0 %v4221
      %5697 = vmatprep.subr.mxu0 %v4247
      %5698 = vmatpush1.msra.mxu0 %v4246
      %5699 = vmatprep.subr.mxu0 %v4272
      %5700 = vmatpush1.msra.mxu0 %v4271
      %5701 = vmatprep.subr.mxu0 %v4297
      %5702 = vmatpush1.msra.mxu0 %v4296
      %5703 = vmatprep.subr.mxu0 %v4322
      %5704 = vmatpush1.msra.mxu0 %v4321
      %5705 = vmatprep.subr.mxu0 %v4347
      %5706 = vmatpush1.msra.mxu0 %v4346
      %5707 = vmatprep.subr.mxu0 %v4372
      %5708 = vmatpush1.msra.mxu0 %v4371
      %5709 = vmatprep.subr.mxu0 %v4397
      %5710 = vmatpush1.msra.mxu0 %v4396
      %5711 = vmatprep.subr.mxu0 %v4422
      %5712 = vmatpush1.msra.mxu0 %v4421
      %5713 = vmatprep.subr.mxu0 %v4447
      %5714 = vmatpush1.msra.mxu0 %v4446
      %5715 = vmatprep.subr.mxu0 %v4472
      %5716 = vmatpush1.msra.mxu0 %v4471
      %5717 = vmatprep.subr.mxu0 %v4497
      %5718 = vmatpush1.msra.mxu0 %v4496
      %5719 = vmatprep.subr.mxu0 %v4522
      %5720 = vmatpush1.msra.mxu0 %v4521
      %5721 = vmatprep.subr.mxu0 %v4547
      %5722 = vmatpush1.msra.mxu0 %v4546
      %5723 = vmatprep.subr.mxu0 %v4572
      %5724 = vmatpush1.msra.mxu0 %v4571
      %5725 = vmatprep.subr.mxu0 %v4597
      %5726 = vmatpush1.msra.mxu0 %v4596
      %5727 = vmatprep.subr.mxu0 %v4622
      %5728 = vmatpush1.msra.mxu0 %v4621
      %5729 = vmatprep.subr.mxu0 %v4647
      %5730 = vmatpush1.msra.mxu0 %v4646
      %5731 = vmatprep.subr.mxu0 0.0
      %5732 = vmatpush1.msra.mxu0 0.0
      %5733 = vmatprep.subr.mxu0 0.0
      %5734 = vmatpush1.msra.mxu0 0.0
      %5735 = vmatprep.subr.mxu0 0.0
      %5736 = vmatpush1.msra.mxu0 0.0
      %5737 = vmatprep.subr.mxu0 0.0
      %5738 = vmatpush1.msra.mxu0 0.0
      %5739 = vmatprep.subr.mxu0 0.0
      %5740 = vmatpush1.msra.mxu0 0.0
      %5741 = vmatprep.subr.mxu0 0.0
      %5742 = vmatpush1.msra.mxu0 0.0
      %5743 = vmatprep.subr.mxu0 0.0
      %5744 = vmatpush1.msra.mxu0 0.0
      %5745 = vmatprep.subr.mxu0 0.0
      %5746 = vmatpush1.msra.mxu0 0.0
      %5747 = vmatprep.subr.mxu0 0.0
      %5748 = vmatpush1.msra.mxu0 0.0
      %5749 = vmatprep.subr.mxu0 0.0
      %5750 = vmatpush1.msra.mxu0 0.0
      %5751 = vmatprep.subr.mxu0 0.0
      %5752 = vmatpush1.msra.mxu0 0.0
      %5753 = vmatprep.subr.mxu0 0.0
      %5754 = vmatpush1.msra.mxu0 0.0
      %5755 = vmatprep.subr.mxu0 0.0
      %5756 = vmatpush1.msra.mxu0 0.0
      %5757 = vmatprep.subr.mxu0 0.0
      %5758 = vmatpush1.msra.mxu0 0.0
      %5759 = vmatprep.mubr.f32.mxu0 %v4655
      %5760 = vmatmul.mubr.f32.gmra.mrb[0].mxu0 %v4187
      %v5761 = vpop.f32.mrb[0].mxu0
      %v5762 = vadd.f32 0.0, %v5761
      %v5763 = vpop.f32.mrb[0].mxu0
      %v5764 = vadd.f32 0.0, %v5763
      %5765 = vmatprep.mubr.f32.mxu0 %v4658
      %5766 = vmatmul.mubr.f32.gmra.mrb[0].mxu0 %v4189
      %v5767 = vpop.f32.mrb[0].mxu0
      %v5768 = vadd.f32 0.0, %v5767
      %v5769 = vpop.f32.mrb[0].mxu0
      %v5770 = vadd.f32 0.0, %v5769
      %5771 = vmatprep.mubr.f32.mxu0 %v4661
      %5772 = vmatmul.mubr.f32.gmra.mrb[0].mxu0 %v4191
      %v5773 = vpop.f32.mrb[0].mxu0
      %v5774 = vadd.f32 0.0, %v5773
      %v5775 = vpop.f32.mrb[0].mxu0
      %v5776 = vadd.f32 0.0, %v5775
      %5777 = vmatprep.mubr.f32.mxu0 %v4664
      %5778 = vmatmul.mubr.f32.gmra.mrb[0].mxu0 %v4193
      %v5779 = vpop.f32.mrb[0].mxu0
      %v5780 = vadd.f32 0.0, %v5779
      %v5781 = vpop.f32.mrb[0].mxu0
      %v5782 = vadd.f32 0.0, %v5781
      %5783 = vmatprep.mubr.f32.mxu0 %v4667
      %5784 = vmatmul.mubr.f32.gmra.mrb[0].mxu0 %v4195
      %v5785 = vpop.f32.mrb[0].mxu0
      %v5786 = vadd.f32 0.0, %v5785
      %v5787 = vpop.f32.mrb[0].mxu0
      %v5788 = vadd.f32 0.0, %v5787
      %5789 = vmatprep.mubr.f32.mxu0 %v4670
      %5790 = vmatmul.mubr.f32.gmra.mrb[0].mxu0 %v4197
      %v5791 = vpop.f32.mrb[0].mxu0
      %v5792 = vadd.f32 0.0, %v5791
      %v5793 = vpop.f32.mrb[0].mxu0
      %v5794 = vadd.f32 0.0, %v5793
      %5795 = vmatprep.mubr.f32.mxu0 %v4673
      %5796 = vmatmul.mubr.f32.gmra.mrb[0].mxu0 %v4199
      %v5797 = vpop.f32.mrb[0].mxu0
      %v5798 = vadd.f32 0.0, %v5797
      %v5799 = vpop.f32.mrb[0].mxu0
      %v5800 = vadd.f32 0.0, %v5799
      %5801 = vmatprep.mubr.f32.mxu0 %v4676
      %5802 = vmatmul.mubr.f32.gmra.mrb[0].mxu0 %v4201
      %v5803 = vpop.f32.mrb[0].mxu0
      %v5804 = vadd.f32 0.0, %v5803
      %v5805 = vpop.f32.mrb[0].mxu0
      %v5806 = vadd.f32 0.0, %v5805
      %5807 = vdwg.mxu0
      %5808 = vmatprep.subr.mxu0 %v4224
      %5809 = vmatpush1.msra.mxu0 %v4223
      %5810 = vmatprep.subr.mxu0 %v4249
      %5811 = vmatpush1.msra.mxu0 %v4248
      %5812 = vmatprep.subr.mxu0 %v4274
      %5813 = vmatpush1.msra.mxu0 %v4273
      %5814 = vmatprep.subr.mxu0 %v4299
      %5815 = vmatpush1.msra.mxu0 %v4298
      %5816 = vmatprep.subr.mxu0 %v4324
      %5817 = vmatpush1.msra.mxu0 %v4323
      %5818 = vmatprep.subr.mxu0 %v4349
      %5819 = vmatpush1.msra.mxu0 %v4348
      %5820 = vmatprep.subr.mxu0 %v4374
      %5821 = vmatpush1.msra.mxu0 %v4373
      %5822 = vmatprep.subr.mxu0 %v4399
      %5823 = vmatpush1.msra.mxu0 %v4398
      %5824 = vmatprep.subr.mxu0 %v4424
      %5825 = vmatpush1.msra.mxu0 %v4423
      %5826 = vmatprep.subr.mxu0 %v4449
      %5827 = vmatpush1.msra.mxu0 %v4448
      %5828 = vmatprep.subr.mxu0 %v4474
      %5829 = vmatpush1.msra.mxu0 %v4473
      %5830 = vmatprep.subr.mxu0 %v4499
      %5831 = vmatpush1.msra.mxu0 %v4498
      %5832 = vmatprep.subr.mxu0 %v4524
      %5833 = vmatpush1.msra.mxu0 %v4523
      %5834 = vmatprep.subr.mxu0 %v4549
      %5835 = vmatpush1.msra.mxu0 %v4548
      %5836 = vmatprep.subr.mxu0 %v4574
      %5837 = vmatpush1.msra.mxu0 %v4573
      %5838 = vmatprep.subr.mxu0 %v4599
      %5839 = vmatpush1.msra.mxu0 %v4598
      %5840 = vmatprep.subr.mxu0 %v4624
      %5841 = vmatpush1.msra.mxu0 %v4623
      %5842 = vmatprep.subr.mxu0 %v4649
      %5843 = vmatpush1.msra.mxu0 %v4648
      %5844 = vmatprep.subr.mxu0 0.0
      %5845 = vmatpush1.msra.mxu0 0.0
      %5846 = vmatprep.subr.mxu0 0.0
      %5847 = vmatpush1.msra.mxu0 0.0
      %5848 = vmatprep.subr.mxu0 0.0
      %5849 = vmatpush1.msra.mxu0 0.0
      %5850 = vmatprep.subr.mxu0 0.0
      %5851 = vmatpush1.msra.mxu0 0.0
      %5852 = vmatprep.subr.mxu0 0.0
      %5853 = vmatpush1.msra.mxu0 0.0
      %5854 = vmatprep.subr.mxu0 0.0
      %5855 = vmatpush1.msra.mxu0 0.0
      %5856 = vmatprep.subr.mxu0 0.0
      %5857 = vmatpush1.msra.mxu0 0.0
      %5858 = vmatprep.subr.mxu0 0.0
      %5859 = vmatpush1.msra.mxu0 0.0
      %5860 = vmatprep.subr.mxu0 0.0
      %5861 = vmatpush1.msra.mxu0 0.0
      %5862 = vmatprep.subr.mxu0 0.0
      %5863 = vmatpush1.msra.mxu0 0.0
      %5864 = vmatprep.subr.mxu0 0.0
      %5865 = vmatpush1.msra.mxu0 0.0
      %5866 = vmatprep.subr.mxu0 0.0
      %5867 = vmatpush1.msra.mxu0 0.0
      %5868 = vmatprep.subr.mxu0 0.0
      %5869 = vmatpush1.msra.mxu0 0.0
      %5870 = vmatprep.subr.mxu0 0.0
      %5871 = vmatpush1.msra.mxu0 0.0
      %5872 = vmatprep.mubr.f32.mxu0 %v4655
      %5873 = vmatmul.mubr.f32.gmra.mrb[0].mxu0 %v4187
      %v5874 = vpop.f32.mrb[0].mxu0
      %v5875 = vadd.f32 0.0, %v5874
      %v5876 = vpop.f32.mrb[0].mxu0
      %v5877 = vadd.f32 0.0, %v5876
      %5878 = vmatprep.mubr.f32.mxu0 %v4658
      %5879 = vmatmul.mubr.f32.gmra.mrb[0].mxu0 %v4189
      %v5880 = vpop.f32.mrb[0].mxu0
      %v5881 = vadd.f32 0.0, %v5880
      %v5882 = vpop.f32.mrb[0].mxu0
      %v5883 = vadd.f32 0.0, %v5882
      %5884 = vmatprep.mubr.f32.mxu0 %v4661
      %5885 = vmatmul.mubr.f32.gmra.mrb[0].mxu0 %v4191
      %v5886 = vpop.f32.mrb[0].mxu0
      %v5887 = vadd.f32 0.0, %v5886
      %v5888 = vpop.f32.mrb[0].mxu0
      %v5889 = vadd.f32 0.0, %v5888
      %5890 = vmatprep.mubr.f32.mxu0 %v4664
      %5891 = vmatmul.mubr.f32.gmra.mrb[0].mxu0 %v4193
      %v5892 = vpop.f32.mrb[0].mxu0
      %v5893 = vadd.f32 0.0, %v5892
      %v5894 = vpop.f32.mrb[0].mxu0
      %v5895 = vadd.f32 0.0, %v5894
      %5896 = vmatprep.mubr.f32.mxu0 %v4667
      %5897 = vmatmul.mubr.f32.gmra.mrb[0].mxu0 %v4195
      %v5898 = vpop.f32.mrb[0].mxu0
      %v5899 = vadd.f32 0.0, %v5898
      %v5900 = vpop.f32.mrb[0].mxu0
      %v5901 = vadd.f32 0.0, %v5900
      %5902 = vmatprep.mubr.f32.mxu0 %v4670
      %5903 = vmatmul.mubr.f32.gmra.mrb[0].mxu0 %v4197
      %v5904 = vpop.f32.mrb[0].mxu0
      %v5905 = vadd.f32 0.0, %v5904
      %v5906 = vpop.f32.mrb[0].mxu0
      %v5907 = vadd.f32 0.0, %v5906
      %5908 = vmatprep.mubr.f32.mxu0 %v4673
      %5909 = vmatmul.mubr.f32.gmra.mrb[0].mxu0 %v4199
      %v5910 = vpop.f32.mrb[0].mxu0
      %v5911 = vadd.f32 0.0, %v5910
      %v5912 = vpop.f32.mrb[0].mxu0
      %v5913 = vadd.f32 0.0, %v5912
      %5914 = vmatprep.mubr.f32.mxu0 %v4676
      %5915 = vmatmul.mubr.f32.gmra.mrb[0].mxu0 %v4201
      %v5916 = vpop.f32.mrb[0].mxu0
      %v5917 = vadd.f32 0.0, %v5916
      %v5918 = vpop.f32.mrb[0].mxu0
      %v5919 = vadd.f32 0.0, %v5918
      %5920 = vdwg.mxu0
      %5921 = vmatprep.subr.mxu0 %v4226
      %5922 = vmatpush1.msra.mxu0 %v4225
      %5923 = vmatprep.subr.mxu0 %v4251
      %5924 = vmatpush1.msra.mxu0 %v4250
      %5925 = vmatprep.subr.mxu0 %v4276
      %5926 = vmatpush1.msra.mxu0 %v4275
      %5927 = vmatprep.subr.mxu0 %v4301
      %5928 = vmatpush1.msra.mxu0 %v4300
      %5929 = vmatprep.subr.mxu0 %v4326
      %5930 = vmatpush1.msra.mxu0 %v4325
      %5931 = vmatprep.subr.mxu0 %v4351
      %5932 = vmatpush1.msra.mxu0 %v4350
      %5933 = vmatprep.subr.mxu0 %v4376
      %5934 = vmatpush1.msra.mxu0 %v4375
      %5935 = vmatprep.subr.mxu0 %v4401
      %5936 = vmatpush1.msra.mxu0 %v4400
      %5937 = vmatprep.subr.mxu0 %v4426
      %5938 = vmatpush1.msra.mxu0 %v4425
      %5939 = vmatprep.subr.mxu0 %v4451
      %5940 = vmatpush1.msra.mxu0 %v4450
      %5941 = vmatprep.subr.mxu0 %v4476
      %5942 = vmatpush1.msra.mxu0 %v4475
      %5943 = vmatprep.subr.mxu0 %v4501
      %5944 = vmatpush1.msra.mxu0 %v4500
      %5945 = vmatprep.subr.mxu0 %v4526
      %5946 = vmatpush1.msra.mxu0 %v4525
      %5947 = vmatprep.subr.mxu0 %v4551
      %5948 = vmatpush1.msra.mxu0 %v4550
      %5949 = vmatprep.subr.mxu0 %v4576
      %5950 = vmatpush1.msra.mxu0 %v4575
      %5951 = vmatprep.subr.mxu0 %v4601
      %5952 = vmatpush1.msra.mxu0 %v4600
      %5953 = vmatprep.subr.mxu0 %v4626
      %5954 = vmatpush1.msra.mxu0 %v4625
      %5955 = vmatprep.subr.mxu0 %v4651
      %5956 = vmatpush1.msra.mxu0 %v4650
      %5957 = vmatprep.subr.mxu0 0.0
      %5958 = vmatpush1.msra.mxu0 0.0
      %5959 = vmatprep.subr.mxu0 0.0
      %5960 = vmatpush1.msra.mxu0 0.0
      %5961 = vmatprep.subr.mxu0 0.0
      %5962 = vmatpush1.msra.mxu0 0.0
      %5963 = vmatprep.subr.mxu0 0.0
      %5964 = vmatpush1.msra.mxu0 0.0
      %5965 = vmatprep.subr.mxu0 0.0
      %5966 = vmatpush1.msra.mxu0 0.0
      %5967 = vmatprep.subr.mxu0 0.0
      %5968 = vmatpush1.msra.mxu0 0.0
      %5969 = vmatprep.subr.mxu0 0.0
      %5970 = vmatpush1.msra.mxu0 0.0
      %5971 = vmatprep.subr.mxu0 0.0
      %5972 = vmatpush1.msra.mxu0 0.0
      %5973 = vmatprep.subr.mxu0 0.0
      %5974 = vmatpush1.msra.mxu0 0.0
      %5975 = vmatprep.subr.mxu0 0.0
      %5976 = vmatpush1.msra.mxu0 0.0
      %5977 = vmatprep.subr.mxu0 0.0
      %5978 = vmatpush1.msra.mxu0 0.0
      %5979 = vmatprep.subr.mxu0 0.0
      %5980 = vmatpush1.msra.mxu0 0.0
      %5981 = vmatprep.subr.mxu0 0.0
      %5982 = vmatpush1.msra.mxu0 0.0
      %5983 = vmatprep.subr.mxu0 0.0
      %5984 = vmatpush1.msra.mxu0 0.0
      %5985 = vmatprep.mubr.f32.mxu0 %v4655
      %5986 = vmatmul.mubr.f32.gmra.mrb[0].mxu0 %v4187
      %v5987 = vpop.f32.mrb[0].mxu0
      %v5988 = vadd.f32 0.0, %v5987
      %v5989 = vpop.f32.mrb[0].mxu0
      %v5990 = vadd.f32 0.0, %v5989
      %5991 = vmatprep.mubr.f32.mxu0 %v4658
      %5992 = vmatmul.mubr.f32.gmra.mrb[0].mxu0 %v4189
      %v5993 = vpop.f32.mrb[0].mxu0
      %v5994 = vadd.f32 0.0, %v5993
      %v5995 = vpop.f32.mrb[0].mxu0
      %v5996 = vadd.f32 0.0, %v5995
      %5997 = vmatprep.mubr.f32.mxu0 %v4661
      %5998 = vmatmul.mubr.f32.gmra.mrb[0].mxu0 %v4191
      %v5999 = vpop.f32.mrb[0].mxu0
      %v6000 = vadd.f32 0.0, %v5999
      %v6001 = vpop.f32.mrb[0].mxu0
      %v6002 = vadd.f32 0.0, %v6001
      %6003 = vmatprep.mubr.f32.mxu0 %v4664
      %6004 = vmatmul.mubr.f32.gmra.mrb[0].mxu0 %v4193
      %v6005 = vpop.f32.mrb[0].mxu0
      %v6006 = vadd.f32 0.0, %v6005
      %v6007 = vpop.f32.mrb[0].mxu0
      %v6008 = vadd.f32 0.0, %v6007
      %6009 = vmatprep.mubr.f32.mxu0 %v4667
      %6010 = vmatmul.mubr.f32.gmra.mrb[0].mxu0 %v4195
      %v6011 = vpop.f32.mrb[0].mxu0
      %v6012 = vadd.f32 0.0, %v6011
      %v6013 = vpop.f32.mrb[0].mxu0
      %v6014 = vadd.f32 0.0, %v6013
      %6015 = vmatprep.mubr.f32.mxu0 %v4670
      %6016 = vmatmul.mubr.f32.gmra.mrb[0].mxu0 %v4197
      %v6017 = vpop.f32.mrb[0].mxu0
      %v6018 = vadd.f32 0.0, %v6017
      %v6019 = vpop.f32.mrb[0].mxu0
      %v6020 = vadd.f32 0.0, %v6019
      %6021 = vmatprep.mubr.f32.mxu0 %v4673
      %6022 = vmatmul.mubr.f32.gmra.mrb[0].mxu0 %v4199
      %v6023 = vpop.f32.mrb[0].mxu0
      %v6024 = vadd.f32 0.0, %v6023
      %v6025 = vpop.f32.mrb[0].mxu0
      %v6026 = vadd.f32 0.0, %v6025
      %6027 = vmatprep.mubr.f32.mxu0 %v4676
      %6028 = vmatmul.mubr.f32.gmra.mrb[0].mxu0 %v4201
      %v6029 = vpop.f32.mrb[0].mxu0
      %v6030 = vadd.f32 0.0, %v6029
      %v6031 = vpop.f32.mrb[0].mxu0
      %v6032 = vadd.f32 0.0, %v6031
      %6033 = vdwg.mxu0
      %6034 = vmatprep.subr.mxu0 0.0
      %6035 = vmatpush1.msra.mxu0 %v4227
      %6036 = vmatprep.subr.mxu0 0.0
      %6037 = vmatpush1.msra.mxu0 %v4252
      %6038 = vmatprep.subr.mxu0 0.0
      %6039 = vmatpush1.msra.mxu0 %v4277
      %6040 = vmatprep.subr.mxu0 0.0
      %6041 = vmatpush1.msra.mxu0 %v4302
      %6042 = vmatprep.subr.mxu0 0.0
      %6043 = vmatpush1.msra.mxu0 %v4327
      %6044 = vmatprep.subr.mxu0 0.0
      %6045 = vmatpush1.msra.mxu0 %v4352
      %6046 = vmatprep.subr.mxu0 0.0
      %6047 = vmatpush1.msra.mxu0 %v4377
      %6048 = vmatprep.subr.mxu0 0.0
      %6049 = vmatpush1.msra.mxu0 %v4402
      %6050 = vmatprep.subr.mxu0 0.0
      %6051 = vmatpush1.msra.mxu0 %v4427
      %6052 = vmatprep.subr.mxu0 0.0
      %6053 = vmatpush1.msra.mxu0 %v4452
      %6054 = vmatprep.subr.mxu0 0.0
      %6055 = vmatpush1.msra.mxu0 %v4477
      %6056 = vmatprep.subr.mxu0 0.0
      %6057 = vmatpush1.msra.mxu0 %v4502
      %6058 = vmatprep.subr.mxu0 0.0
      %6059 = vmatpush1.msra.mxu0 %v4527
      %6060 = vmatprep.subr.mxu0 0.0
      %6061 = vmatpush1.msra.mxu0 %v4552
      %6062 = vmatprep.subr.mxu0 0.0
      %6063 = vmatpush1.msra.mxu0 %v4577
      %6064 = vmatprep.subr.mxu0 0.0
      %6065 = vmatpush1.msra.mxu0 %v4602
      %6066 = vmatprep.subr.mxu0 0.0
      %6067 = vmatpush1.msra.mxu0 %v4627
      %6068 = vmatprep.subr.mxu0 0.0
      %6069 = vmatpush1.msra.mxu0 %v4652
      %6070 = vmatprep.subr.mxu0 0.0
      %6071 = vmatpush1.msra.mxu0 0.0
      %6072 = vmatprep.subr.mxu0 0.0
      %6073 = vmatpush1.msra.mxu0 0.0
      %6074 = vmatprep.subr.mxu0 0.0
      %6075 = vmatpush1.msra.mxu0 0.0
      %6076 = vmatprep.subr.mxu0 0.0
      %6077 = vmatpush1.msra.mxu0 0.0
      %6078 = vmatprep.subr.mxu0 0.0
      %6079 = vmatpush1.msra.mxu0 0.0
      %6080 = vmatprep.subr.mxu0 0.0
      %6081 = vmatpush1.msra.mxu0 0.0
      %6082 = vmatprep.subr.mxu0 0.0
      %6083 = vmatpush1.msra.mxu0 0.0
      %6084 = vmatprep.subr.mxu0 0.0
      %6085 = vmatpush1.msra.mxu0 0.0
      %6086 = vmatprep.subr.mxu0 0.0
      %6087 = vmatpush1.msra.mxu0 0.0
      %6088 = vmatprep.subr.mxu0 0.0
      %6089 = vmatpush1.msra.mxu0 0.0
      %6090 = vmatprep.subr.mxu0 0.0
      %6091 = vmatpush1.msra.mxu0 0.0
      %6092 = vmatprep.subr.mxu0 0.0
      %6093 = vmatpush1.msra.mxu0 0.0
      %6094 = vmatprep.subr.mxu0 0.0
      %6095 = vmatpush1.msra.mxu0 0.0
      %6096 = vmatprep.subr.mxu0 0.0
      %6097 = vmatpush1.msra.mxu0 0.0
      %6098 = vmatprep.mubr.f32.mxu0 %v4655
      %6099 = vmatmul.mubr.f32.gmra.mrb[0].mxu0 %v4187
      %v6100 = vpop.f32.mrb[0].mxu0
      %v6101 = vadd.f32 0.0, %v6100
      %v6102 = vpop.f32.mrb[0].mxu0
      %6103 = vmatprep.mubr.f32.mxu0 %v4658
      %6104 = vmatmul.mubr.f32.gmra.mrb[0].mxu0 %v4189
      %v6105 = vpop.f32.mrb[0].mxu0
      %v6106 = vadd.f32 0.0, %v6105
      %v6107 = vpop.f32.mrb[0].mxu0
      %6108 = vmatprep.mubr.f32.mxu0 %v4661
      %6109 = vmatmul.mubr.f32.gmra.mrb[0].mxu0 %v4191
      %v6110 = vpop.f32.mrb[0].mxu0
      %v6111 = vadd.f32 0.0, %v6110
      %v6112 = vpop.f32.mrb[0].mxu0
      %6113 = vmatprep.mubr.f32.mxu0 %v4664
      %6114 = vmatmul.mubr.f32.gmra.mrb[0].mxu0 %v4193
      %v6115 = vpop.f32.mrb[0].mxu0
      %v6116 = vadd.f32 0.0, %v6115
      %v6117 = vpop.f32.mrb[0].mxu0
      %6118 = vmatprep.mubr.f32.mxu0 %v4667
      %6119 = vmatmul.mubr.f32.gmra.mrb[0].mxu0 %v4195
      %v6120 = vpop.f32.mrb[0].mxu0
      %v6121 = vadd.f32 0.0, %v6120
      %v6122 = vpop.f32.mrb[0].mxu0
      %6123 = vmatprep.mubr.f32.mxu0 %v4670
      %6124 = vmatmul.mubr.f32.gmra.mrb[0].mxu0 %v4197
      %v6125 = vpop.f32.mrb[0].mxu0
      %v6126 = vadd.f32 0.0, %v6125
      %v6127 = vpop.f32.mrb[0].mxu0
      %6128 = vmatprep.mubr.f32.mxu0 %v4673
      %6129 = vmatmul.mubr.f32.gmra.mrb[0].mxu0 %v4199
      %v6130 = vpop.f32.mrb[0].mxu0
      %v6131 = vadd.f32 0.0, %v6130
      %v6132 = vpop.f32.mrb[0].mxu0
      %6133 = vmatprep.mubr.f32.mxu0 %v4676
      %6134 = vmatmul.mubr.f32.gmra.mrb[0].mxu0 %v4201
      %v6135 = vpop.f32.mrb[0].mxu0
      %v6136 = vadd.f32 0.0, %v6135
      %v6137 = vpop.f32.mrb[0].mxu0
      %6138 = vdwg.mxu0
      %6139 = vst [vmem:[%s184] sm:$0xff] %v4745
      %6140 = vst [vmem:[%s184 + $0x8] sm:$0xff] %v4747
      %6141 = vst [vmem:[%s184 + $0x10] sm:$0xff] %v4858
      %6142 = vst [vmem:[%s184 + $0x18] sm:$0xff] %v4860
      %6143 = vst [vmem:[%s184 + $0x20] sm:$0xff] %v4971
      %6144 = vst [vmem:[%s184 + $0x28] sm:$0xff] %v4973
      %6145 = vst [vmem:[%s184 + $0x30] sm:$0xff] %v5084
      %6146 = vst [vmem:[%s184 + $0x38] sm:$0xff] %v5086
      %6147 = vst [vmem:[%s184 + $0x40] sm:$0xff] %v5197
      %6148 = vst [vmem:[%s184 + $0x48] sm:$0xff] %v5199
      %6149 = vst [vmem:[%s184 + $0x50] sm:$0xff] %v5310
      %6150 = vst [vmem:[%s184 + $0x58] sm:$0xff] %v5312
      %6151 = vst [vmem:[%s184 + $0x60] sm:$0xff] %v5423
      %6152 = vst [vmem:[%s184 + $0x68] sm:$0xff] %v5425
      %6153 = vst [vmem:[%s184 + $0x70] sm:$0xff] %v5536
      %6154 = vst [vmem:[%s184 + $0x78] sm:$0xff] %v5538
      %6155 = vst [vmem:[%s184 + $0x80] sm:$0xff] %v5649
      %6156 = vst [vmem:[%s184 + $0x88] sm:$0xff] %v5651
      %6157 = vst [vmem:[%s184 + $0x90] sm:$0xff] %v5762
      %6158 = vst [vmem:[%s184 + $0x98] sm:$0xff] %v5764
      %6159 = vst [vmem:[%s184 + $0xa0] sm:$0xff] %v5875
      %6160 = vst [vmem:[%s184 + $0xa8] sm:$0xff] %v5877
      %6161 = vst [vmem:[%s184 + $0xb0] sm:$0xff] %v5988
      %6162 = vst [vmem:[%s184 + $0xb8] sm:$0xff] %v5990
      %vm6163 = vcmask 523264
      %6164 = vst.msk [vmem:[%s184 + $0xc0] sm:$0xff] %vm6163, %v6101
      %6165 = vst [vmem:[%s184 + $0xc8] sm:$0xff] %v4751
      %6166 = vst [vmem:[%s184 + $0xd0] sm:$0xff] %v4753
      %6167 = vst [vmem:[%s184 + $0xd8] sm:$0xff] %v4864
      %6168 = vst [vmem:[%s184 + $0xe0] sm:$0xff] %v4866
      %6169 = vst [vmem:[%s184 + $0xe8] sm:$0xff] %v4977
      %6170 = vst [vmem:[%s184 + $0xf0] sm:$0xff] %v4979
      %6171 = vst [vmem:[%s184 + $0xf8] sm:$0xff] %v5090
      %6172 = vst [vmem:[%s184 + $0x100] sm:$0xff] %v5092
      %6173 = vst [vmem:[%s184 + $0x108] sm:$0xff] %v5203
      %6174 = vst [vmem:[%s184 + $0x110] sm:$0xff] %v5205
      %6175 = vst [vmem:[%s184 + $0x118] sm:$0xff] %v5316
      %6176 = vst [vmem:[%s184 + $0x120] sm:$0xff] %v5318
      %6177 = vst [vmem:[%s184 + $0x128] sm:$0xff] %v5429
      %6178 = vst [vmem:[%s184 + $0x130] sm:$0xff] %v5431
      %6179 = vst [vmem:[%s184 + $0x138] sm:$0xff] %v5542
      %6180 = vst [vmem:[%s184 + $0x140] sm:$0xff] %v5544
      %6181 = vst [vmem:[%s184 + $0x148] sm:$0xff] %v5655
      %6182 = vst [vmem:[%s184 + $0x150] sm:$0xff] %v5657
      %6183 = vst [vmem:[%s184 + $0x158] sm:$0xff] %v5768
      %6184 = vst [vmem:[%s184 + $0x160] sm:$0xff] %v5770
      %6185 = vst [vmem:[%s184 + $0x168] sm:$0xff] %v5881
      %6186 = vst [vmem:[%s184 + $0x170] sm:$0xff] %v5883
      %6187 = vst [vmem:[%s184 + $0x178] sm:$0xff] %v5994
      %6188 = vst [vmem:[%s184 + $0x180] sm:$0xff] %v5996
      %6189 = vst.msk [vmem:[%s184 + $0x188] sm:$0xff] %vm6163, %v6106
      %6190 = vst [vmem:[%s184 + $0x190] sm:$0xff] %v4757
      %6191 = vst [vmem:[%s184 + $0x198] sm:$0xff] %v4759
      %6192 = vst [vmem:[%s184 + $0x1a0] sm:$0xff] %v4870
      %6193 = vst [vmem:[%s184 + $0x1a8] sm:$0xff] %v4872
      %6194 = vst [vmem:[%s184 + $0x1b0] sm:$0xff] %v4983
      %6195 = vst [vmem:[%s184 + $0x1b8] sm:$0xff] %v4985
      %6196 = vst [vmem:[%s184 + $0x1c0] sm:$0xff] %v5096
      %6197 = vst [vmem:[%s184 + $0x1c8] sm:$0xff] %v5098
      %6198 = vst [vmem:[%s184 + $0x1d0] sm:$0xff] %v5209
      %6199 = vst [vmem:[%s184 + $0x1d8] sm:$0xff] %v5211
      %6200 = vst [vmem:[%s184 + $0x1e0] sm:$0xff] %v5322
      %6201 = vst [vmem:[%s184 + $0x1e8] sm:$0xff] %v5324
      %6202 = vst [vmem:[%s184 + $0x1f0] sm:$0xff] %v5435
      %6203 = vst [vmem:[%s184 + $0x1f8] sm:$0xff] %v5437
      %6204 = vst [vmem:[%s184 + $0x200] sm:$0xff] %v5548
      %6205 = vst [vmem:[%s184 + $0x208] sm:$0xff] %v5550
      %6206 = vst [vmem:[%s184 + $0x210] sm:$0xff] %v5661
      %6207 = vst [vmem:[%s184 + $0x218] sm:$0xff] %v5663
      %6208 = vst [vmem:[%s184 + $0x220] sm:$0xff] %v5774
      %6209 = vst [vmem:[%s184 + $0x228] sm:$0xff] %v5776
      %6210 = vst [vmem:[%s184 + $0x230] sm:$0xff] %v5887
      %6211 = vst [vmem:[%s184 + $0x238] sm:$0xff] %v5889
      %6212 = vst [vmem:[%s184 + $0x240] sm:$0xff] %v6000
      %6213 = vst [vmem:[%s184 + $0x248] sm:$0xff] %v6002
      %6214 = vst.msk [vmem:[%s184 + $0x250] sm:$0xff] %vm6163, %v6111
      %6215 = vst [vmem:[%s184 + $0x258] sm:$0xff] %v4763
      %6216 = vst [vmem:[%s184 + $0x260] sm:$0xff] %v4765
      %6217 = vst [vmem:[%s184 + $0x268] sm:$0xff] %v4876
      %6218 = vst [vmem:[%s184 + $0x270] sm:$0xff] %v4878
      %6219 = vst [vmem:[%s184 + $0x278] sm:$0xff] %v4989
      %6220 = vst [vmem:[%s184 + $0x280] sm:$0xff] %v4991
      %6221 = vst [vmem:[%s184 + $0x288] sm:$0xff] %v5102
      %6222 = vst [vmem:[%s184 + $0x290] sm:$0xff] %v5104
      %6223 = vst [vmem:[%s184 + $0x298] sm:$0xff] %v5215
      %6224 = vst [vmem:[%s184 + $0x2a0] sm:$0xff] %v5217
      %6225 = vst [vmem:[%s184 + $0x2a8] sm:$0xff] %v5328
      %6226 = vst [vmem:[%s184 + $0x2b0] sm:$0xff] %v5330
      %6227 = vst [vmem:[%s184 + $0x2b8] sm:$0xff] %v5441
      %6228 = vst [vmem:[%s184 + $0x2c0] sm:$0xff] %v5443
      %6229 = vst [vmem:[%s184 + $0x2c8] sm:$0xff] %v5554
      %6230 = vst [vmem:[%s184 + $0x2d0] sm:$0xff] %v5556
      %6231 = vst [vmem:[%s184 + $0x2d8] sm:$0xff] %v5667
      %6232 = vst [vmem:[%s184 + $0x2e0] sm:$0xff] %v5669
      %6233 = vst [vmem:[%s184 + $0x2e8] sm:$0xff] %v5780
      %6234 = vst [vmem:[%s184 + $0x2f0] sm:$0xff] %v5782
      %6235 = vst [vmem:[%s184 + $0x2f8] sm:$0xff] %v5893
      %6236 = vst [vmem:[%s184 + $0x300] sm:$0xff] %v5895
      %6237 = vst [vmem:[%s184 + $0x308] sm:$0xff] %v6006
      %6238 = vst [vmem:[%s184 + $0x310] sm:$0xff] %v6008
      %6239 = vst.msk [vmem:[%s184 + $0x318] sm:$0xff] %vm6163, %v6116
      %6240 = vst [vmem:[%s184 + $0x320] sm:$0xff] %v4769
      %6241 = vst [vmem:[%s184 + $0x328] sm:$0xff] %v4771
      %6242 = vst [vmem:[%s184 + $0x330] sm:$0xff] %v4882
      %6243 = vst [vmem:[%s184 + $0x338] sm:$0xff] %v4884
      %6244 = vst [vmem:[%s184 + $0x340] sm:$0xff] %v4995
      %6245 = vst [vmem:[%s184 + $0x348] sm:$0xff] %v4997
      %6246 = vst [vmem:[%s184 + $0x350] sm:$0xff] %v5108
      %6247 = vst [vmem:[%s184 + $0x358] sm:$0xff] %v5110
      %6248 = vst [vmem:[%s184 + $0x360] sm:$0xff] %v5221
      %6249 = vst [vmem:[%s184 + $0x368] sm:$0xff] %v5223
      %6250 = vst [vmem:[%s184 + $0x370] sm:$0xff] %v5334
      %6251 = vst [vmem:[%s184 + $0x378] sm:$0xff] %v5336
      %6252 = vst [vmem:[%s184 + $0x380] sm:$0xff] %v5447
      %6253 = vst [vmem:[%s184 + $0x388] sm:$0xff] %v5449
      %6254 = vst [vmem:[%s184 + $0x390] sm:$0xff] %v5560
      %6255 = vst [vmem:[%s184 + $0x398] sm:$0xff] %v5562
      %6256 = vst [vmem:[%s184 + $0x3a0] sm:$0xff] %v5673
      %6257 = vst [vmem:[%s184 + $0x3a8] sm:$0xff] %v5675
      %6258 = vst [vmem:[%s184 + $0x3b0] sm:$0xff] %v5786
      %6259 = vst [vmem:[%s184 + $0x3b8] sm:$0xff] %v5788
      %6260 = vst [vmem:[%s184 + $0x3c0] sm:$0xff] %v5899
      %6261 = vst [vmem:[%s184 + $0x3c8] sm:$0xff] %v5901
      %6262 = vst [vmem:[%s184 + $0x3d0] sm:$0xff] %v6012
      %6263 = vst [vmem:[%s184 + $0x3d8] sm:$0xff] %v6014
      %6264 = vst.msk [vmem:[%s184 + $0x3e0] sm:$0xff] %vm6163, %v6121
      %6265 = vst [vmem:[%s184 + $0x3e8] sm:$0xff] %v4775
      %6266 = vst [vmem:[%s184 + $0x3f0] sm:$0xff] %v4777
      %6267 = vst [vmem:[%s184 + $0x3f8] sm:$0xff] %v4888
      %6268 = vst [vmem:[%s184 + $0x400] sm:$0xff] %v4890
      %6269 = vst [vmem:[%s184 + $0x408] sm:$0xff] %v5001
      %6270 = vst [vmem:[%s184 + $0x410] sm:$0xff] %v5003
      %6271 = vst [vmem:[%s184 + $0x418] sm:$0xff] %v5114
      %6272 = vst [vmem:[%s184 + $0x420] sm:$0xff] %v5116
      %6273 = vst [vmem:[%s184 + $0x428] sm:$0xff] %v5227
      %6274 = vst [vmem:[%s184 + $0x430] sm:$0xff] %v5229
      %6275 = vst [vmem:[%s184 + $0x438] sm:$0xff] %v5340
      %6276 = vst [vmem:[%s184 + $0x440] sm:$0xff] %v5342
      %6277 = vst [vmem:[%s184 + $0x448] sm:$0xff] %v5453
      %6278 = vst [vmem:[%s184 + $0x450] sm:$0xff] %v5455
      %6279 = vst [vmem:[%s184 + $0x458] sm:$0xff] %v5566
      %6280 = vst [vmem:[%s184 + $0x460] sm:$0xff] %v5568
      %6281 = vst [vmem:[%s184 + $0x468] sm:$0xff] %v5679
      %6282 = vst [vmem:[%s184 + $0x470] sm:$0xff] %v5681
      %6283 = vst [vmem:[%s184 + $0x478] sm:$0xff] %v5792
      %6284 = vst [vmem:[%s184 + $0x480] sm:$0xff] %v5794
      %6285 = vst [vmem:[%s184 + $0x488] sm:$0xff] %v5905
      %6286 = vst [vmem:[%s184 + $0x490] sm:$0xff] %v5907
      %6287 = vst [vmem:[%s184 + $0x498] sm:$0xff] %v6018
      %6288 = vst [vmem:[%s184 + $0x4a0] sm:$0xff] %v6020
      %6289 = vst.msk [vmem:[%s184 + $0x4a8] sm:$0xff] %vm6163, %v6126
      %6290 = vst [vmem:[%s184 + $0x4b0] sm:$0xff] %v4781
      %6291 = vst [vmem:[%s184 + $0x4b8] sm:$0xff] %v4783
      %6292 = vst [vmem:[%s184 + $0x4c0] sm:$0xff] %v4894
      %6293 = vst [vmem:[%s184 + $0x4c8] sm:$0xff] %v4896
      %6294 = vst [vmem:[%s184 + $0x4d0] sm:$0xff] %v5007
      %6295 = vst [vmem:[%s184 + $0x4d8] sm:$0xff] %v5009
      %6296 = vst [vmem:[%s184 + $0x4e0] sm:$0xff] %v5120
      %6297 = vst [vmem:[%s184 + $0x4e8] sm:$0xff] %v5122
      %6298 = vst [vmem:[%s184 + $0x4f0] sm:$0xff] %v5233
      %6299 = vst [vmem:[%s184 + $0x4f8] sm:$0xff] %v5235
      %6300 = vst [vmem:[%s184 + $0x500] sm:$0xff] %v5346
      %6301 = vst [vmem:[%s184 + $0x508] sm:$0xff] %v5348
      %6302 = vst [vmem:[%s184 + $0x510] sm:$0xff] %v5459
      %6303 = vst [vmem:[%s184 + $0x518] sm:$0xff] %v5461
      %6304 = vst [vmem:[%s184 + $0x520] sm:$0xff] %v5572
      %6305 = vst [vmem:[%s184 + $0x528] sm:$0xff] %v5574
      %6306 = vst [vmem:[%s184 + $0x530] sm:$0xff] %v5685
      %6307 = vst [vmem:[%s184 + $0x538] sm:$0xff] %v5687
      %6308 = vst [vmem:[%s184 + $0x540] sm:$0xff] %v5798
      %6309 = vst [vmem:[%s184 + $0x548] sm:$0xff] %v5800
      %6310 = vst [vmem:[%s184 + $0x550] sm:$0xff] %v5911
      %6311 = vst [vmem:[%s184 + $0x558] sm:$0xff] %v5913
      %6312 = vst [vmem:[%s184 + $0x560] sm:$0xff] %v6024
      %6313 = vst [vmem:[%s184 + $0x568] sm:$0xff] %v6026
      %6314 = vst.msk [vmem:[%s184 + $0x570] sm:$0xff] %vm6163, %v6131
      %6315 = vst [vmem:[%s184 + $0x578] sm:$0xff] %v4787
      %6316 = vst [vmem:[%s184 + $0x580] sm:$0xff] %v4789
      %6317 = vst [vmem:[%s184 + $0x588] sm:$0xff] %v4900
      %6318 = vst [vmem:[%s184 + $0x590] sm:$0xff] %v4902
      %6319 = vst [vmem:[%s184 + $0x598] sm:$0xff] %v5013
      %6320 = vst [vmem:[%s184 + $0x5a0] sm:$0xff] %v5015
      %6321 = vst [vmem:[%s184 + $0x5a8] sm:$0xff] %v5126
      %6322 = vst [vmem:[%s184 + $0x5b0] sm:$0xff] %v5128
      %6323 = vst [vmem:[%s184 + $0x5b8] sm:$0xff] %v5239
      %6324 = vst [vmem:[%s184 + $0x5c0] sm:$0xff] %v5241
      %6325 = vst [vmem:[%s184 + $0x5c8] sm:$0xff] %v5352
      %6326 = vst [vmem:[%s184 + $0x5d0] sm:$0xff] %v5354
      %6327 = vst [vmem:[%s184 + $0x5d8] sm:$0xff] %v5465
      %6328 = vst [vmem:[%s184 + $0x5e0] sm:$0xff] %v5467
      %6329 = vst [vmem:[%s184 + $0x5e8] sm:$0xff] %v5578
      %6330 = vst [vmem:[%s184 + $0x5f0] sm:$0xff] %v5580
      %6331 = vst [vmem:[%s184 + $0x5f8] sm:$0xff] %v5691
      %6332 = vst [vmem:[%s184 + $0x600] sm:$0xff] %v5693
      %6333 = vst [vmem:[%s184 + $0x608] sm:$0xff] %v5804
      %6334 = vst [vmem:[%s184 + $0x610] sm:$0xff] %v5806
      %6335 = vst [vmem:[%s184 + $0x618] sm:$0xff] %v5917
      %6336 = vst [vmem:[%s184 + $0x620] sm:$0xff] %v5919
      %6337 = vst [vmem:[%s184 + $0x628] sm:$0xff] %v6030
      %6338 = vst [vmem:[%s184 + $0x630] sm:$0xff] %v6032
      %6339 = vst.msk [vmem:[%s184 + $0x638] sm:$0xff] %vm6163, %v6136
      %s6340 = smul.u32 %s17, 3
      %s6341 = sadd.s32 %s6340, %s18
      %s6342 = smul.u32 8, %s6341
      %p6343 = scmp.lt.s32.totalorder %s6342, 23
      %s6344 = scalar_select %p6343, %s6342, 23
      %s6345 = smul.addr %s6344, 25
      %s6346 = smul.addr %s6345, 8
      %s6347 = scalar_lea.vmem %s2, %s6346
      // Predicated region
      $region33: #{forward.1} parent=27 // pred_check
        %p6348 = pneg %p98
      $region34: #{forward.1} parent=27 // pred_check_branch
        %6350 = sbr.rel (%p6348) target = $region36
      $region35: #{forward.1} parent=27 // pred_region
        %s6351 = smul.u32 %s17, 3
        %s6352 = sadd.s32 %s6351, %s18
        %s6353 = smul.u32 8, %s6352
      $region36: #{forward.1} parent=27 // pred_fallthru
        _
    $region28: #{forward.1} parent=5 // pred_fallthru
      _
    %p6354 = scmp.le.s32.totalorder 2, %s8
    // Predicated region
    $region37: #{forward.1} parent=5 // pred_check
      %p6355 = pneg %p6354
    $region38: #{forward.1} parent=5 // pred_check_branch
      %6357 = sbr.rel (%p6355) target = $region40
    $region39: #{forward.1} parent=5 // pred_region
      %s6358 = ssub.s32 %s8, 2
      // Predicated region
      $region41: #{forward.1} parent=39 // pred_check
        %p6359 = pneg %p104
      $region42: #{forward.1} parent=39 // pred_check_branch
        %6361 = sbr.rel (%p6359) target = $region44
      $region43: #{forward.1} parent=39 // pred_region
        %s6362 = smul.u32 %s19, 3
        %s6363 = sadd.s32 %s6362, %s20
        %s6364 = smul.u32 8, %s6363
        %p6365 = scmp.lt.s32.totalorder %s6364, 23
        %s6366 = scalar_select %p6365, %s6364, 23
        %s6367 = smul.addr %s6366, 25
        %s6368 = smul.addr %s6367, 8
        %s6369 = scalar_lea.vmem %s2, %s6368
      $region44: #{forward.1} parent=39 // pred_fallthru
        _
    $region40: #{forward.1} parent=5 // pred_fallthru
      _
  $region6: #{forward.1} parent=0 // loop_footer
    %s12 = sadd.s32 1, %s8
  $region7: #{forward.1} parent=0 // loop_footer_branch
    %7 = sbr.rel target = $region3
  $region8: #{forward.1} parent=0 // loop_exit
    _

</llo_original>
